<compile_context>
chip_gen: v7x
topology: tpu7x:2x2x1
jax: 0.10.0
libtpu: 0.0.40
codegen_flags: <defaults>
</compile_context>

<pallas_src>
import functools
import math

import jax
import jax.numpy as jnp
from jax import lax
from jax.experimental import pallas as pl
from jax.experimental.pallas import tpu as pltpu

LN_EPS = 1e-12        # matches the reference repo's custom LayerNorm (not nn.LayerNorm's 1e-5)
NEG_INF = -10000.0    # masked_fill value used by the reference ScaleDotProductAttention


def _layer_norm(x, gamma, beta):
    # x: (T, C) f32, gamma/beta: (1, C) f32
    mean = jnp.mean(x, axis=-1, keepdims=True)
    var = jnp.mean(jnp.square(x - mean), axis=-1, keepdims=True)  # unbiased=False
    inv = lax.rsqrt(var + LN_EPS)                                  # EUP rsqrt, no divide
    return (x - mean) * inv * gamma + beta


def encoder_layer_kernel(
    xkv_ref, mask_ref,
    wq_ref, bq_ref, wkv_ref, bkv_ref, wc_ref, bc_ref,
    g1_ref, be1_ref,
    w1_ref, b1_ref, w2_ref, b2_ref,
    g2_ref, be2_ref,
    o_ref,
    kv_ref,
    *, n_head, tq):
    f32 = jnp.float32
    bf16 = jnp.bfloat16

    C = wq_ref.shape[0]
    d_head = C // n_head
    scale = 1.0 / math.sqrt(d_head)
    qi = pl.program_id(1)

    # ---- per-batch K/V projection: ONCE per batch element into persistent bf16 scratch ----
    @pl.when(qi == 0)
    def _():
        xkv = xkv_ref[0]                                                  # (T, C) bf16
        kv = jnp.dot(xkv, wkv_ref[...], preferred_element_type=f32) + bkv_ref[...]
        kv_ref[0] = kv[:, :C].astype(bf16)                                # K
        kv_ref[1] = kv[:, C:].astype(bf16)                                # V

    # ---- query tile: sliced from the resident xkv block (no separate xq DMA) ----
    row0 = pl.multiple_of(qi * tq, tq)
    xq_bf = xkv_ref[0, pl.ds(row0, tq), :]                                # (tq, C) bf16
    xq = xq_bf.astype(f32)

    neg_mask = mask_ref[0].astype(jnp.int32) == 0                         # (tq, T), once per tile

    q = jnp.dot(xq_bf, wq_ref[...], preferred_element_type=f32) + bq_ref[...]
    q = q * scale                                                         # fold 1/sqrt(d_head)
    k = kv_ref[0]                                                         # (T, C) bf16
    v = kv_ref[1]                                                         # (T, C) bf16

    # ---- multi-head self-attention: per-head QK^T / PV, ONE consolidated w_concat matmul ----
    dn_qkt = (((1,), (1,)), ((), ()))                                     # contract last axes
    ctx_heads = []
    for h in range(n_head):                                               # unrolled at trace time
        sl = slice(h * d_head, (h + 1) * d_head)
        qh = q[:, sl].astype(bf16)                                        # (tq, d_head)
        scores = lax.dot_general(qh, k[:, sl], dn_qkt,
                                 preferred_element_type=f32)              # (tq, T)
        scores = jnp.where(neg_mask, NEG_INF, scores)
        m = jnp.max(scores, axis=-1, keepdims=True)
        e = jnp.exp(scores - m)
        probs = e * pl.reciprocal(jnp.sum(e, axis=-1, keepdims=True), approx=True)
        ctx_heads.append(jnp.dot(probs.astype(bf16), v[:, sl],
                                 preferred_element_type=f32))             # (tq, d_head)
    ctx = jnp.concatenate(ctx_heads, axis=-1)                             # (tq, C) == torch concat()
    attn = jnp.dot(ctx.astype(bf16), wc_ref[...], preferred_element_type=f32) + bc_ref[...]

    # ---- add & norm 1 ----
    x1 = _layer_norm(attn + xq, g1_ref[...], be1_ref[...])

    # ---- position-wise feed-forward (dropout == identity at inference) ----
    hdn = jnp.dot(x1.astype(bf16), w1_ref[...], preferred_element_type=f32) + b1_ref[...]
    hdn = jnp.maximum(hdn, 0.0)
    ffn = jnp.dot(hdn.astype(bf16), w2_ref[...], preferred_element_type=f32) + b2_ref[...]

    # ---- add & norm 2 ----
    o_ref[0] = _layer_norm(ffn + x1, g2_ref[...], be2_ref[...]).astype(o_ref.dtype)


def _pick_query_tile(T):
    # Prefer large query tiles: amortize per-grid-step overhead and fill the 256-row MXU
    # on v6e/v7x (review: TQ >= 256, ideally 512 on 128 MiB parts).
    if T <= 512:
        return T
    for tq in (512, 384, 256, 128):
        if T % tq == 0:
            return tq
    for tq in range(512, 7, -8):            # largest divisor of T that is a multiple of 8
        if T % tq == 0:
            return tq
    # TODO(synk): ragged/prime T would need padding or pl.BoundedSlice; whole-seq fallback.
    return T


def _vmem_limit_bytes(T, C, H, tq, param_bytes):
    bf16, f32 = 2, 4
    # Auto-pipelined blocks: xkv (bf16 x2 buffers), mask (int8 x2), out (bf16 x2).
    blocks = 2 * T * C * bf16 + 2 * tq * T + 2 * tq * C * bf16
    # Persistent per-batch K/V scratch (bf16).
    scratch = 2 * T * C * bf16
    # In-kernel intermediates (f32): kv projection result, per-head scores/e/probs,
    # q/ctx/x1/attn, FFN hidden.
    interm = 2 * T * C * f32 + 3 * tq * T * f32 + 4 * tq * C * f32 + tq * H * f32
    need = param_bytes + blocks + scratch + interm + (8 << 20)      # compiler headroom
    try:
        cap = int(pltpu.get_tpu_info().vmem_capacity_bytes) - (8 << 20)
    except Exception:
        cap = 56 << 20       # conservative: fits v7x's 64 MiB physical with headroom
    return int(max(16 << 20, min(need, cap)))


def encoder_layer_apply(x, mask, params, n_head):
    B, T, C = x.shape
    H = params["w1"].shape[1]
    tq = _pick_query_tile(T)
    nq = T // tq

    x = x.astype(jnp.bfloat16)

    def wspec(shape):
        # Constant index map across the whole grid -> single-buffer the weight/bias blocks.
        return pl.BlockSpec(shape, lambda b, qi: (0, 0), pipeline_mode=pl.Buffered(1))

    in_specs = [
        pl.BlockSpec((1, T, C), lambda b, qi: (b, 0, 0)),        # x (full sequence, bf16)
        pl.BlockSpec((1, tq, T), lambda b, qi: (b, qi, 0)),      # mask (int8)
        wspec((C, C)), wspec((1, C)),                            # wq, bq
        wspec((C, 2 * C)), wspec((1, 2 * C)),                    # wkv (fused K|V), bkv
        wspec((C, C)), wspec((1, C)),                            # wc, bc
        wspec((1, C)), wspec((1, C)),                            # gamma1, beta1
        wspec((C, H)), wspec((1, H)),                            # w1, b1
        wspec((H, C)), wspec((1, C)),                            # w2, b2
        wspec((1, C)), wspec((1, C)),                            # gamma2, beta2
    ]

    param_bytes = sum(int(v.size) * v.dtype.itemsize for v in params.values())
    vmem_limit = _vmem_limit_bytes(T, C, H, tq, param_bytes)

    kernel = functools.partial(encoder_layer_kernel, n_head=n_head, tq=tq)

    return pl.pallas_call(
        kernel,
        out_shape=jax.ShapeDtypeStruct((B, T, C), jnp.bfloat16),
        grid_spec=pltpu.PrefetchScalarGridSpec(
            num_scalar_prefetch=0,
            grid=(B, nq),
            in_specs=in_specs,
            out_specs=pl.BlockSpec((1, tq, C), lambda b, qi: (b, qi, 0)),
            scratch_shapes=[pltpu.VMEM((2, T, C), jnp.bfloat16)],   # persistent K/V (bf16)
        ),
        compiler_params=pltpu.CompilerParams(
            # qi axis is "arbitrary": the per-batch K/V scratch carries across query tiles.
            dimension_semantics=("parallel", "arbitrary"),
            vmem_limit_bytes=vmem_limit,
        ),
    )(
        x, mask,
        params["wq"], params["bq"], params["wkv"], params["bkv"],
        params["wc"], params["bc"],
        params["g1"], params["be1"],
        params["w1"], params["b1"], params["w2"], params["b2"],
        params["g2"], params["be2"],
    )


def encoder_forward(x, src_mask, layer_params, n_head):
    # Carry activations between layers in bf16 (halves HBM read+write per layer).
    x = x.astype(jnp.bfloat16)
    for params in layer_params:
        x = encoder_layer_apply(x, src_mask, params, n_head)
    return x.astype(jnp.float32)


def init_layer_params(key, d_model, ffn_hidden):
    ks = jax.random.split(key, 6)
    s = 0.02

    def lin(k, din, dout):
        w = jax.random.normal(k, (din, dout), jnp.float32) * s
        return w.astype(jnp.bfloat16), jnp.zeros((1, dout), jnp.float32)

    wq, bq = lin(ks[0], d_model, d_model)
    wk, bk = lin(ks[1], d_model, d_model)
    wv, bv = lin(ks[2], d_model, d_model)
    wc, bc = lin(ks[3], d_model, d_model)
    w1, b1 = lin(ks[4], d_model, ffn_hidden)
    w2, b2 = lin(ks[5], ffn_hidden, d_model)
    return dict(
        wq=wq, bq=bq,
        wkv=jnp.concatenate([wk, wv], axis=1),       # fused K|V weight (C, 2C) bf16
        bkv=jnp.concatenate([bk, bv], axis=1),       # fused K|V bias   (1, 2C) f32
        wc=wc, bc=bc,
        g1=jnp.ones((1, d_model), jnp.float32), be1=jnp.zeros((1, d_model), jnp.float32),
        w1=w1, b1=b1, w2=w2, b2=b2,
        g2=jnp.ones((1, d_model), jnp.float32), be2=jnp.zeros((1, d_model), jnp.float32),
    )


if __name__ == "__main__":
    B, T = 2, 8
    d_model, n_head, ffn_hidden, n_layers = 32, 4, 64, 2

    key = jax.random.PRNGKey(0)
    kx, kp = jax.random.split(key)
    x = jax.random.normal(kx, (B, T, d_model), jnp.float32)
    # src_mask: 1 = attend, 0 = masked (score replaced by -10000). int8 to shrink DMA.
    src_mask = jnp.ones((B, T, T), jnp.int8)

    layer_keys = jax.random.split(kp, n_layers)
    layer_params = [init_layer_params(k, d_model, ffn_hidden) for k in layer_keys]

    # TODO(synk): training-mode dropout (RNG) is not implemented; kernel is inference-mode.
    fwd = jax.jit(functools.partial(encoder_forward, n_head=n_head))
    out = fwd(x, src_mask, layer_params)
    out = jax.block_until_ready(out)
    assert out.shape == (B, T, d_model)
    assert bool(jnp.all(jnp.isfinite(out)))
    print("KERNEL_OK")
</pallas_src>

<mosaic_0001>
module attributes {stable_mosaic.version = 11 : i64} {
  func.func @encoder_layer_kernel(%arg0: i32, %arg1: i32, %arg2: memref<1x8x32xbf16, #tpu.memory_space<vmem>>, %arg3: memref<1x8x8xi8, #tpu.memory_space<vmem>>, %arg4: memref<32x32xbf16, #tpu.memory_space<vmem>>, %arg5: memref<1x32xf32, #tpu.memory_space<vmem>>, %arg6: memref<32x64xbf16, #tpu.memory_space<vmem>>, %arg7: memref<1x64xf32, #tpu.memory_space<vmem>>, %arg8: memref<32x32xbf16, #tpu.memory_space<vmem>>, %arg9: memref<1x32xf32, #tpu.memory_space<vmem>>, %arg10: memref<1x32xf32, #tpu.memory_space<vmem>>, %arg11: memref<1x32xf32, #tpu.memory_space<vmem>>, %arg12: memref<32x64xbf16, #tpu.memory_space<vmem>>, %arg13: memref<1x64xf32, #tpu.memory_space<vmem>>, %arg14: memref<64x32xbf16, #tpu.memory_space<vmem>>, %arg15: memref<1x32xf32, #tpu.memory_space<vmem>>, %arg16: memref<1x32xf32, #tpu.memory_space<vmem>>, %arg17: memref<1x32xf32, #tpu.memory_space<vmem>>, %arg18: memref<1x8x32xbf16, #tpu.memory_space<vmem>>, %arg19: memref<2x8x32xbf16, #tpu.memory_space<vmem>>) attributes {dimension_semantics = [#tpu.dimension_semantics<parallel>, #tpu.dimension_semantics<arbitrary>], iteration_bounds = array<i64: 2, 1>, scalar_prefetch = 0 : i64, scratch_operands = 1 : i64, tpu.core_type = #tpu.core_type<tc>, window_params = [{transform_indices = @transform_0, window_bounds = array<i64: 1, 8, 32>}, {transform_indices = @transform_1, window_bounds = array<i64: 1, 8, 8>}, {pipeline_mode = #tpu.pipeline_mode<synchronous>, transform_indices = @transform_2, window_bounds = array<i64: 32, 32>}, {pipeline_mode = #tpu.pipeline_mode<synchronous>, transform_indices = @transform_3, window_bounds = array<i64: 1, 32>}, {pipeline_mode = #tpu.pipeline_mode<synchronous>, transform_indices = @transform_4, window_bounds = array<i64: 32, 64>}, {pipeline_mode = #tpu.pipeline_mode<synchronous>, transform_indices = @transform_5, window_bounds = array<i64: 1, 64>}, {pipeline_mode = #tpu.pipeline_mode<synchronous>, transform_indices = @transform_6, window_bounds = array<i64: 32, 32>}, {pipeline_mode = #tpu.pipeline_mode<synchronous>, transform_indices = @transform_7, window_bounds = array<i64: 1, 32>}, {pipeline_mode = #tpu.pipeline_mode<synchronous>, transform_indices = @transform_8, window_bounds = array<i64: 1, 32>}, {pipeline_mode = #tpu.pipeline_mode<synchronous>, transform_indices = @transform_9, window_bounds = array<i64: 1, 32>}, {pipeline_mode = #tpu.pipeline_mode<synchronous>, transform_indices = @transform_10, window_bounds = array<i64: 32, 64>}, {pipeline_mode = #tpu.pipeline_mode<synchronous>, transform_indices = @transform_11, window_bounds = array<i64: 1, 64>}, {pipeline_mode = #tpu.pipeline_mode<synchronous>, transform_indices = @transform_12, window_bounds = array<i64: 64, 32>}, {pipeline_mode = #tpu.pipeline_mode<synchronous>, transform_indices = @transform_13, window_bounds = array<i64: 1, 32>}, {pipeline_mode = #tpu.pipeline_mode<synchronous>, transform_indices = @transform_14, window_bounds = array<i64: 1, 32>}, {pipeline_mode = #tpu.pipeline_mode<synchronous>, transform_indices = @transform_15, window_bounds = array<i64: 1, 32>}, {transform_indices = @transform_16, window_bounds = array<i64: 1, 8, 32>}]} {
    %c0_i32 = arith.constant 0 : i32
    %0 = arith.cmpi eq, %arg1, %c0_i32 : i32
    %1 = arith.extui %0 : i1 to i32
    %c0_i32_0 = arith.constant 0 : i32
    %2 = arith.cmpi ne, %1, %c0_i32_0 : i32
    scf.if %2 {
      %c0_73 = arith.constant 0 : index
      %c0_74 = arith.constant 0 : index
      %c0_75 = arith.constant 0 : index
      %176 = vector.load %arg2[%c0_73, %c0_74, %c0_75] : memref<1x8x32xbf16, #tpu.memory_space<vmem>>, vector<1x8x32xbf16>
      %177 = vector.shape_cast %176 : vector<1x8x32xbf16> to vector<8x32xbf16>
      %c0_76 = arith.constant 0 : index
      %c0_77 = arith.constant 0 : index
      %178 = vector.load %arg6[%c0_76, %c0_77] : memref<32x64xbf16, #tpu.memory_space<vmem>>, vector<32x64xbf16>
      %cst_78 = arith.constant dense<0.000000e+00> : vector<8x64xf32>
      %179 = tpu.matmul %177, %178, %cst_78 {dimension_numbers = #tpu.dot_dimension_numbers<[1], [0], [0], [1], [0, 0, 1, 1], [], []>} : vector<8x32xbf16>, vector<32x64xbf16>, vector<8x64xf32> -> vector<8x64xf32>
      %c0_79 = arith.constant 0 : index
      %c0_80 = arith.constant 0 : index
      %180 = vector.load %arg7[%c0_79, %c0_80] : memref<1x64xf32, #tpu.memory_space<vmem>>, vector<1x64xf32>
      %181 = vector.broadcast %180 : vector<1x64xf32> to vector<8x64xf32>
      %182 = arith.addf %179, %181 : vector<8x64xf32>
      %183 = vector.extract_strided_slice %182 {offsets = [0, 0], sizes = [8, 32], strides = [1, 1]} : vector<8x64xf32> to vector<8x32xf32>
      %184 = arith.truncf %183 : vector<8x32xf32> to vector<8x32xbf16>
      %c0_81 = arith.constant 0 : index
      %c0_82 = arith.constant 0 : index
      %c0_83 = arith.constant 0 : index
      %185 = vector.load %arg19[%c0_81, %c0_82, %c0_83] : memref<2x8x32xbf16, #tpu.memory_space<vmem>>, vector<1x8x32xbf16>
      %186 = vector.shape_cast %185 : vector<1x8x32xbf16> to vector<8x32xbf16>
      %187 = vector.shape_cast %184 : vector<8x32xbf16> to vector<1x8x32xbf16>
      tpu.vector_store %arg19[%c0_81, %c0_82, %c0_83], %187 {strides = array<i32>} : memref<2x8x32xbf16, #tpu.memory_space<vmem>>, vector<1x8x32xbf16>,
      %188 = vector.extract_strided_slice %182 {offsets = [0, 32], sizes = [8, 32], strides = [1, 1]} : vector<8x64xf32> to vector<8x32xf32>
      %189 = arith.truncf %188 : vector<8x32xf32> to vector<8x32xbf16>
      %c1_84 = arith.constant 1 : index
      %c0_85 = arith.constant 0 : index
      %c0_86 = arith.constant 0 : index
      %190 = vector.load %arg19[%c1_84, %c0_85, %c0_86] : memref<2x8x32xbf16, #tpu.memory_space<vmem>>, vector<1x8x32xbf16>
      %191 = vector.shape_cast %190 : vector<1x8x32xbf16> to vector<8x32xbf16>
      %192 = vector.shape_cast %189 : vector<8x32xbf16> to vector<1x8x32xbf16>
      tpu.vector_store %arg19[%c1_84, %c0_85, %c0_86], %192 {strides = array<i32>} : memref<2x8x32xbf16, #tpu.memory_space<vmem>>, vector<1x8x32xbf16>,
    } else {
    }
    %c8_i32 = arith.constant 8 : i32
    %3 = arith.muli %arg1, %c8_i32 : i32
    %4 = tpu.assume_multiple %3, 8 : i32
    %c0 = arith.constant 0 : index
    %5 = arith.index_cast %4 : i32 to index
    %c0_1 = arith.constant 0 : index
    %6 = vector.load %arg2[%c0, %5, %c0_1] : memref<1x8x32xbf16, #tpu.memory_space<vmem>>, vector<1x8x32xbf16>
    %7 = vector.shape_cast %6 : vector<1x8x32xbf16> to vector<8x32xbf16>
    %8 = arith.extf %7 : vector<8x32xbf16> to vector<8x32xf32>
    %c0_2 = arith.constant 0 : index
    %c0_3 = arith.constant 0 : index
    %c0_4 = arith.constant 0 : index
    %9 = vector.load %arg3[%c0_2, %c0_3, %c0_4] : memref<1x8x8xi8, #tpu.memory_space<vmem>>, vector<1x8x8xi8>
    %10 = vector.shape_cast %9 : vector<1x8x8xi8> to vector<8x8xi8>
    %11 = arith.extsi %10 : vector<8x8xi8> to vector<8x8xi32>
    %c0_i32_5 = arith.constant 0 : i32
    %12 = vector.broadcast %c0_i32_5 : i32 to vector<8x8xi32>
    %13 = arith.cmpi eq, %11, %12 : vector<8x8xi32>
    %c0_6 = arith.constant 0 : index
    %c0_7 = arith.constant 0 : index
    %14 = vector.load %arg4[%c0_6, %c0_7] : memref<32x32xbf16, #tpu.memory_space<vmem>>, vector<32x32xbf16>
    %cst = arith.constant dense<0.000000e+00> : vector<8x32xf32>
    %15 = tpu.matmul %7, %14, %cst {dimension_numbers = #tpu.dot_dimension_numbers<[1], [0], [0], [1], [0, 0, 1, 1], [], []>} : vector<8x32xbf16>, vector<32x32xbf16>, vector<8x32xf32> -> vector<8x32xf32>
    %c0_8 = arith.constant 0 : index
    %c0_9 = arith.constant 0 : index
    %16 = vector.load %arg5[%c0_8, %c0_9] : memref<1x32xf32, #tpu.memory_space<vmem>>, vector<1x32xf32>
    %17 = vector.broadcast %16 : vector<1x32xf32> to vector<8x32xf32>
    %18 = arith.addf %15, %17 : vector<8x32xf32>
    %cst_10 = arith.constant 0.353553385 : f32
    %19 = vector.broadcast %cst_10 : f32 to vector<8x32xf32>
    %20 = arith.mulf %18, %19 : vector<8x32xf32>
    %c0_11 = arith.constant 0 : index
    %c0_12 = arith.constant 0 : index
    %c0_13 = arith.constant 0 : index
    %21 = vector.load %arg19[%c0_11, %c0_12, %c0_13] : memref<2x8x32xbf16, #tpu.memory_space<vmem>>, vector<1x8x32xbf16>
    %22 = vector.shape_cast %21 : vector<1x8x32xbf16> to vector<8x32xbf16>
    %c1 = arith.constant 1 : index
    %c0_14 = arith.constant 0 : index
    %c0_15 = arith.constant 0 : index
    %23 = vector.load %arg19[%c1, %c0_14, %c0_15] : memref<2x8x32xbf16, #tpu.memory_space<vmem>>, vector<1x8x32xbf16>
    %24 = vector.shape_cast %23 : vector<1x8x32xbf16> to vector<8x32xbf16>
    %25 = vector.extract_strided_slice %20 {offsets = [0, 0], sizes = [8, 8], strides = [1, 1]} : vector<8x32xf32> to vector<8x8xf32>
    %26 = arith.truncf %25 : vector<8x8xf32> to vector<8x8xbf16>
    %27 = vector.extract_strided_slice %22 {offsets = [0, 0], sizes = [8, 8], strides = [1, 1]} : vector<8x32xbf16> to vector<8x8xbf16>
    %cst_16 = arith.constant dense<0.000000e+00> : vector<8x8xf32>
    %28 = tpu.matmul %26, %27, %cst_16 {dimension_numbers = #tpu.dot_dimension_numbers<[1], [1], [0], [0], [0, 0, 1, 0], [], []>} : vector<8x8xbf16>, vector<8x8xbf16>, vector<8x8xf32> -> vector<8x8xf32>
    %cst_17 = arith.constant -1.000000e+04 : f32
    %29 = vector.broadcast %cst_17 : f32 to vector<8x8xf32>
    %30 = arith.select %13, %29, %28 : vector<8x8xi1>, vector<8x8xf32>
    %cst_18 = arith.constant dense<0xFF800000> : vector<8xf32>
    %31 = vector.multi_reduction <maximumf>, %30, %cst_18 [1] : vector<8x8xf32> to vector<8xf32>
    %32 = vector.shape_cast %31 : vector<8xf32> to vector<8x1xf32>
    %33 = vector.broadcast %32 : vector<8x1xf32> to vector<8x8xf32>
    %34 = arith.subf %30, %33 : vector<8x8xf32>
    %35 = math.exp %34 : vector<8x8xf32>
    %cst_19 = arith.constant dense<0.000000e+00> : vector<8xf32>
    %36 = vector.multi_reduction <add>, %35, %cst_19 [1] : vector<8x8xf32> to vector<8xf32>
    %37 = vector.shape_cast %36 : vector<8xf32> to vector<8x1xf32>
    %38 = tpu.reciprocal %37 {approx = true} : vector<8x1xf32> -> vector<8x1xf32>
    %39 = vector.broadcast %38 : vector<8x1xf32> to vector<8x8xf32>
    %40 = arith.mulf %35, %39 : vector<8x8xf32>
    %41 = arith.truncf %40 : vector<8x8xf32> to vector<8x8xbf16>
    %42 = vector.extract_strided_slice %24 {offsets = [0, 0], sizes = [8, 8], strides = [1, 1]} : vector<8x32xbf16> to vector<8x8xbf16>
    %cst_20 = arith.constant dense<0.000000e+00> : vector<8x8xf32>
    %43 = tpu.matmul %41, %42, %cst_20 {dimension_numbers = #tpu.dot_dimension_numbers<[1], [0], [0], [1], [0, 0, 1, 1], [], []>} : vector<8x8xbf16>, vector<8x8xbf16>, vector<8x8xf32> -> vector<8x8xf32>
    %44 = vector.extract_strided_slice %20 {offsets = [0, 8], sizes = [8, 8], strides = [1, 1]} : vector<8x32xf32> to vector<8x8xf32>
    %45 = arith.truncf %44 : vector<8x8xf32> to vector<8x8xbf16>
    %46 = vector.extract_strided_slice %22 {offsets = [0, 8], sizes = [8, 8], strides = [1, 1]} : vector<8x32xbf16> to vector<8x8xbf16>
    %cst_21 = arith.constant dense<0.000000e+00> : vector<8x8xf32>
    %47 = tpu.matmul %45, %46, %cst_21 {dimension_numbers = #tpu.dot_dimension_numbers<[1], [1], [0], [0], [0, 0, 1, 0], [], []>} : vector<8x8xbf16>, vector<8x8xbf16>, vector<8x8xf32> -> vector<8x8xf32>
    %cst_22 = arith.constant -1.000000e+04 : f32
    %48 = vector.broadcast %cst_22 : f32 to vector<8x8xf32>
    %49 = arith.select %13, %48, %47 : vector<8x8xi1>, vector<8x8xf32>
    %cst_23 = arith.constant dense<0xFF800000> : vector<8xf32>
    %50 = vector.multi_reduction <maximumf>, %49, %cst_23 [1] : vector<8x8xf32> to vector<8xf32>
    %51 = vector.shape_cast %50 : vector<8xf32> to vector<8x1xf32>
    %52 = vector.broadcast %51 : vector<8x1xf32> to vector<8x8xf32>
    %53 = arith.subf %49, %52 : vector<8x8xf32>
    %54 = math.exp %53 : vector<8x8xf32>
    %cst_24 = arith.constant dense<0.000000e+00> : vector<8xf32>
    %55 = vector.multi_reduction <add>, %54, %cst_24 [1] : vector<8x8xf32> to vector<8xf32>
    %56 = vector.shape_cast %55 : vector<8xf32> to vector<8x1xf32>
    %57 = tpu.reciprocal %56 {approx = true} : vector<8x1xf32> -> vector<8x1xf32>
    %58 = vector.broadcast %57 : vector<8x1xf32> to vector<8x8xf32>
    %59 = arith.mulf %54, %58 : vector<8x8xf32>
    %60 = arith.truncf %59 : vector<8x8xf32> to vector<8x8xbf16>
    %61 = vector.extract_strided_slice %24 {offsets = [0, 8], sizes = [8, 8], strides = [1, 1]} : vector<8x32xbf16> to vector<8x8xbf16>
    %cst_25 = arith.constant dense<0.000000e+00> : vector<8x8xf32>
    %62 = tpu.matmul %60, %61, %cst_25 {dimension_numbers = #tpu.dot_dimension_numbers<[1], [0], [0], [1], [0, 0, 1, 1], [], []>} : vector<8x8xbf16>, vector<8x8xbf16>, vector<8x8xf32> -> vector<8x8xf32>
    %63 = vector.extract_strided_slice %20 {offsets = [0, 16], sizes = [8, 8], strides = [1, 1]} : vector<8x32xf32> to vector<8x8xf32>
    %64 = arith.truncf %63 : vector<8x8xf32> to vector<8x8xbf16>
    %65 = vector.extract_strided_slice %22 {offsets = [0, 16], sizes = [8, 8], strides = [1, 1]} : vector<8x32xbf16> to vector<8x8xbf16>
    %cst_26 = arith.constant dense<0.000000e+00> : vector<8x8xf32>
    %66 = tpu.matmul %64, %65, %cst_26 {dimension_numbers = #tpu.dot_dimension_numbers<[1], [1], [0], [0], [0, 0, 1, 0], [], []>} : vector<8x8xbf16>, vector<8x8xbf16>, vector<8x8xf32> -> vector<8x8xf32>
    %cst_27 = arith.constant -1.000000e+04 : f32
    %67 = vector.broadcast %cst_27 : f32 to vector<8x8xf32>
    %68 = arith.select %13, %67, %66 : vector<8x8xi1>, vector<8x8xf32>
    %cst_28 = arith.constant dense<0xFF800000> : vector<8xf32>
    %69 = vector.multi_reduction <maximumf>, %68, %cst_28 [1] : vector<8x8xf32> to vector<8xf32>
    %70 = vector.shape_cast %69 : vector<8xf32> to vector<8x1xf32>
    %71 = vector.broadcast %70 : vector<8x1xf32> to vector<8x8xf32>
    %72 = arith.subf %68, %71 : vector<8x8xf32>
    %73 = math.exp %72 : vector<8x8xf32>
    %cst_29 = arith.constant dense<0.000000e+00> : vector<8xf32>
    %74 = vector.multi_reduction <add>, %73, %cst_29 [1] : vector<8x8xf32> to vector<8xf32>
    %75 = vector.shape_cast %74 : vector<8xf32> to vector<8x1xf32>
    %76 = tpu.reciprocal %75 {approx = true} : vector<8x1xf32> -> vector<8x1xf32>
    %77 = vector.broadcast %76 : vector<8x1xf32> to vector<8x8xf32>
    %78 = arith.mulf %73, %77 : vector<8x8xf32>
    %79 = arith.truncf %78 : vector<8x8xf32> to vector<8x8xbf16>
    %80 = vector.extract_strided_slice %24 {offsets = [0, 16], sizes = [8, 8], strides = [1, 1]} : vector<8x32xbf16> to vector<8x8xbf16>
    %cst_30 = arith.constant dense<0.000000e+00> : vector<8x8xf32>
    %81 = tpu.matmul %79, %80, %cst_30 {dimension_numbers = #tpu.dot_dimension_numbers<[1], [0], [0], [1], [0, 0, 1, 1], [], []>} : vector<8x8xbf16>, vector<8x8xbf16>, vector<8x8xf32> -> vector<8x8xf32>
    %82 = vector.extract_strided_slice %20 {offsets = [0, 24], sizes = [8, 8], strides = [1, 1]} : vector<8x32xf32> to vector<8x8xf32>
    %83 = arith.truncf %82 : vector<8x8xf32> to vector<8x8xbf16>
    %84 = vector.extract_strided_slice %22 {offsets = [0, 24], sizes = [8, 8], strides = [1, 1]} : vector<8x32xbf16> to vector<8x8xbf16>
    %cst_31 = arith.constant dense<0.000000e+00> : vector<8x8xf32>
    %85 = tpu.matmul %83, %84, %cst_31 {dimension_numbers = #tpu.dot_dimension_numbers<[1], [1], [0], [0], [0, 0, 1, 0], [], []>} : vector<8x8xbf16>, vector<8x8xbf16>, vector<8x8xf32> -> vector<8x8xf32>
    %cst_32 = arith.constant -1.000000e+04 : f32
    %86 = vector.broadcast %cst_32 : f32 to vector<8x8xf32>
    %87 = arith.select %13, %86, %85 : vector<8x8xi1>, vector<8x8xf32>
    %cst_33 = arith.constant dense<0xFF800000> : vector<8xf32>
    %88 = vector.multi_reduction <maximumf>, %87, %cst_33 [1] : vector<8x8xf32> to vector<8xf32>
    %89 = vector.shape_cast %88 : vector<8xf32> to vector<8x1xf32>
    %90 = vector.broadcast %89 : vector<8x1xf32> to vector<8x8xf32>
    %91 = arith.subf %87, %90 : vector<8x8xf32>
    %92 = math.exp %91 : vector<8x8xf32>
    %cst_34 = arith.constant dense<0.000000e+00> : vector<8xf32>
    %93 = vector.multi_reduction <add>, %92, %cst_34 [1] : vector<8x8xf32> to vector<8xf32>
    %94 = vector.shape_cast %93 : vector<8xf32> to vector<8x1xf32>
    %95 = tpu.reciprocal %94 {approx = true} : vector<8x1xf32> -> vector<8x1xf32>
    %96 = vector.broadcast %95 : vector<8x1xf32> to vector<8x8xf32>
    %97 = arith.mulf %92, %96 : vector<8x8xf32>
    %98 = arith.truncf %97 : vector<8x8xf32> to vector<8x8xbf16>
    %99 = vector.extract_strided_slice %24 {offsets = [0, 24], sizes = [8, 8], strides = [1, 1]} : vector<8x32xbf16> to vector<8x8xbf16>
    %cst_35 = arith.constant dense<0.000000e+00> : vector<8x8xf32>
    %100 = tpu.matmul %98, %99, %cst_35 {dimension_numbers = #tpu.dot_dimension_numbers<[1], [0], [0], [1], [0, 0, 1, 1], [], []>} : vector<8x8xbf16>, vector<8x8xbf16>, vector<8x8xf32> -> vector<8x8xf32>
    %101 = tpu.concatenate %43, %62, %81, %100 in 1 : vector<8x8xf32>, vector<8x8xf32>, vector<8x8xf32>, vector<8x8xf32> -> vector<8x32xf32>
    %102 = arith.truncf %101 : vector<8x32xf32> to vector<8x32xbf16>
    %c0_36 = arith.constant 0 : index
    %c0_37 = arith.constant 0 : index
    %103 = vector.load %arg8[%c0_36, %c0_37] : memref<32x32xbf16, #tpu.memory_space<vmem>>, vector<32x32xbf16>
    %cst_38 = arith.constant dense<0.000000e+00> : vector<8x32xf32>
    %104 = tpu.matmul %102, %103, %cst_38 {dimension_numbers = #tpu.dot_dimension_numbers<[1], [0], [0], [1], [0, 0, 1, 1], [], []>} : vector<8x32xbf16>, vector<32x32xbf16>, vector<8x32xf32> -> vector<8x32xf32>
    %c0_39 = arith.constant 0 : index
    %c0_40 = arith.constant 0 : index
    %105 = vector.load %arg9[%c0_39, %c0_40] : memref<1x32xf32, #tpu.memory_space<vmem>>, vector<1x32xf32>
    %106 = vector.broadcast %105 : vector<1x32xf32> to vector<8x32xf32>
    %107 = arith.addf %104, %106 : vector<8x32xf32>
    %108 = arith.addf %107, %8 : vector<8x32xf32>
    %c0_41 = arith.constant 0 : index
    %c0_42 = arith.constant 0 : index
    %109 = vector.load %arg10[%c0_41, %c0_42] : memref<1x32xf32, #tpu.memory_space<vmem>>, vector<1x32xf32>
    %c0_43 = arith.constant 0 : index
    %c0_44 = arith.constant 0 : index
    %110 = vector.load %arg11[%c0_43, %c0_44] : memref<1x32xf32, #tpu.memory_space<vmem>>, vector<1x32xf32>
    %cst_45 = arith.constant dense<0.000000e+00> : vector<8xf32>
    %111 = vector.multi_reduction <add>, %108, %cst_45 [1] : vector<8x32xf32> to vector<8xf32>
    %112 = vector.shape_cast %111 : vector<8xf32> to vector<8x1xf32>
    %cst_46 = arith.constant 3.200000e+01 : f32
    %113 = vector.broadcast %cst_46 : f32 to vector<8x1xf32>
    %114 = arith.divf %112, %113 : vector<8x1xf32>
    %115 = vector.broadcast %114 : vector<8x1xf32> to vector<8x32xf32>
    %116 = arith.subf %108, %115 : vector<8x32xf32>
    %117 = arith.mulf %116, %116 : vector<8x32xf32>
    %cst_47 = arith.constant dense<0.000000e+00> : vector<8xf32>
    %118 = vector.multi_reduction <add>, %117, %cst_47 [1] : vector<8x32xf32> to vector<8xf32>
    %119 = vector.shape_cast %118 : vector<8xf32> to vector<8x1xf32>
    %cst_48 = arith.constant 3.200000e+01 : f32
    %120 = vector.broadcast %cst_48 : f32 to vector<8x1xf32>
    %121 = arith.divf %119, %120 : vector<8x1xf32>
    %cst_49 = arith.constant 9.99999996E-13 : f32
    %122 = vector.broadcast %cst_49 : f32 to vector<8x1xf32>
    %123 = arith.addf %121, %122 : vector<8x1xf32>
    %124 = math.rsqrt %123 : vector<8x1xf32>
    %125 = vector.broadcast %114 : vector<8x1xf32> to vector<8x32xf32>
    %126 = arith.subf %108, %125 : vector<8x32xf32>
    %127 = vector.broadcast %124 : vector<8x1xf32> to vector<8x32xf32>
    %128 = arith.mulf %126, %127 : vector<8x32xf32>
    %129 = vector.broadcast %109 : vector<1x32xf32> to vector<8x32xf32>
    %130 = arith.mulf %128, %129 : vector<8x32xf32>
    %131 = vector.broadcast %110 : vector<1x32xf32> to vector<8x32xf32>
    %132 = arith.addf %130, %131 : vector<8x32xf32>
    %133 = arith.truncf %132 : vector<8x32xf32> to vector<8x32xbf16>
    %c0_50 = arith.constant 0 : index
    %c0_51 = arith.constant 0 : index
    %134 = vector.load %arg12[%c0_50, %c0_51] : memref<32x64xbf16, #tpu.memory_space<vmem>>, vector<32x64xbf16>
    %cst_52 = arith.constant dense<0.000000e+00> : vector<8x64xf32>
    %135 = tpu.matmul %133, %134, %cst_52 {dimension_numbers = #tpu.dot_dimension_numbers<[1], [0], [0], [1], [0, 0, 1, 1], [], []>} : vector<8x32xbf16>, vector<32x64xbf16>, vector<8x64xf32> -> vector<8x64xf32>
    %c0_53 = arith.constant 0 : index
    %c0_54 = arith.constant 0 : index
    %136 = vector.load %arg13[%c0_53, %c0_54] : memref<1x64xf32, #tpu.memory_space<vmem>>, vector<1x64xf32>
    %137 = vector.broadcast %136 : vector<1x64xf32> to vector<8x64xf32>
    %138 = arith.addf %135, %137 : vector<8x64xf32>
    %cst_55 = arith.constant 0.000000e+00 : f32
    %139 = vector.broadcast %cst_55 : f32 to vector<8x64xf32>
    %140 = arith.maximumf %138, %139 : vector<8x64xf32>
    %141 = arith.truncf %140 : vector<8x64xf32> to vector<8x64xbf16>
    %c0_56 = arith.constant 0 : index
    %c0_57 = arith.constant 0 : index
    %142 = vector.load %arg14[%c0_56, %c0_57] : memref<64x32xbf16, #tpu.memory_space<vmem>>, vector<64x32xbf16>
    %cst_58 = arith.constant dense<0.000000e+00> : vector<8x32xf32>
    %143 = tpu.matmul %141, %142, %cst_58 {dimension_numbers = #tpu.dot_dimension_numbers<[1], [0], [0], [1], [0, 0, 1, 1], [], []>} : vector<8x64xbf16>, vector<64x32xbf16>, vector<8x32xf32> -> vector<8x32xf32>
    %c0_59 = arith.constant 0 : index
    %c0_60 = arith.constant 0 : index
    %144 = vector.load %arg15[%c0_59, %c0_60] : memref<1x32xf32, #tpu.memory_space<vmem>>, vector<1x32xf32>
    %145 = vector.broadcast %144 : vector<1x32xf32> to vector<8x32xf32>
    %146 = arith.addf %143, %145 : vector<8x32xf32>
    %147 = arith.addf %146, %132 : vector<8x32xf32>
    %c0_61 = arith.constant 0 : index
    %c0_62 = arith.constant 0 : index
    %148 = vector.load %arg16[%c0_61, %c0_62] : memref<1x32xf32, #tpu.memory_space<vmem>>, vector<1x32xf32>
    %c0_63 = arith.constant 0 : index
    %c0_64 = arith.constant 0 : index
    %149 = vector.load %arg17[%c0_63, %c0_64] : memref<1x32xf32, #tpu.memory_space<vmem>>, vector<1x32xf32>
    %cst_65 = arith.constant dense<0.000000e+00> : vector<8xf32>
    %150 = vector.multi_reduction <add>, %147, %cst_65 [1] : vector<8x32xf32> to vector<8xf32>
    %151 = vector.shape_cast %150 : vector<8xf32> to vector<8x1xf32>
    %cst_66 = arith.constant 3.200000e+01 : f32
    %152 = vector.broadcast %cst_66 : f32 to vector<8x1xf32>
    %153 = arith.divf %151, %152 : vector<8x1xf32>
    %154 = vector.broadcast %153 : vector<8x1xf32> to vector<8x32xf32>
    %155 = arith.subf %147, %154 : vector<8x32xf32>
    %156 = arith.mulf %155, %155 : vector<8x32xf32>
    %cst_67 = arith.constant dense<0.000000e+00> : vector<8xf32>
    %157 = vector.multi_reduction <add>, %156, %cst_67 [1] : vector<8x32xf32> to vector<8xf32>
    %158 = vector.shape_cast %157 : vector<8xf32> to vector<8x1xf32>
    %cst_68 = arith.constant 3.200000e+01 : f32
    %159 = vector.broadcast %cst_68 : f32 to vector<8x1xf32>
    %160 = arith.divf %158, %159 : vector<8x1xf32>
    %cst_69 = arith.constant 9.99999996E-13 : f32
    %161 = vector.broadcast %cst_69 : f32 to vector<8x1xf32>
    %162 = arith.addf %160, %161 : vector<8x1xf32>
    %163 = math.rsqrt %162 : vector<8x1xf32>
    %164 = vector.broadcast %153 : vector<8x1xf32> to vector<8x32xf32>
    %165 = arith.subf %147, %164 : vector<8x32xf32>
    %166 = vector.broadcast %163 : vector<8x1xf32> to vector<8x32xf32>
    %167 = arith.mulf %165, %166 : vector<8x32xf32>
    %168 = vector.broadcast %148 : vector<1x32xf32> to vector<8x32xf32>
    %169 = arith.mulf %167, %168 : vector<8x32xf32>
    %170 = vector.broadcast %149 : vector<1x32xf32> to vector<8x32xf32>
    %171 = arith.addf %169, %170 : vector<8x32xf32>
    %172 = arith.truncf %171 : vector<8x32xf32> to vector<8x32xbf16>
    %c0_70 = arith.constant 0 : index
    %c0_71 = arith.constant 0 : index
    %c0_72 = arith.constant 0 : index
    %173 = vector.load %arg18[%c0_70, %c0_71, %c0_72] : memref<1x8x32xbf16, #tpu.memory_space<vmem>>, vector<1x8x32xbf16>
    %174 = vector.shape_cast %173 : vector<1x8x32xbf16> to vector<8x32xbf16>
    %175 = vector.shape_cast %172 : vector<8x32xbf16> to vector<1x8x32xbf16>
    tpu.vector_store %arg18[%c0_70, %c0_71, %c0_72], %175 {strides = array<i32>} : memref<1x8x32xbf16, #tpu.memory_space<vmem>>, vector<1x8x32xbf16>,
    return
  }
  func.func @transform_0(%arg0: i32, %arg1: i32) -> (i32, i32, i32) {
    %c0_i32 = arith.constant 0 : i32
    %c0_i32_0 = arith.constant 0 : i32
    %c0_i32_1 = arith.constant 0 : i32
    return %arg0, %c0_i32, %c0_i32_0 : i32, i32, i32
  }
  func.func @transform_1(%arg0: i32, %arg1: i32) -> (i32, i32, i32) {
    %c0_i32 = arith.constant 0 : i32
    %c0_i32_0 = arith.constant 0 : i32
    return %arg0, %arg1, %c0_i32 : i32, i32, i32
  }
  func.func @transform_2(%arg0: i32, %arg1: i32) -> (i32, i32) {
    %c0_i32 = arith.constant 0 : i32
    %c0_i32_0 = arith.constant 0 : i32
    %c0_i32_1 = arith.constant 0 : i32
    return %c0_i32, %c0_i32_0 : i32, i32
  }
  func.func @transform_3(%arg0: i32, %arg1: i32) -> (i32, i32) {
    %c0_i32 = arith.constant 0 : i32
    %c0_i32_0 = arith.constant 0 : i32
    %c0_i32_1 = arith.constant 0 : i32
    return %c0_i32, %c0_i32_0 : i32, i32
  }
  func.func @transform_4(%arg0: i32, %arg1: i32) -> (i32, i32) {
    %c0_i32 = arith.constant 0 : i32
    %c0_i32_0 = arith.constant 0 : i32
    %c0_i32_1 = arith.constant 0 : i32
    return %c0_i32, %c0_i32_0 : i32, i32
  }
  func.func @transform_5(%arg0: i32, %arg1: i32) -> (i32, i32) {
    %c0_i32 = arith.constant 0 : i32
    %c0_i32_0 = arith.constant 0 : i32
    %c0_i32_1 = arith.constant 0 : i32
    return %c0_i32, %c0_i32_0 : i32, i32
  }
  func.func @transform_6(%arg0: i32, %arg1: i32) -> (i32, i32) {
    %c0_i32 = arith.constant 0 : i32
    %c0_i32_0 = arith.constant 0 : i32
    %c0_i32_1 = arith.constant 0 : i32
    return %c0_i32, %c0_i32_0 : i32, i32
  }
  func.func @transform_7(%arg0: i32, %arg1: i32) -> (i32, i32) {
    %c0_i32 = arith.constant 0 : i32
    %c0_i32_0 = arith.constant 0 : i32
    %c0_i32_1 = arith.constant 0 : i32
    return %c0_i32, %c0_i32_0 : i32, i32
  }
  func.func @transform_8(%arg0: i32, %arg1: i32) -> (i32, i32) {
    %c0_i32 = arith.constant 0 : i32
    %c0_i32_0 = arith.constant 0 : i32
    %c0_i32_1 = arith.constant 0 : i32
    return %c0_i32, %c0_i32_0 : i32, i32
  }
  func.func @transform_9(%arg0: i32, %arg1: i32) -> (i32, i32) {
    %c0_i32 = arith.constant 0 : i32
    %c0_i32_0 = arith.constant 0 : i32
    %c0_i32_1 = arith.constant 0 : i32
    return %c0_i32, %c0_i32_0 : i32, i32
  }
  func.func @transform_10(%arg0: i32, %arg1: i32) -> (i32, i32) {
    %c0_i32 = arith.constant 0 : i32
    %c0_i32_0 = arith.constant 0 : i32
    %c0_i32_1 = arith.constant 0 : i32
    return %c0_i32, %c0_i32_0 : i32, i32
  }
  func.func @transform_11(%arg0: i32, %arg1: i32) -> (i32, i32) {
    %c0_i32 = arith.constant 0 : i32
    %c0_i32_0 = arith.constant 0 : i32
    %c0_i32_1 = arith.constant 0 : i32
    return %c0_i32, %c0_i32_0 : i32, i32
  }
  func.func @transform_12(%arg0: i32, %arg1: i32) -> (i32, i32) {
    %c0_i32 = arith.constant 0 : i32
    %c0_i32_0 = arith.constant 0 : i32
    %c0_i32_1 = arith.constant 0 : i32
    return %c0_i32, %c0_i32_0 : i32, i32
  }
  func.func @transform_13(%arg0: i32, %arg1: i32) -> (i32, i32) {
    %c0_i32 = arith.constant 0 : i32
    %c0_i32_0 = arith.constant 0 : i32
    %c0_i32_1 = arith.constant 0 : i32
    return %c0_i32, %c0_i32_0 : i32, i32
  }
  func.func @transform_14(%arg0: i32, %arg1: i32) -> (i32, i32) {
    %c0_i32 = arith.constant 0 : i32
    %c0_i32_0 = arith.constant 0 : i32
    %c0_i32_1 = arith.constant 0 : i32
    return %c0_i32, %c0_i32_0 : i32, i32
  }
  func.func @transform_15(%arg0: i32, %arg1: i32) -> (i32, i32) {
    %c0_i32 = arith.constant 0 : i32
    %c0_i32_0 = arith.constant 0 : i32
    %c0_i32_1 = arith.constant 0 : i32
    return %c0_i32, %c0_i32_0 : i32, i32
  }
  func.func @transform_16(%arg0: i32, %arg1: i32) -> (i32, i32, i32) {
    %c0_i32 = arith.constant 0 : i32
    %c0_i32_0 = arith.constant 0 : i32
    return %arg0, %arg1, %c0_i32 : i32, i32, i32
  }
}

module attributes {stable_mosaic.version = 11 : i64} {
  func.func @encoder_layer_kernel(%arg0: i32, %arg1: i32, %arg2: memref<1x8x32xbf16, #tpu.memory_space<vmem>>, %arg3: memref<1x8x8xi8, #tpu.memory_space<vmem>>, %arg4: memref<32x32xbf16, #tpu.memory_space<vmem>>, %arg5: memref<1x32xf32, #tpu.memory_space<vmem>>, %arg6: memref<32x64xbf16, #tpu.memory_space<vmem>>, %arg7: memref<1x64xf32, #tpu.memory_space<vmem>>, %arg8: memref<32x32xbf16, #tpu.memory_space<vmem>>, %arg9: memref<1x32xf32, #tpu.memory_space<vmem>>, %arg10: memref<1x32xf32, #tpu.memory_space<vmem>>, %arg11: memref<1x32xf32, #tpu.memory_space<vmem>>, %arg12: memref<32x64xbf16, #tpu.memory_space<vmem>>, %arg13: memref<1x64xf32, #tpu.memory_space<vmem>>, %arg14: memref<64x32xbf16, #tpu.memory_space<vmem>>, %arg15: memref<1x32xf32, #tpu.memory_space<vmem>>, %arg16: memref<1x32xf32, #tpu.memory_space<vmem>>, %arg17: memref<1x32xf32, #tpu.memory_space<vmem>>, %arg18: memref<1x8x32xbf16, #tpu.memory_space<vmem>>, %arg19: memref<2x8x32xbf16, #tpu.memory_space<vmem>>) attributes {dimension_semantics = [#tpu.dimension_semantics<parallel>, #tpu.dimension_semantics<arbitrary>], iteration_bounds = array<i64: 2, 1>, scalar_prefetch = 0 : i64, scratch_operands = 1 : i64, tpu.core_type = #tpu.core_type<tc>, window_params = [{transform_indices = @transform_0, window_bounds = array<i64: 1, 8, 32>}, {transform_indices = @transform_1, window_bounds = array<i64: 1, 8, 8>}, {pipeline_mode = #tpu.pipeline_mode<synchronous>, transform_indices = @transform_2, window_bounds = array<i64: 32, 32>}, {pipeline_mode = #tpu.pipeline_mode<synchronous>, transform_indices = @transform_3, window_bounds = array<i64: 1, 32>}, {pipeline_mode = #tpu.pipeline_mode<synchronous>, transform_indices = @transform_4, window_bounds = array<i64: 32, 64>}, {pipeline_mode = #tpu.pipeline_mode<synchronous>, transform_indices = @transform_5, window_bounds = array<i64: 1, 64>}, {pipeline_mode = #tpu.pipeline_mode<synchronous>, transform_indices = @transform_6, window_bounds = array<i64: 32, 32>}, {pipeline_mode = #tpu.pipeline_mode<synchronous>, transform_indices = @transform_7, window_bounds = array<i64: 1, 32>}, {pipeline_mode = #tpu.pipeline_mode<synchronous>, transform_indices = @transform_8, window_bounds = array<i64: 1, 32>}, {pipeline_mode = #tpu.pipeline_mode<synchronous>, transform_indices = @transform_9, window_bounds = array<i64: 1, 32>}, {pipeline_mode = #tpu.pipeline_mode<synchronous>, transform_indices = @transform_10, window_bounds = array<i64: 32, 64>}, {pipeline_mode = #tpu.pipeline_mode<synchronous>, transform_indices = @transform_11, window_bounds = array<i64: 1, 64>}, {pipeline_mode = #tpu.pipeline_mode<synchronous>, transform_indices = @transform_12, window_bounds = array<i64: 64, 32>}, {pipeline_mode = #tpu.pipeline_mode<synchronous>, transform_indices = @transform_13, window_bounds = array<i64: 1, 32>}, {pipeline_mode = #tpu.pipeline_mode<synchronous>, transform_indices = @transform_14, window_bounds = array<i64: 1, 32>}, {pipeline_mode = #tpu.pipeline_mode<synchronous>, transform_indices = @transform_15, window_bounds = array<i64: 1, 32>}, {transform_indices = @transform_16, window_bounds = array<i64: 1, 8, 32>}]} {
    %c0_i32 = arith.constant 0 : i32
    %0 = arith.cmpi eq, %arg1, %c0_i32 : i32
    %1 = arith.extui %0 : i1 to i32
    %c0_i32_0 = arith.constant 0 : i32
    %2 = arith.cmpi ne, %1, %c0_i32_0 : i32
    scf.if %2 {
      %c0_73 = arith.constant 0 : index
      %c0_74 = arith.constant 0 : index
      %c0_75 = arith.constant 0 : index
      %176 = vector.load %arg2[%c0_73, %c0_74, %c0_75] : memref<1x8x32xbf16, #tpu.memory_space<vmem>>, vector<1x8x32xbf16>
      %177 = vector.shape_cast %176 : vector<1x8x32xbf16> to vector<8x32xbf16>
      %c0_76 = arith.constant 0 : index
      %c0_77 = arith.constant 0 : index
      %178 = vector.load %arg6[%c0_76, %c0_77] : memref<32x64xbf16, #tpu.memory_space<vmem>>, vector<32x64xbf16>
      %cst_78 = arith.constant dense<0.000000e+00> : vector<8x64xf32>
      %179 = tpu.matmul %177, %178, %cst_78 {dimension_numbers = #tpu.dot_dimension_numbers<[1], [0], [0], [1], [0, 0, 1, 1], [], []>} : vector<8x32xbf16>, vector<32x64xbf16>, vector<8x64xf32> -> vector<8x64xf32>
      %c0_79 = arith.constant 0 : index
      %c0_80 = arith.constant 0 : index
      %180 = vector.load %arg7[%c0_79, %c0_80] : memref<1x64xf32, #tpu.memory_space<vmem>>, vector<1x64xf32>
      %181 = vector.broadcast %180 : vector<1x64xf32> to vector<8x64xf32>
      %182 = arith.addf %179, %181 : vector<8x64xf32>
      %183 = vector.extract_strided_slice %182 {offsets = [0, 0], sizes = [8, 32], strides = [1, 1]} : vector<8x64xf32> to vector<8x32xf32>
      %184 = arith.truncf %183 : vector<8x32xf32> to vector<8x32xbf16>
      %c0_81 = arith.constant 0 : index
      %c0_82 = arith.constant 0 : index
      %c0_83 = arith.constant 0 : index
      %185 = vector.load %arg19[%c0_81, %c0_82, %c0_83] : memref<2x8x32xbf16, #tpu.memory_space<vmem>>, vector<1x8x32xbf16>
      %186 = vector.shape_cast %185 : vector<1x8x32xbf16> to vector<8x32xbf16>
      %187 = vector.shape_cast %184 : vector<8x32xbf16> to vector<1x8x32xbf16>
      tpu.vector_store %arg19[%c0_81, %c0_82, %c0_83], %187 {strides = array<i32>} : memref<2x8x32xbf16, #tpu.memory_space<vmem>>, vector<1x8x32xbf16>,
      %188 = vector.extract_strided_slice %182 {offsets = [0, 32], sizes = [8, 32], strides = [1, 1]} : vector<8x64xf32> to vector<8x32xf32>
      %189 = arith.truncf %188 : vector<8x32xf32> to vector<8x32xbf16>
      %c1_84 = arith.constant 1 : index
      %c0_85 = arith.constant 0 : index
      %c0_86 = arith.constant 0 : index
      %190 = vector.load %arg19[%c1_84, %c0_85, %c0_86] : memref<2x8x32xbf16, #tpu.memory_space<vmem>>, vector<1x8x32xbf16>
      %191 = vector.shape_cast %190 : vector<1x8x32xbf16> to vector<8x32xbf16>
      %192 = vector.shape_cast %189 : vector<8x32xbf16> to vector<1x8x32xbf16>
      tpu.vector_store %arg19[%c1_84, %c0_85, %c0_86], %192 {strides = array<i32>} : memref<2x8x32xbf16, #tpu.memory_space<vmem>>, vector<1x8x32xbf16>,
    } else {
    }
    %c8_i32 = arith.constant 8 : i32
    %3 = arith.muli %arg1, %c8_i32 : i32
    %4 = tpu.assume_multiple %3, 8 : i32
    %c0 = arith.constant 0 : index
    %5 = arith.index_cast %4 : i32 to index
    %c0_1 = arith.constant 0 : index
    %6 = vector.load %arg2[%c0, %5, %c0_1] : memref<1x8x32xbf16, #tpu.memory_space<vmem>>, vector<1x8x32xbf16>
    %7 = vector.shape_cast %6 : vector<1x8x32xbf16> to vector<8x32xbf16>
    %8 = arith.extf %7 : vector<8x32xbf16> to vector<8x32xf32>
    %c0_2 = arith.constant 0 : index
    %c0_3 = arith.constant 0 : index
    %c0_4 = arith.constant 0 : index
    %9 = vector.load %arg3[%c0_2, %c0_3, %c0_4] : memref<1x8x8xi8, #tpu.memory_space<vmem>>, vector<1x8x8xi8>
    %10 = vector.shape_cast %9 : vector<1x8x8xi8> to vector<8x8xi8>
    %11 = arith.extsi %10 : vector<8x8xi8> to vector<8x8xi32>
    %c0_i32_5 = arith.constant 0 : i32
    %12 = vector.broadcast %c0_i32_5 : i32 to vector<8x8xi32>
    %13 = arith.cmpi eq, %11, %12 : vector<8x8xi32>
    %c0_6 = arith.constant 0 : index
    %c0_7 = arith.constant 0 : index
    %14 = vector.load %arg4[%c0_6, %c0_7] : memref<32x32xbf16, #tpu.memory_space<vmem>>, vector<32x32xbf16>
    %cst = arith.constant dense<0.000000e+00> : vector<8x32xf32>
    %15 = tpu.matmul %7, %14, %cst {dimension_numbers = #tpu.dot_dimension_numbers<[1], [0], [0], [1], [0, 0, 1, 1], [], []>} : vector<8x32xbf16>, vector<32x32xbf16>, vector<8x32xf32> -> vector<8x32xf32>
    %c0_8 = arith.constant 0 : index
    %c0_9 = arith.constant 0 : index
    %16 = vector.load %arg5[%c0_8, %c0_9] : memref<1x32xf32, #tpu.memory_space<vmem>>, vector<1x32xf32>
    %17 = vector.broadcast %16 : vector<1x32xf32> to vector<8x32xf32>
    %18 = arith.addf %15, %17 : vector<8x32xf32>
    %cst_10 = arith.constant 0.353553385 : f32
    %19 = vector.broadcast %cst_10 : f32 to vector<8x32xf32>
    %20 = arith.mulf %18, %19 : vector<8x32xf32>
    %c0_11 = arith.constant 0 : index
    %c0_12 = arith.constant 0 : index
    %c0_13 = arith.constant 0 : index
    %21 = vector.load %arg19[%c0_11, %c0_12, %c0_13] : memref<2x8x32xbf16, #tpu.memory_space<vmem>>, vector<1x8x32xbf16>
    %22 = vector.shape_cast %21 : vector<1x8x32xbf16> to vector<8x32xbf16>
    %c1 = arith.constant 1 : index
    %c0_14 = arith.constant 0 : index
    %c0_15 = arith.constant 0 : index
    %23 = vector.load %arg19[%c1, %c0_14, %c0_15] : memref<2x8x32xbf16, #tpu.memory_space<vmem>>, vector<1x8x32xbf16>
    %24 = vector.shape_cast %23 : vector<1x8x32xbf16> to vector<8x32xbf16>
    %25 = vector.extract_strided_slice %20 {offsets = [0, 0], sizes = [8, 8], strides = [1, 1]} : vector<8x32xf32> to vector<8x8xf32>
    %26 = arith.truncf %25 : vector<8x8xf32> to vector<8x8xbf16>
    %27 = vector.extract_strided_slice %22 {offsets = [0, 0], sizes = [8, 8], strides = [1, 1]} : vector<8x32xbf16> to vector<8x8xbf16>
    %cst_16 = arith.constant dense<0.000000e+00> : vector<8x8xf32>
    %28 = tpu.matmul %26, %27, %cst_16 {dimension_numbers = #tpu.dot_dimension_numbers<[1], [1], [0], [0], [0, 0, 1, 0], [], []>} : vector<8x8xbf16>, vector<8x8xbf16>, vector<8x8xf32> -> vector<8x8xf32>
    %cst_17 = arith.constant -1.000000e+04 : f32
    %29 = vector.broadcast %cst_17 : f32 to vector<8x8xf32>
    %30 = arith.select %13, %29, %28 : vector<8x8xi1>, vector<8x8xf32>
    %cst_18 = arith.constant dense<0xFF800000> : vector<8xf32>
    %31 = vector.multi_reduction <maximumf>, %30, %cst_18 [1] : vector<8x8xf32> to vector<8xf32>
    %32 = vector.shape_cast %31 : vector<8xf32> to vector<8x1xf32>
    %33 = vector.broadcast %32 : vector<8x1xf32> to vector<8x8xf32>
    %34 = arith.subf %30, %33 : vector<8x8xf32>
    %35 = math.exp %34 : vector<8x8xf32>
    %cst_19 = arith.constant dense<0.000000e+00> : vector<8xf32>
    %36 = vector.multi_reduction <add>, %35, %cst_19 [1] : vector<8x8xf32> to vector<8xf32>
    %37 = vector.shape_cast %36 : vector<8xf32> to vector<8x1xf32>
    %38 = tpu.reciprocal %37 {approx = true} : vector<8x1xf32> -> vector<8x1xf32>
    %39 = vector.broadcast %38 : vector<8x1xf32> to vector<8x8xf32>
    %40 = arith.mulf %35, %39 : vector<8x8xf32>
    %41 = arith.truncf %40 : vector<8x8xf32> to vector<8x8xbf16>
    %42 = vector.extract_strided_slice %24 {offsets = [0, 0], sizes = [8, 8], strides = [1, 1]} : vector<8x32xbf16> to vector<8x8xbf16>
    %cst_20 = arith.constant dense<0.000000e+00> : vector<8x8xf32>
    %43 = tpu.matmul %41, %42, %cst_20 {dimension_numbers = #tpu.dot_dimension_numbers<[1], [0], [0], [1], [0, 0, 1, 1], [], []>} : vector<8x8xbf16>, vector<8x8xbf16>, vector<8x8xf32> -> vector<8x8xf32>
    %44 = vector.extract_strided_slice %20 {offsets = [0, 8], sizes = [8, 8], strides = [1, 1]} : vector<8x32xf32> to vector<8x8xf32>
    %45 = arith.truncf %44 : vector<8x8xf32> to vector<8x8xbf16>
    %46 = vector.extract_strided_slice %22 {offsets = [0, 8], sizes = [8, 8], strides = [1, 1]} : vector<8x32xbf16> to vector<8x8xbf16>
    %cst_21 = arith.constant dense<0.000000e+00> : vector<8x8xf32>
    %47 = tpu.matmul %45, %46, %cst_21 {dimension_numbers = #tpu.dot_dimension_numbers<[1], [1], [0], [0], [0, 0, 1, 0], [], []>} : vector<8x8xbf16>, vector<8x8xbf16>, vector<8x8xf32> -> vector<8x8xf32>
    %cst_22 = arith.constant -1.000000e+04 : f32
    %48 = vector.broadcast %cst_22 : f32 to vector<8x8xf32>
    %49 = arith.select %13, %48, %47 : vector<8x8xi1>, vector<8x8xf32>
    %cst_23 = arith.constant dense<0xFF800000> : vector<8xf32>
    %50 = vector.multi_reduction <maximumf>, %49, %cst_23 [1] : vector<8x8xf32> to vector<8xf32>
    %51 = vector.shape_cast %50 : vector<8xf32> to vector<8x1xf32>
    %52 = vector.broadcast %51 : vector<8x1xf32> to vector<8x8xf32>
    %53 = arith.subf %49, %52 : vector<8x8xf32>
    %54 = math.exp %53 : vector<8x8xf32>
    %cst_24 = arith.constant dense<0.000000e+00> : vector<8xf32>
    %55 = vector.multi_reduction <add>, %54, %cst_24 [1] : vector<8x8xf32> to vector<8xf32>
    %56 = vector.shape_cast %55 : vector<8xf32> to vector<8x1xf32>
    %57 = tpu.reciprocal %56 {approx = true} : vector<8x1xf32> -> vector<8x1xf32>
    %58 = vector.broadcast %57 : vector<8x1xf32> to vector<8x8xf32>
    %59 = arith.mulf %54, %58 : vector<8x8xf32>
    %60 = arith.truncf %59 : vector<8x8xf32> to vector<8x8xbf16>
    %61 = vector.extract_strided_slice %24 {offsets = [0, 8], sizes = [8, 8], strides = [1, 1]} : vector<8x32xbf16> to vector<8x8xbf16>
    %cst_25 = arith.constant dense<0.000000e+00> : vector<8x8xf32>
    %62 = tpu.matmul %60, %61, %cst_25 {dimension_numbers = #tpu.dot_dimension_numbers<[1], [0], [0], [1], [0, 0, 1, 1], [], []>} : vector<8x8xbf16>, vector<8x8xbf16>, vector<8x8xf32> -> vector<8x8xf32>
    %63 = vector.extract_strided_slice %20 {offsets = [0, 16], sizes = [8, 8], strides = [1, 1]} : vector<8x32xf32> to vector<8x8xf32>
    %64 = arith.truncf %63 : vector<8x8xf32> to vector<8x8xbf16>
    %65 = vector.extract_strided_slice %22 {offsets = [0, 16], sizes = [8, 8], strides = [1, 1]} : vector<8x32xbf16> to vector<8x8xbf16>
    %cst_26 = arith.constant dense<0.000000e+00> : vector<8x8xf32>
    %66 = tpu.matmul %64, %65, %cst_26 {dimension_numbers = #tpu.dot_dimension_numbers<[1], [1], [0], [0], [0, 0, 1, 0], [], []>} : vector<8x8xbf16>, vector<8x8xbf16>, vector<8x8xf32> -> vector<8x8xf32>
    %cst_27 = arith.constant -1.000000e+04 : f32
    %67 = vector.broadcast %cst_27 : f32 to vector<8x8xf32>
    %68 = arith.select %13, %67, %66 : vector<8x8xi1>, vector<8x8xf32>
    %cst_28 = arith.constant dense<0xFF800000> : vector<8xf32>
    %69 = vector.multi_reduction <maximumf>, %68, %cst_28 [1] : vector<8x8xf32> to vector<8xf32>
    %70 = vector.shape_cast %69 : vector<8xf32> to vector<8x1xf32>
    %71 = vector.broadcast %70 : vector<8x1xf32> to vector<8x8xf32>
    %72 = arith.subf %68, %71 : vector<8x8xf32>
    %73 = math.exp %72 : vector<8x8xf32>
    %cst_29 = arith.constant dense<0.000000e+00> : vector<8xf32>
    %74 = vector.multi_reduction <add>, %73, %cst_29 [1] : vector<8x8xf32> to vector<8xf32>
    %75 = vector.shape_cast %74 : vector<8xf32> to vector<8x1xf32>
    %76 = tpu.reciprocal %75 {approx = true} : vector<8x1xf32> -> vector<8x1xf32>
    %77 = vector.broadcast %76 : vector<8x1xf32> to vector<8x8xf32>
    %78 = arith.mulf %73, %77 : vector<8x8xf32>
    %79 = arith.truncf %78 : vector<8x8xf32> to vector<8x8xbf16>
    %80 = vector.extract_strided_slice %24 {offsets = [0, 16], sizes = [8, 8], strides = [1, 1]} : vector<8x32xbf16> to vector<8x8xbf16>
    %cst_30 = arith.constant dense<0.000000e+00> : vector<8x8xf32>
    %81 = tpu.matmul %79, %80, %cst_30 {dimension_numbers = #tpu.dot_dimension_numbers<[1], [0], [0], [1], [0, 0, 1, 1], [], []>} : vector<8x8xbf16>, vector<8x8xbf16>, vector<8x8xf32> -> vector<8x8xf32>
    %82 = vector.extract_strided_slice %20 {offsets = [0, 24], sizes = [8, 8], strides = [1, 1]} : vector<8x32xf32> to vector<8x8xf32>
    %83 = arith.truncf %82 : vector<8x8xf32> to vector<8x8xbf16>
    %84 = vector.extract_strided_slice %22 {offsets = [0, 24], sizes = [8, 8], strides = [1, 1]} : vector<8x32xbf16> to vector<8x8xbf16>
    %cst_31 = arith.constant dense<0.000000e+00> : vector<8x8xf32>
    %85 = tpu.matmul %83, %84, %cst_31 {dimension_numbers = #tpu.dot_dimension_numbers<[1], [1], [0], [0], [0, 0, 1, 0], [], []>} : vector<8x8xbf16>, vector<8x8xbf16>, vector<8x8xf32> -> vector<8x8xf32>
    %cst_32 = arith.constant -1.000000e+04 : f32
    %86 = vector.broadcast %cst_32 : f32 to vector<8x8xf32>
    %87 = arith.select %13, %86, %85 : vector<8x8xi1>, vector<8x8xf32>
    %cst_33 = arith.constant dense<0xFF800000> : vector<8xf32>
    %88 = vector.multi_reduction <maximumf>, %87, %cst_33 [1] : vector<8x8xf32> to vector<8xf32>
    %89 = vector.shape_cast %88 : vector<8xf32> to vector<8x1xf32>
    %90 = vector.broadcast %89 : vector<8x1xf32> to vector<8x8xf32>
    %91 = arith.subf %87, %90 : vector<8x8xf32>
    %92 = math.exp %91 : vector<8x8xf32>
    %cst_34 = arith.constant dense<0.000000e+00> : vector<8xf32>
    %93 = vector.multi_reduction <add>, %92, %cst_34 [1] : vector<8x8xf32> to vector<8xf32>
    %94 = vector.shape_cast %93 : vector<8xf32> to vector<8x1xf32>
    %95 = tpu.reciprocal %94 {approx = true} : vector<8x1xf32> -> vector<8x1xf32>
    %96 = vector.broadcast %95 : vector<8x1xf32> to vector<8x8xf32>
    %97 = arith.mulf %92, %96 : vector<8x8xf32>
    %98 = arith.truncf %97 : vector<8x8xf32> to vector<8x8xbf16>
    %99 = vector.extract_strided_slice %24 {offsets = [0, 24], sizes = [8, 8], strides = [1, 1]} : vector<8x32xbf16> to vector<8x8xbf16>
    %cst_35 = arith.constant dense<0.000000e+00> : vector<8x8xf32>
    %100 = tpu.matmul %98, %99, %cst_35 {dimension_numbers = #tpu.dot_dimension_numbers<[1], [0], [0], [1], [0, 0, 1, 1], [], []>} : vector<8x8xbf16>, vector<8x8xbf16>, vector<8x8xf32> -> vector<8x8xf32>
    %101 = tpu.concatenate %43, %62, %81, %100 in 1 : vector<8x8xf32>, vector<8x8xf32>, vector<8x8xf32>, vector<8x8xf32> -> vector<8x32xf32>
    %102 = arith.truncf %101 : vector<8x32xf32> to vector<8x32xbf16>
    %c0_36 = arith.constant 0 : index
    %c0_37 = arith.constant 0 : index
    %103 = vector.load %arg8[%c0_36, %c0_37] : memref<32x32xbf16, #tpu.memory_space<vmem>>, vector<32x32xbf16>
    %cst_38 = arith.constant dense<0.000000e+00> : vector<8x32xf32>
    %104 = tpu.matmul %102, %103, %cst_38 {dimension_numbers = #tpu.dot_dimension_numbers<[1], [0], [0], [1], [0, 0, 1, 1], [], []>} : vector<8x32xbf16>, vector<32x32xbf16>, vector<8x32xf32> -> vector<8x32xf32>
    %c0_39 = arith.constant 0 : index
    %c0_40 = arith.constant 0 : index
    %105 = vector.load %arg9[%c0_39, %c0_40] : memref<1x32xf32, #tpu.memory_space<vmem>>, vector<1x32xf32>
    %106 = vector.broadcast %105 : vector<1x32xf32> to vector<8x32xf32>
    %107 = arith.addf %104, %106 : vector<8x32xf32>
    %108 = arith.addf %107, %8 : vector<8x32xf32>
    %c0_41 = arith.constant 0 : index
    %c0_42 = arith.constant 0 : index
    %109 = vector.load %arg10[%c0_41, %c0_42] : memref<1x32xf32, #tpu.memory_space<vmem>>, vector<1x32xf32>
    %c0_43 = arith.constant 0 : index
    %c0_44 = arith.constant 0 : index
    %110 = vector.load %arg11[%c0_43, %c0_44] : memref<1x32xf32, #tpu.memory_space<vmem>>, vector<1x32xf32>
    %cst_45 = arith.constant dense<0.000000e+00> : vector<8xf32>
    %111 = vector.multi_reduction <add>, %108, %cst_45 [1] : vector<8x32xf32> to vector<8xf32>
    %112 = vector.shape_cast %111 : vector<8xf32> to vector<8x1xf32>
    %cst_46 = arith.constant 3.200000e+01 : f32
    %113 = vector.broadcast %cst_46 : f32 to vector<8x1xf32>
    %114 = arith.divf %112, %113 : vector<8x1xf32>
    %115 = vector.broadcast %114 : vector<8x1xf32> to vector<8x32xf32>
    %116 = arith.subf %108, %115 : vector<8x32xf32>
    %117 = arith.mulf %116, %116 : vector<8x32xf32>
    %cst_47 = arith.constant dense<0.000000e+00> : vector<8xf32>
    %118 = vector.multi_reduction <add>, %117, %cst_47 [1] : vector<8x32xf32> to vector<8xf32>
    %119 = vector.shape_cast %118 : vector<8xf32> to vector<8x1xf32>
    %cst_48 = arith.constant 3.200000e+01 : f32
    %120 = vector.broadcast %cst_48 : f32 to vector<8x1xf32>
    %121 = arith.divf %119, %120 : vector<8x1xf32>
    %cst_49 = arith.constant 9.99999996E-13 : f32
    %122 = vector.broadcast %cst_49 : f32 to vector<8x1xf32>
    %123 = arith.addf %121, %122 : vector<8x1xf32>
    %124 = math.rsqrt %123 : vector<8x1xf32>
    %125 = vector.broadcast %114 : vector<8x1xf32> to vector<8x32xf32>
    %126 = arith.subf %108, %125 : vector<8x32xf32>
    %127 = vector.broadcast %124 : vector<8x1xf32> to vector<8x32xf32>
    %128 = arith.mulf %126, %127 : vector<8x32xf32>
    %129 = vector.broadcast %109 : vector<1x32xf32> to vector<8x32xf32>
    %130 = arith.mulf %128, %129 : vector<8x32xf32>
    %131 = vector.broadcast %110 : vector<1x32xf32> to vector<8x32xf32>
    %132 = arith.addf %130, %131 : vector<8x32xf32>
    %133 = arith.truncf %132 : vector<8x32xf32> to vector<8x32xbf16>
    %c0_50 = arith.constant 0 : index
    %c0_51 = arith.constant 0 : index
    %134 = vector.load %arg12[%c0_50, %c0_51] : memref<32x64xbf16, #tpu.memory_space<vmem>>, vector<32x64xbf16>
    %cst_52 = arith.constant dense<0.000000e+00> : vector<8x64xf32>
    %135 = tpu.matmul %133, %134, %cst_52 {dimension_numbers = #tpu.dot_dimension_numbers<[1], [0], [0], [1], [0, 0, 1, 1], [], []>} : vector<8x32xbf16>, vector<32x64xbf16>, vector<8x64xf32> -> vector<8x64xf32>
    %c0_53 = arith.constant 0 : index
    %c0_54 = arith.constant 0 : index
    %136 = vector.load %arg13[%c0_53, %c0_54] : memref<1x64xf32, #tpu.memory_space<vmem>>, vector<1x64xf32>
    %137 = vector.broadcast %136 : vector<1x64xf32> to vector<8x64xf32>
    %138 = arith.addf %135, %137 : vector<8x64xf32>
    %cst_55 = arith.constant 0.000000e+00 : f32
    %139 = vector.broadcast %cst_55 : f32 to vector<8x64xf32>
    %140 = arith.maximumf %138, %139 : vector<8x64xf32>
    %141 = arith.truncf %140 : vector<8x64xf32> to vector<8x64xbf16>
    %c0_56 = arith.constant 0 : index
    %c0_57 = arith.constant 0 : index
    %142 = vector.load %arg14[%c0_56, %c0_57] : memref<64x32xbf16, #tpu.memory_space<vmem>>, vector<64x32xbf16>
    %cst_58 = arith.constant dense<0.000000e+00> : vector<8x32xf32>
    %143 = tpu.matmul %141, %142, %cst_58 {dimension_numbers = #tpu.dot_dimension_numbers<[1], [0], [0], [1], [0, 0, 1, 1], [], []>} : vector<8x64xbf16>, vector<64x32xbf16>, vector<8x32xf32> -> vector<8x32xf32>
    %c0_59 = arith.constant 0 : index
    %c0_60 = arith.constant 0 : index
    %144 = vector.load %arg15[%c0_59, %c0_60] : memref<1x32xf32, #tpu.memory_space<vmem>>, vector<1x32xf32>
    %145 = vector.broadcast %144 : vector<1x32xf32> to vector<8x32xf32>
    %146 = arith.addf %143, %145 : vector<8x32xf32>
    %147 = arith.addf %146, %132 : vector<8x32xf32>
    %c0_61 = arith.constant 0 : index
    %c0_62 = arith.constant 0 : index
    %148 = vector.load %arg16[%c0_61, %c0_62] : memref<1x32xf32, #tpu.memory_space<vmem>>, vector<1x32xf32>
    %c0_63 = arith.constant 0 : index
    %c0_64 = arith.constant 0 : index
    %149 = vector.load %arg17[%c0_63, %c0_64] : memref<1x32xf32, #tpu.memory_space<vmem>>, vector<1x32xf32>
    %cst_65 = arith.constant dense<0.000000e+00> : vector<8xf32>
    %150 = vector.multi_reduction <add>, %147, %cst_65 [1] : vector<8x32xf32> to vector<8xf32>
    %151 = vector.shape_cast %150 : vector<8xf32> to vector<8x1xf32>
    %cst_66 = arith.constant 3.200000e+01 : f32
    %152 = vector.broadcast %cst_66 : f32 to vector<8x1xf32>
    %153 = arith.divf %151, %152 : vector<8x1xf32>
    %154 = vector.broadcast %153 : vector<8x1xf32> to vector<8x32xf32>
    %155 = arith.subf %147, %154 : vector<8x32xf32>
    %156 = arith.mulf %155, %155 : vector<8x32xf32>
    %cst_67 = arith.constant dense<0.000000e+00> : vector<8xf32>
    %157 = vector.multi_reduction <add>, %156, %cst_67 [1] : vector<8x32xf32> to vector<8xf32>
    %158 = vector.shape_cast %157 : vector<8xf32> to vector<8x1xf32>
    %cst_68 = arith.constant 3.200000e+01 : f32
    %159 = vector.broadcast %cst_68 : f32 to vector<8x1xf32>
    %160 = arith.divf %158, %159 : vector<8x1xf32>
    %cst_69 = arith.constant 9.99999996E-13 : f32
    %161 = vector.broadcast %cst_69 : f32 to vector<8x1xf32>
    %162 = arith.addf %160, %161 : vector<8x1xf32>
    %163 = math.rsqrt %162 : vector<8x1xf32>
    %164 = vector.broadcast %153 : vector<8x1xf32> to vector<8x32xf32>
    %165 = arith.subf %147, %164 : vector<8x32xf32>
    %166 = vector.broadcast %163 : vector<8x1xf32> to vector<8x32xf32>
    %167 = arith.mulf %165, %166 : vector<8x32xf32>
    %168 = vector.broadcast %148 : vector<1x32xf32> to vector<8x32xf32>
    %169 = arith.mulf %167, %168 : vector<8x32xf32>
    %170 = vector.broadcast %149 : vector<1x32xf32> to vector<8x32xf32>
    %171 = arith.addf %169, %170 : vector<8x32xf32>
    %172 = arith.truncf %171 : vector<8x32xf32> to vector<8x32xbf16>
    %c0_70 = arith.constant 0 : index
    %c0_71 = arith.constant 0 : index
    %c0_72 = arith.constant 0 : index
    %173 = vector.load %arg18[%c0_70, %c0_71, %c0_72] : memref<1x8x32xbf16, #tpu.memory_space<vmem>>, vector<1x8x32xbf16>
    %174 = vector.shape_cast %173 : vector<1x8x32xbf16> to vector<8x32xbf16>
    %175 = vector.shape_cast %172 : vector<8x32xbf16> to vector<1x8x32xbf16>
    tpu.vector_store %arg18[%c0_70, %c0_71, %c0_72], %175 {strides = array<i32>} : memref<1x8x32xbf16, #tpu.memory_space<vmem>>, vector<1x8x32xbf16>,
    return
  }
  func.func @transform_0(%arg0: i32, %arg1: i32) -> (i32, i32, i32) {
    %c0_i32 = arith.constant 0 : i32
    %c0_i32_0 = arith.constant 0 : i32
    %c0_i32_1 = arith.constant 0 : i32
    return %arg0, %c0_i32, %c0_i32_0 : i32, i32, i32
  }
  func.func @transform_1(%arg0: i32, %arg1: i32) -> (i32, i32, i32) {
    %c0_i32 = arith.constant 0 : i32
    %c0_i32_0 = arith.constant 0 : i32
    return %arg0, %arg1, %c0_i32 : i32, i32, i32
  }
  func.func @transform_2(%arg0: i32, %arg1: i32) -> (i32, i32) {
    %c0_i32 = arith.constant 0 : i32
    %c0_i32_0 = arith.constant 0 : i32
    %c0_i32_1 = arith.constant 0 : i32
    return %c0_i32, %c0_i32_0 : i32, i32
  }
  func.func @transform_3(%arg0: i32, %arg1: i32) -> (i32, i32) {
    %c0_i32 = arith.constant 0 : i32
    %c0_i32_0 = arith.constant 0 : i32
    %c0_i32_1 = arith.constant 0 : i32
    return %c0_i32, %c0_i32_0 : i32, i32
  }
  func.func @transform_4(%arg0: i32, %arg1: i32) -> (i32, i32) {
    %c0_i32 = arith.constant 0 : i32
    %c0_i32_0 = arith.constant 0 : i32
    %c0_i32_1 = arith.constant 0 : i32
    return %c0_i32, %c0_i32_0 : i32, i32
  }
  func.func @transform_5(%arg0: i32, %arg1: i32) -> (i32, i32) {
    %c0_i32 = arith.constant 0 : i32
    %c0_i32_0 = arith.constant 0 : i32
    %c0_i32_1 = arith.constant 0 : i32
    return %c0_i32, %c0_i32_0 : i32, i32
  }
  func.func @transform_6(%arg0: i32, %arg1: i32) -> (i32, i32) {
    %c0_i32 = arith.constant 0 : i32
    %c0_i32_0 = arith.constant 0 : i32
    %c0_i32_1 = arith.constant 0 : i32
    return %c0_i32, %c0_i32_0 : i32, i32
  }
  func.func @transform_7(%arg0: i32, %arg1: i32) -> (i32, i32) {
    %c0_i32 = arith.constant 0 : i32
    %c0_i32_0 = arith.constant 0 : i32
    %c0_i32_1 = arith.constant 0 : i32
    return %c0_i32, %c0_i32_0 : i32, i32
  }
  func.func @transform_8(%arg0: i32, %arg1: i32) -> (i32, i32) {
    %c0_i32 = arith.constant 0 : i32
    %c0_i32_0 = arith.constant 0 : i32
    %c0_i32_1 = arith.constant 0 : i32
    return %c0_i32, %c0_i32_0 : i32, i32
  }
  func.func @transform_9(%arg0: i32, %arg1: i32) -> (i32, i32) {
    %c0_i32 = arith.constant 0 : i32
    %c0_i32_0 = arith.constant 0 : i32
    %c0_i32_1 = arith.constant 0 : i32
    return %c0_i32, %c0_i32_0 : i32, i32
  }
  func.func @transform_10(%arg0: i32, %arg1: i32) -> (i32, i32) {
    %c0_i32 = arith.constant 0 : i32
    %c0_i32_0 = arith.constant 0 : i32
    %c0_i32_1 = arith.constant 0 : i32
    return %c0_i32, %c0_i32_0 : i32, i32
  }
  func.func @transform_11(%arg0: i32, %arg1: i32) -> (i32, i32) {
    %c0_i32 = arith.constant 0 : i32
    %c0_i32_0 = arith.constant 0 : i32
    %c0_i32_1 = arith.constant 0 : i32
    return %c0_i32, %c0_i32_0 : i32, i32
  }
  func.func @transform_12(%arg0: i32, %arg1: i32) -> (i32, i32) {
    %c0_i32 = arith.constant 0 : i32
    %c0_i32_0 = arith.constant 0 : i32
    %c0_i32_1 = arith.constant 0 : i32
    return %c0_i32, %c0_i32_0 : i32, i32
  }
  func.func @transform_13(%arg0: i32, %arg1: i32) -> (i32, i32) {
    %c0_i32 = arith.constant 0 : i32
    %c0_i32_0 = arith.constant 0 : i32
    %c0_i32_1 = arith.constant 0 : i32
    return %c0_i32, %c0_i32_0 : i32, i32
  }
  func.func @transform_14(%arg0: i32, %arg1: i32) -> (i32, i32) {
    %c0_i32 = arith.constant 0 : i32
    %c0_i32_0 = arith.constant 0 : i32
    %c0_i32_1 = arith.constant 0 : i32
    return %c0_i32, %c0_i32_0 : i32, i32
  }
  func.func @transform_15(%arg0: i32, %arg1: i32) -> (i32, i32) {
    %c0_i32 = arith.constant 0 : i32
    %c0_i32_0 = arith.constant 0 : i32
    %c0_i32_1 = arith.constant 0 : i32
    return %c0_i32, %c0_i32_0 : i32, i32
  }
  func.func @transform_16(%arg0: i32, %arg1: i32) -> (i32, i32, i32) {
    %c0_i32 = arith.constant 0 : i32
    %c0_i32_0 = arith.constant 0 : i32
    return %arg0, %arg1, %c0_i32 : i32, i32, i32
  }
}

</mosaic_0001>

<llo_original>
// kernel: encoder_forward.2
$region0: #{encoder_forward.2}
  #allocation0 [shape = 'u32[]', space=smem, size = 0x4, offset = 0x4, fixed_abs, tag = 'smem constant byte address 0x4 - core index']
  #allocation1 [shape = 'u32[144,128]{1,0:T(1,128)}', space=vmem, size = 0x12000, scoped, tag = 'internal scratch']
  #allocation2 [shape = 'bf16[2,8,32]{2,1,0:T(8,128)(2,1)}', space=vmem, size = 0x1000, scoped, tag = 'scratch operand']
  %s0 = inlined_call_operand.vmem [shape: bf16[2,8,32], index: 0, kind: input, shape index: {}]
  %s1 = inlined_call_operand.vmem [shape: s8[2,8,8], index: 1, kind: input, shape index: {}]
  %s2 = inlined_call_operand.vmem [shape: bf16[32,32], index: 2, kind: input, shape index: {}]
  %s3 = inlined_call_operand.vmem [shape: f32[1,32], index: 3, kind: input, shape index: {}]
  %s4 = inlined_call_operand.vmem [shape: bf16[32,64], index: 4, kind: input, shape index: {}]
  %s5 = inlined_call_operand.vmem [shape: f32[1,64], index: 5, kind: input, shape index: {}]
  %s6 = inlined_call_operand.vmem [shape: bf16[32,32], index: 6, kind: input, shape index: {}]
  %s7 = inlined_call_operand.vmem [shape: f32[1,32], index: 7, kind: input, shape index: {}]
  %s8 = inlined_call_operand.vmem [shape: f32[1,32], index: 8, kind: input, shape index: {}]
  %s9 = inlined_call_operand.hbm [shape: f32[1,32], index: 9, kind: input, shape index: {}]
  %s10 = inlined_call_operand.vmem [shape: bf16[32,64], index: 10, kind: input, shape index: {}]
  %s11 = inlined_call_operand.hbm [shape: f32[1,64], index: 11, kind: input, shape index: {}]
  %s12 = inlined_call_operand.vmem [shape: bf16[64,32], index: 12, kind: input, shape index: {}]
  %s13 = inlined_call_operand.hbm [shape: f32[1,32], index: 13, kind: input, shape index: {}]
  %s14 = inlined_call_operand.vmem [shape: f32[1,32], index: 14, kind: input, shape index: {}]
  %s15 = inlined_call_operand.vmem [shape: f32[1,32], index: 15, kind: input, shape index: {}]
  %s16 = inlined_call_operand.vmem [shape: bf16[2,8,32], index: 16, kind: output, shape index: {}]
  %s17 = sld [smem:[#allocation0]]
  $region113: #{encoder_forward.2} parent=0
    _
  %s19 = ssub.s32 1, %s17
  %s20 = scalar_select 0, %s19, %s17
  $region1: #{encoder_forward.2} parent=0
    #allocation3 [shape = 'u8[512]{0}', space=vmem, size = 0x400, scoped, tag = 'input window, operand 9, single buffered']
    #allocation4 [shape = 's32[2]{0}', space=sflag, size = 0x8, scoped, tag = 'scoped memory for encoder_forward.2']
    #allocation5 [shape = 'u8[512]{0}', space=vmem, size = 0x400, scoped, tag = 'input window, operand 11, single buffered']
    #allocation6 [shape = 's32[1]{0}', space=sflag, size = 0x4, scoped, tag = 'scoped memory for encoder_forward.2']
    #allocation7 [shape = 'u8[512]{0}', space=vmem, size = 0x400, scoped, tag = 'input window, operand 13, single buffered']
    %21 = vsyncpa [#allocation4], 0
    %22 = vsyncpa [#allocation6], 0
    loop: start=0, step=1, limit=4
    $region2: #{encoder_forward.2} parent=1 // loop_pre_header
      _
    $region3: #{encoder_forward.2} parent=1 // loop_header
      %s24 = sphi 0, %s28
      %p25 = scmp.ge.s32.totalorder %s24, 4
      %s31 = sphi 0, %s43
      %s32 = sphi 0, %s39
      %s33 = sphi 0, %s31
      %s34 = sphi 0, %s32
      %s35 = sphi 0, %s33
      %s36 = sphi 0, %s34
      %s46 = sphi 0, %s48
      %s49 = sphi 0, %s46
      %s50 = sphi 0, %s49
      %s66 = sphi 0, %s50
      %s74 = sphi 0, %s76
      %s77 = sphi 0, %s74
      %s78 = sphi 0, %s77
      %s94 = sphi 0, %s78
      %s98 = sphi 0, %s98
      %s100 = sphi 0, %s98
      %s101 = sphi 0, %s100
      %s115 = sphi 0, %s101
      %s119 = sphi 0, %s119
      %s121 = sphi 0, %s119
      %s122 = sphi 0, %s121
      %s136 = sphi 0, %s122
      %s140 = sphi 0, %s140
      %s142 = sphi 0, %s140
      %s143 = sphi 0, %s142
      %s157 = sphi 0, %s143
      %s161 = sphi 0, %s161
      %s163 = sphi 0, %s161
      %s164 = sphi 0, %s163
      %s178 = sphi 0, %s164
      %s182 = sphi 0, %s182
      %s184 = sphi 0, %s182
      %s185 = sphi 0, %s184
      %s199 = sphi 0, %s185
      %s203 = sphi 0, %s203
      %s205 = sphi 0, %s203
      %s206 = sphi 0, %s205
      %s220 = sphi 0, %s206
      %s224 = sphi 0, %s224
      %s226 = sphi 0, %s224
      %s227 = sphi 0, %s226
      %s241 = sphi 0, %s227
      %s245 = sphi 0, %s245
      %s247 = sphi 0, %s245
      %s248 = sphi 0, %s247
      %s262 = sphi 0, %s248
      %s266 = sphi 0, %s266
      %s268 = sphi 0, %s266
      %s269 = sphi 0, %s268
      %s283 = sphi 0, %s269
      %s287 = sphi 0, %s287
      %s289 = sphi 0, %s287
      %s290 = sphi 0, %s289
      %s304 = sphi 0, %s290
      %s308 = sphi 0, %s308
      %s310 = sphi 0, %s308
      %s311 = sphi 0, %s310
      %s325 = sphi 0, %s311
      %s329 = sphi 0, %s329
      %s331 = sphi 0, %s329
      %s332 = sphi 0, %s331
      %s346 = sphi 0, %s332
      %s350 = sphi 0, %s350
      %s352 = sphi 0, %s350
      %s353 = sphi 0, %s352
      %s367 = sphi 0, %s353
      %s371 = sphi 0, %s371
      %s373 = sphi 0, %s371
      %s374 = sphi 0, %s373
      %s388 = sphi 0, %s374
      %s396 = sphi 0, %s398
      %s399 = sphi 0, %s396
      %s400 = sphi 0, %s399
      %s416 = sphi 0, %s400
    $region4: #{encoder_forward.2} parent=1 // loop_header_branch
      %27 = sbr.rel (%p25) target = $region8
    $region5: #{encoder_forward.2} parent=1 // loop_body
      %s29 = ssub.s32 %s24, 1
      %s30 = ssub.s32 %s24, 2
      %s37 = sadd.s32 1, %s32
      %p38 = scmp.ge.s32.totalorder %s37, 1
      %s39 = scalar_select %p38, 0, %s37
      %s40 = sadd.s32 1, %s31
      %s41 = scalar_select %p38, %s40, %s31
      %p42 = scmp.ge.s32.totalorder %s41, 2
      %s43 = scalar_select %p42, 0, %s41
      %s44 = ssub.s32 %s31, %s43
      %p45 = scmp.eq.s32.totalorder %s44, 0
      %s47 = sadd.s32 %s46, 1
      %s48 = scalar_select %p45, %s46, %s47
      %p51 = pneg %p45
      %p52 = scmp.eq.s32.totalorder %s24, 1
      %p53 = por %p51, %p52
      %p54 = scmp.ne.s32.totalorder %s46, %s49
      %p55 = scmp.eq.s32.totalorder %s24, 0
      %p56 = por %p54, %p55
      %p57 = scmp.ne.s32.totalorder %s46, %s49
      %p58 = scmp.eq.s32.totalorder %s29, 1
      %p59 = por %p57, %p58
      %p60 = scmp.ne.s32.totalorder %s49, %s50
      %p61 = scmp.eq.s32.totalorder %s29, 0
      %p62 = por %p60, %p61
      %p63 = scmp.ne.s32.totalorder %s49, %s50
      %p64 = scmp.eq.s32.totalorder %s30, 1
      %p65 = por %p63, %p64
      %p67 = scmp.ne.s32.totalorder %s50, %s66
      %p68 = scmp.eq.s32.totalorder %s30, 0
      %p69 = por %p67, %p68
      %s70 = ssub.s32 %s31, %s43
      %s71 = ssub.s32 %s32, %s39
      %s72 = sor.u32 %s70, %s71
      %p73 = scmp.eq.s32.totalorder %s72, 0
      %s75 = sadd.s32 %s74, 1
      %s76 = scalar_select %p73, %s74, %s75
      %p79 = pneg %p73
      %p80 = scmp.eq.s32.totalorder %s24, 1
      %p81 = por %p79, %p80
      %p82 = scmp.ne.s32.totalorder %s74, %s77
      %p83 = scmp.eq.s32.totalorder %s24, 0
      %p84 = por %p82, %p83
      %p85 = scmp.ne.s32.totalorder %s74, %s77
      %p86 = scmp.eq.s32.totalorder %s29, 1
      %p87 = por %p85, %p86
      %p88 = scmp.ne.s32.totalorder %s77, %s78
      %p89 = scmp.eq.s32.totalorder %s29, 0
      %p90 = por %p88, %p89
      %p91 = scmp.ne.s32.totalorder %s77, %s78
      %p92 = scmp.eq.s32.totalorder %s30, 1
      %p93 = por %p91, %p92
      %p95 = scmp.ne.s32.totalorder %s78, %s94
      %p96 = scmp.eq.s32.totalorder %s30, 0
      %p97 = por %p95, %p96
      %s99 = sadd.s32 %s98, 1
      %p102 = scmp.eq.s32.totalorder %s24, 1
      %p103 = scmp.ne.s32.totalorder %s98, %s100
      %p104 = scmp.eq.s32.totalorder %s24, 0
      %p105 = por %p103, %p104
      %p106 = scmp.ne.s32.totalorder %s98, %s100
      %p107 = scmp.eq.s32.totalorder %s29, 1
      %p108 = por %p106, %p107
      %p109 = scmp.ne.s32.totalorder %s100, %s101
      %p110 = scmp.eq.s32.totalorder %s29, 0
      %p111 = por %p109, %p110
      %p112 = scmp.ne.s32.totalorder %s100, %s101
      %p113 = scmp.eq.s32.totalorder %s30, 1
      %p114 = por %p112, %p113
      %p116 = scmp.ne.s32.totalorder %s101, %s115
      %p117 = scmp.eq.s32.totalorder %s30, 0
      %p118 = por %p116, %p117
      %s120 = sadd.s32 %s119, 1
      %p123 = scmp.eq.s32.totalorder %s24, 1
      %p124 = scmp.ne.s32.totalorder %s119, %s121
      %p125 = scmp.eq.s32.totalorder %s24, 0
      %p126 = por %p124, %p125
      %p127 = scmp.ne.s32.totalorder %s119, %s121
      %p128 = scmp.eq.s32.totalorder %s29, 1
      %p129 = por %p127, %p128
      %p130 = scmp.ne.s32.totalorder %s121, %s122
      %p131 = scmp.eq.s32.totalorder %s29, 0
      %p132 = por %p130, %p131
      %p133 = scmp.ne.s32.totalorder %s121, %s122
      %p134 = scmp.eq.s32.totalorder %s30, 1
      %p135 = por %p133, %p134
      %p137 = scmp.ne.s32.totalorder %s122, %s136
      %p138 = scmp.eq.s32.totalorder %s30, 0
      %p139 = por %p137, %p138
      %s141 = sadd.s32 %s140, 1
      %p144 = scmp.eq.s32.totalorder %s24, 1
      %p145 = scmp.ne.s32.totalorder %s140, %s142
      %p146 = scmp.eq.s32.totalorder %s24, 0
      %p147 = por %p145, %p146
      %p148 = scmp.ne.s32.totalorder %s140, %s142
      %p149 = scmp.eq.s32.totalorder %s29, 1
      %p150 = por %p148, %p149
      %p151 = scmp.ne.s32.totalorder %s142, %s143
      %p152 = scmp.eq.s32.totalorder %s29, 0
      %p153 = por %p151, %p152
      %p154 = scmp.ne.s32.totalorder %s142, %s143
      %p155 = scmp.eq.s32.totalorder %s30, 1
      %p156 = por %p154, %p155
      %p158 = scmp.ne.s32.totalorder %s143, %s157
      %p159 = scmp.eq.s32.totalorder %s30, 0
      %p160 = por %p158, %p159
      %s162 = sadd.s32 %s161, 1
      %p165 = scmp.eq.s32.totalorder %s24, 1
      %p166 = scmp.ne.s32.totalorder %s161, %s163
      %p167 = scmp.eq.s32.totalorder %s24, 0
      %p168 = por %p166, %p167
      %p169 = scmp.ne.s32.totalorder %s161, %s163
      %p170 = scmp.eq.s32.totalorder %s29, 1
      %p171 = por %p169, %p170
      %p172 = scmp.ne.s32.totalorder %s163, %s164
      %p173 = scmp.eq.s32.totalorder %s29, 0
      %p174 = por %p172, %p173
      %p175 = scmp.ne.s32.totalorder %s163, %s164
      %p176 = scmp.eq.s32.totalorder %s30, 1
      %p177 = por %p175, %p176
      %p179 = scmp.ne.s32.totalorder %s164, %s178
      %p180 = scmp.eq.s32.totalorder %s30, 0
      %p181 = por %p179, %p180
      %s183 = sadd.s32 %s182, 1
      %p186 = scmp.eq.s32.totalorder %s24, 1
      %p187 = scmp.ne.s32.totalorder %s182, %s184
      %p188 = scmp.eq.s32.totalorder %s24, 0
      %p189 = por %p187, %p188
      %p190 = scmp.ne.s32.totalorder %s182, %s184
      %p191 = scmp.eq.s32.totalorder %s29, 1
      %p192 = por %p190, %p191
      %p193 = scmp.ne.s32.totalorder %s184, %s185
      %p194 = scmp.eq.s32.totalorder %s29, 0
      %p195 = por %p193, %p194
      %p196 = scmp.ne.s32.totalorder %s184, %s185
      %p197 = scmp.eq.s32.totalorder %s30, 1
      %p198 = por %p196, %p197
      %p200 = scmp.ne.s32.totalorder %s185, %s199
      %p201 = scmp.eq.s32.totalorder %s30, 0
      %p202 = por %p200, %p201
      %s204 = sadd.s32 %s203, 1
      %p207 = scmp.eq.s32.totalorder %s24, 1
      %p208 = scmp.ne.s32.totalorder %s203, %s205
      %p209 = scmp.eq.s32.totalorder %s24, 0
      %p210 = por %p208, %p209
      %p211 = scmp.ne.s32.totalorder %s203, %s205
      %p212 = scmp.eq.s32.totalorder %s29, 1
      %p213 = por %p211, %p212
      %p214 = scmp.ne.s32.totalorder %s205, %s206
      %p215 = scmp.eq.s32.totalorder %s29, 0
      %p216 = por %p214, %p215
      %p217 = scmp.ne.s32.totalorder %s205, %s206
      %p218 = scmp.eq.s32.totalorder %s30, 1
      %p219 = por %p217, %p218
      %p221 = scmp.ne.s32.totalorder %s206, %s220
      %p222 = scmp.eq.s32.totalorder %s30, 0
      %p223 = por %p221, %p222
      %s225 = sadd.s32 %s224, 1
      %p228 = scmp.eq.s32.totalorder %s24, 1
      %p229 = scmp.ne.s32.totalorder %s224, %s226
      %p230 = scmp.eq.s32.totalorder %s24, 0
      %p231 = por %p229, %p230
      %p232 = scmp.ne.s32.totalorder %s224, %s226
      %p233 = scmp.eq.s32.totalorder %s29, 1
      %p234 = por %p232, %p233
      %p235 = scmp.ne.s32.totalorder %s226, %s227
      %p236 = scmp.eq.s32.totalorder %s29, 0
      %p237 = por %p235, %p236
      %p238 = scmp.ne.s32.totalorder %s226, %s227
      %p239 = scmp.eq.s32.totalorder %s30, 1
      %p240 = por %p238, %p239
      %p242 = scmp.ne.s32.totalorder %s227, %s241
      %p243 = scmp.eq.s32.totalorder %s30, 0
      %p244 = por %p242, %p243
      %s246 = sadd.s32 %s245, 1
      %p249 = scmp.eq.s32.totalorder %s24, 1
      %p250 = scmp.ne.s32.totalorder %s245, %s247
      %p251 = scmp.eq.s32.totalorder %s24, 0
      %p252 = por %p250, %p251
      %p253 = scmp.ne.s32.totalorder %s245, %s247
      %p254 = scmp.eq.s32.totalorder %s29, 1
      %p255 = por %p253, %p254
      %p256 = scmp.ne.s32.totalorder %s247, %s248
      %p257 = scmp.eq.s32.totalorder %s29, 0
      %p258 = por %p256, %p257
      %p259 = scmp.ne.s32.totalorder %s247, %s248
      %p260 = scmp.eq.s32.totalorder %s30, 1
      %p261 = por %p259, %p260
      %p263 = scmp.ne.s32.totalorder %s248, %s262
      %p264 = scmp.eq.s32.totalorder %s30, 0
      %p265 = por %p263, %p264
      %s267 = sadd.s32 %s266, 1
      %p270 = scmp.eq.s32.totalorder %s24, 1
      %p271 = scmp.ne.s32.totalorder %s266, %s268
      %p272 = scmp.eq.s32.totalorder %s24, 0
      %p273 = por %p271, %p272
      %p274 = scmp.ne.s32.totalorder %s266, %s268
      %p275 = scmp.eq.s32.totalorder %s29, 1
      %p276 = por %p274, %p275
      %p277 = scmp.ne.s32.totalorder %s268, %s269
      %p278 = scmp.eq.s32.totalorder %s29, 0
      %p279 = por %p277, %p278
      %p280 = scmp.ne.s32.totalorder %s268, %s269
      %p281 = scmp.eq.s32.totalorder %s30, 1
      %p282 = por %p280, %p281
      %p284 = scmp.ne.s32.totalorder %s269, %s283
      %p285 = scmp.eq.s32.totalorder %s30, 0
      %p286 = por %p284, %p285
      %s288 = sadd.s32 %s287, 1
      %p291 = scmp.eq.s32.totalorder %s24, 1
      %p292 = scmp.ne.s32.totalorder %s287, %s289
      %p293 = scmp.eq.s32.totalorder %s24, 0
      %p294 = por %p292, %p293
      %p295 = scmp.ne.s32.totalorder %s287, %s289
      %p296 = scmp.eq.s32.totalorder %s29, 1
      %p297 = por %p295, %p296
      %p298 = scmp.ne.s32.totalorder %s289, %s290
      %p299 = scmp.eq.s32.totalorder %s29, 0
      %p300 = por %p298, %p299
      %p301 = scmp.ne.s32.totalorder %s289, %s290
      %p302 = scmp.eq.s32.totalorder %s30, 1
      %p303 = por %p301, %p302
      %p305 = scmp.ne.s32.totalorder %s290, %s304
      %p306 = scmp.eq.s32.totalorder %s30, 0
      %p307 = por %p305, %p306
      %s309 = sadd.s32 %s308, 1
      %p312 = scmp.eq.s32.totalorder %s24, 1
      %p313 = scmp.ne.s32.totalorder %s308, %s310
      %p314 = scmp.eq.s32.totalorder %s24, 0
      %p315 = por %p313, %p314
      %p316 = scmp.ne.s32.totalorder %s308, %s310
      %p317 = scmp.eq.s32.totalorder %s29, 1
      %p318 = por %p316, %p317
      %p319 = scmp.ne.s32.totalorder %s310, %s311
      %p320 = scmp.eq.s32.totalorder %s29, 0
      %p321 = por %p319, %p320
      %p322 = scmp.ne.s32.totalorder %s310, %s311
      %p323 = scmp.eq.s32.totalorder %s30, 1
      %p324 = por %p322, %p323
      %p326 = scmp.ne.s32.totalorder %s311, %s325
      %p327 = scmp.eq.s32.totalorder %s30, 0
      %p328 = por %p326, %p327
      %s330 = sadd.s32 %s329, 1
      %p333 = scmp.eq.s32.totalorder %s24, 1
      %p334 = scmp.ne.s32.totalorder %s329, %s331
      %p335 = scmp.eq.s32.totalorder %s24, 0
      %p336 = por %p334, %p335
      %p337 = scmp.ne.s32.totalorder %s329, %s331
      %p338 = scmp.eq.s32.totalorder %s29, 1
      %p339 = por %p337, %p338
      %p340 = scmp.ne.s32.totalorder %s331, %s332
      %p341 = scmp.eq.s32.totalorder %s29, 0
      %p342 = por %p340, %p341
      %p343 = scmp.ne.s32.totalorder %s331, %s332
      %p344 = scmp.eq.s32.totalorder %s30, 1
      %p345 = por %p343, %p344
      %p347 = scmp.ne.s32.totalorder %s332, %s346
      %p348 = scmp.eq.s32.totalorder %s30, 0
      %p349 = por %p347, %p348
      %s351 = sadd.s32 %s350, 1
      %p354 = scmp.eq.s32.totalorder %s24, 1
      %p355 = scmp.ne.s32.totalorder %s350, %s352
      %p356 = scmp.eq.s32.totalorder %s24, 0
      %p357 = por %p355, %p356
      %p358 = scmp.ne.s32.totalorder %s350, %s352
      %p359 = scmp.eq.s32.totalorder %s29, 1
      %p360 = por %p358, %p359
      %p361 = scmp.ne.s32.totalorder %s352, %s353
      %p362 = scmp.eq.s32.totalorder %s29, 0
      %p363 = por %p361, %p362
      %p364 = scmp.ne.s32.totalorder %s352, %s353
      %p365 = scmp.eq.s32.totalorder %s30, 1
      %p366 = por %p364, %p365
      %p368 = scmp.ne.s32.totalorder %s353, %s367
      %p369 = scmp.eq.s32.totalorder %s30, 0
      %p370 = por %p368, %p369
      %s372 = sadd.s32 %s371, 1
      %p375 = scmp.eq.s32.totalorder %s24, 1
      %p376 = scmp.ne.s32.totalorder %s371, %s373
      %p377 = scmp.eq.s32.totalorder %s24, 0
      %p378 = por %p376, %p377
      %p379 = scmp.ne.s32.totalorder %s371, %s373
      %p380 = scmp.eq.s32.totalorder %s29, 1
      %p381 = por %p379, %p380
      %p382 = scmp.ne.s32.totalorder %s373, %s374
      %p383 = scmp.eq.s32.totalorder %s29, 0
      %p384 = por %p382, %p383
      %p385 = scmp.ne.s32.totalorder %s373, %s374
      %p386 = scmp.eq.s32.totalorder %s30, 1
      %p387 = por %p385, %p386
      %p389 = scmp.ne.s32.totalorder %s374, %s388
      %p390 = scmp.eq.s32.totalorder %s30, 0
      %p391 = por %p389, %p390
      %s392 = ssub.s32 %s31, %s43
      %s393 = ssub.s32 %s32, %s39
      %s394 = sor.u32 %s392, %s393
      %p395 = scmp.eq.s32.totalorder %s394, 0
      %s397 = sadd.s32 %s396, 1
      %s398 = scalar_select %p395, %s396, %s397
      %p401 = pneg %p395
      %p402 = scmp.eq.s32.totalorder %s24, 1
      %p403 = por %p401, %p402
      %p404 = scmp.ne.s32.totalorder %s396, %s399
      %p405 = scmp.eq.s32.totalorder %s24, 0
      %p406 = por %p404, %p405
      %p407 = scmp.ne.s32.totalorder %s396, %s399
      %p408 = scmp.eq.s32.totalorder %s29, 1
      %p409 = por %p407, %p408
      %p410 = scmp.ne.s32.totalorder %s399, %s400
      %p411 = scmp.eq.s32.totalorder %s29, 0
      %p412 = por %p410, %p411
      %p413 = scmp.ne.s32.totalorder %s399, %s400
      %p414 = scmp.eq.s32.totalorder %s30, 1
      %p415 = por %p413, %p414
      %p417 = scmp.ne.s32.totalorder %s400, %s416
      %p418 = scmp.eq.s32.totalorder %s30, 0
      %p419 = por %p417, %p418
      %p420 = scmp.le.s32.totalorder 1, %s24
      %p421 = scmp.lt.s32.totalorder %s24, 3
      %p422 = pnand %p420, %p421
      %p423 = pneg %p422
      // Predicated region
      $region9: #{encoder_forward.2} parent=5 // pred_check
        _
      $region10: #{encoder_forward.2} parent=5 // pred_check_branch
        %425 = sbr.rel (%p422) target = $region12
      $region11: #{encoder_forward.2} parent=5 // pred_region
        %s426 = ssub.s32 %s24, 1
        // Predicated region
        $region13: #{encoder_forward.2} parent=11 // pred_check
          %p427 = pneg %p111
        $region14: #{encoder_forward.2} parent=11 // pred_check_branch
          %429 = sbr.rel (%p427) target = $region16
        $region15: #{encoder_forward.2} parent=11 // pred_region
          _
        $region16: #{encoder_forward.2} parent=11 // pred_fallthru
          _
        // Predicated region
        $region17: #{encoder_forward.2} parent=11 // pred_check
          %p430 = pneg %p132
        $region18: #{encoder_forward.2} parent=11 // pred_check_branch
          %432 = sbr.rel (%p430) target = $region20
        $region19: #{encoder_forward.2} parent=11 // pred_region
          _
        $region20: #{encoder_forward.2} parent=11 // pred_fallthru
          _
        // Predicated region
        $region21: #{encoder_forward.2} parent=11 // pred_check
          %p433 = pneg %p153
        $region22: #{encoder_forward.2} parent=11 // pred_check_branch
          %435 = sbr.rel (%p433) target = $region24
        $region23: #{encoder_forward.2} parent=11 // pred_region
          _
        $region24: #{encoder_forward.2} parent=11 // pred_fallthru
          _
        // Predicated region
        $region25: #{encoder_forward.2} parent=11 // pred_check
          %p436 = pneg %p174
        $region26: #{encoder_forward.2} parent=11 // pred_check_branch
          %438 = sbr.rel (%p436) target = $region28
        $region27: #{encoder_forward.2} parent=11 // pred_region
          _
        $region28: #{encoder_forward.2} parent=11 // pred_fallthru
          _
        // Predicated region
        $region29: #{encoder_forward.2} parent=11 // pred_check
          %p439 = pneg %p195
        $region30: #{encoder_forward.2} parent=11 // pred_check_branch
          %441 = sbr.rel (%p439) target = $region32
        $region31: #{encoder_forward.2} parent=11 // pred_region
          _
        $region32: #{encoder_forward.2} parent=11 // pred_fallthru
          _
        // Predicated region
        $region33: #{encoder_forward.2} parent=11 // pred_check
          %p442 = pneg %p216
        $region34: #{encoder_forward.2} parent=11 // pred_check_branch
          %444 = sbr.rel (%p442) target = $region36
        $region35: #{encoder_forward.2} parent=11 // pred_region
          _
        $region36: #{encoder_forward.2} parent=11 // pred_fallthru
          _
        // Predicated region
        $region37: #{encoder_forward.2} parent=11 // pred_check
          %p445 = pneg %p237
        $region38: #{encoder_forward.2} parent=11 // pred_check_branch
          %447 = sbr.rel (%p445) target = $region40
        $region39: #{encoder_forward.2} parent=11 // pred_region
          _
        $region40: #{encoder_forward.2} parent=11 // pred_fallthru
          _
        // Predicated region
        $region41: #{encoder_forward.2} parent=11 // pred_check
          %p448 = pneg %p258
        $region42: #{encoder_forward.2} parent=11 // pred_check_branch
          %450 = sbr.rel (%p448) target = $region44
        $region43: #{encoder_forward.2} parent=11 // pred_region
          %s452 = ssub.s32 16, 16
          %453 = vsyncadd [#allocation4], %s452
          %s455 = sshll.u32 [#allocation3], 4
          %s456 = int_to_ptr.vmem [resolvable:$true] %s455
          %458 = dma.hbm_to_vmem [thread:$0]  %s9, 16, %s456, [#allocation4]
        $region44: #{encoder_forward.2} parent=11 // pred_fallthru
          _
        // Predicated region
        $region45: #{encoder_forward.2} parent=11 // pred_check
          %p459 = pneg %p279
        $region46: #{encoder_forward.2} parent=11 // pred_check_branch
          %461 = sbr.rel (%p459) target = $region48
        $region47: #{encoder_forward.2} parent=11 // pred_region
          _
        $region48: #{encoder_forward.2} parent=11 // pred_fallthru
          _
        // Predicated region
        $region49: #{encoder_forward.2} parent=11 // pred_check
          %p462 = pneg %p300
        $region50: #{encoder_forward.2} parent=11 // pred_check_branch
          %464 = sbr.rel (%p462) target = $region52
        $region51: #{encoder_forward.2} parent=11 // pred_region
          %s466 = ssub.s32 16, 16
          %467 = vsyncadd [#allocation6], %s466
          %s469 = sshll.u32 [#allocation5], 4
          %s470 = int_to_ptr.vmem [resolvable:$true] %s469
          %472 = dma.hbm_to_vmem [thread:$0]  %s11, 16, %s470, [#allocation6]
        $region52: #{encoder_forward.2} parent=11 // pred_fallthru
          _
        // Predicated region
        $region53: #{encoder_forward.2} parent=11 // pred_check
          %p473 = pneg %p321
        $region54: #{encoder_forward.2} parent=11 // pred_check_branch
          %475 = sbr.rel (%p473) target = $region56
        $region55: #{encoder_forward.2} parent=11 // pred_region
          _
        $region56: #{encoder_forward.2} parent=11 // pred_fallthru
          _
        // Predicated region
        $region57: #{encoder_forward.2} parent=11 // pred_check
          %p476 = pneg %p342
        $region58: #{encoder_forward.2} parent=11 // pred_check_branch
          %478 = sbr.rel (%p476) target = $region60
        $region59: #{encoder_forward.2} parent=11 // pred_region
          %s480 = ssub.s32 16, 16
          %481 = vsyncadd [#allocation6], %s480
          %s483 = sshll.u32 [#allocation7], 4
          %s484 = int_to_ptr.vmem [resolvable:$true] %s483
          %486 = dma.hbm_to_vmem [thread:$0]  %s13, 16, %s484, [#allocation6]
        $region60: #{encoder_forward.2} parent=11 // pred_fallthru
          _
        // Predicated region
        $region61: #{encoder_forward.2} parent=11 // pred_check
          %p487 = pneg %p363
        $region62: #{encoder_forward.2} parent=11 // pred_check_branch
          %489 = sbr.rel (%p487) target = $region64
        $region63: #{encoder_forward.2} parent=11 // pred_region
          _
        $region64: #{encoder_forward.2} parent=11 // pred_fallthru
          _
        // Predicated region
        $region65: #{encoder_forward.2} parent=11 // pred_check
          %p490 = pneg %p384
        $region66: #{encoder_forward.2} parent=11 // pred_check_branch
          %492 = sbr.rel (%p490) target = $region68
        $region67: #{encoder_forward.2} parent=11 // pred_region
          _
        $region68: #{encoder_forward.2} parent=11 // pred_fallthru
          _
      $region12: #{encoder_forward.2} parent=5 // pred_fallthru
        _
      %p493 = scmp.lt.s32.totalorder %s24, 2
      // Predicated region
      $region69: #{encoder_forward.2} parent=5 // pred_check
        %p494 = pneg %p493
      $region70: #{encoder_forward.2} parent=5 // pred_check_branch
        %496 = sbr.rel (%p494) target = $region72
      $region71: #{encoder_forward.2} parent=5 // pred_region
        // Predicated region
        $region73: #{encoder_forward.2} parent=71 // pred_check
          %p497 = pneg %p56
        $region74: #{encoder_forward.2} parent=71 // pred_check_branch
          %499 = sbr.rel (%p497) target = $region76
        $region75: #{encoder_forward.2} parent=71 // pred_region
          %p500 = scmp.lt.s32.totalorder %s31, 1
          %s501 = scalar_select %p500, %s31, 1
          %s502 = smul.addr %s501, 4
          %s503 = scalar_lea.vmem %s0, %s502
        $region76: #{encoder_forward.2} parent=71 // pred_fallthru
          _
        // Predicated region
        $region77: #{encoder_forward.2} parent=71 // pred_check
          %p504 = pneg %p84
        $region78: #{encoder_forward.2} parent=71 // pred_check_branch
          %506 = sbr.rel (%p504) target = $region80
        $region79: #{encoder_forward.2} parent=71 // pred_region
          %p507 = scmp.lt.s32.totalorder %s31, 1
          %s508 = scalar_select %p507, %s31, 1
          %p509 = scmp.lt.s32.totalorder %s32, 0
          %s510 = scalar_select %p509, %s32, 0
          %s511 = sadd.s32 %s510, %s508
          %s512 = smul.addr %s511, 2
          %s513 = scalar_lea.vmem %s1, %s512
        $region80: #{encoder_forward.2} parent=71 // pred_fallthru
          _
      $region72: #{encoder_forward.2} parent=5 // pred_fallthru
        _
      %p514 = scmp.le.s32.totalorder 1, %s24
      %p515 = scmp.lt.s32.totalorder %s24, 3
      %p516 = pnand %p514, %p515
      %p517 = pneg %p516
      // Predicated region
      $region81: #{encoder_forward.2} parent=5 // pred_check
        _
      $region82: #{encoder_forward.2} parent=5 // pred_check_branch
        %519 = sbr.rel (%p516) target = $region84
      $region83: #{encoder_forward.2} parent=5 // pred_region
        %s520 = ssub.s32 %s24, 1
        // Predicated region
        $region85: #{encoder_forward.2} parent=83 // pred_check
          %p521 = pneg %p258
        $region86: #{encoder_forward.2} parent=83 // pred_check_branch
          %523 = sbr.rel (%p521) target = $region88
        $region87: #{encoder_forward.2} parent=83 // pred_region
          %524 = dma.done [#allocation4], 16
        $region88: #{encoder_forward.2} parent=83 // pred_fallthru
          _
        // Predicated region
        $region89: #{encoder_forward.2} parent=83 // pred_check
          %p525 = pneg %p300
        $region90: #{encoder_forward.2} parent=83 // pred_check_branch
          %527 = sbr.rel (%p525) target = $region92
        $region91: #{encoder_forward.2} parent=83 // pred_region
          %528 = dma.done [#allocation6], 16
        $region92: #{encoder_forward.2} parent=83 // pred_fallthru
          _
        // Predicated region
        $region93: #{encoder_forward.2} parent=83 // pred_check
          %p529 = pneg %p342
        $region94: #{encoder_forward.2} parent=83 // pred_check_branch
          %531 = sbr.rel (%p529) target = $region96
        $region95: #{encoder_forward.2} parent=83 // pred_region
          %532 = dma.done [#allocation6], 16
        $region96: #{encoder_forward.2} parent=83 // pred_fallthru
          _
        %p533 = scmp.lt.s32.totalorder %s33, 1
        %s534 = scalar_select %p533, %s33, 1
        %s535 = smul.addr %s534, 4
        %s536 = scalar_lea.vmem %s0, %s535
        %p537 = pneg %p62
        %p538 = pneg %p59
        %p539 = scmp.lt.s32.totalorder %s33, 1
        %s540 = scalar_select %p539, %s33, 1
        %p541 = scmp.lt.s32.totalorder %s34, 0
        %s542 = scalar_select %p541, %s34, 0
        %s543 = sadd.s32 %s542, %s540
        %s544 = smul.addr %s543, 2
        %s545 = scalar_lea.vmem %s1, %s544
        %p546 = pneg %p90
        %p547 = pneg %p87
        %p548 = pneg %p111
        %p549 = pneg %p108
        %p550 = pneg %p132
        %p551 = pneg %p129
        %p552 = pneg %p153
        %p553 = pneg %p150
        %p554 = pneg %p174
        %p555 = pneg %p171
        %p556 = pneg %p195
        %p557 = pneg %p192
        %p558 = pneg %p216
        %p559 = pneg %p213
        %p560 = pneg %p237
        %p561 = pneg %p234
        %p562 = pneg %p258
        %p563 = pneg %p255
        %p564 = pneg %p279
        %p565 = pneg %p276
        %p566 = pneg %p300
        %p567 = pneg %p297
        %p568 = pneg %p321
        %p569 = pneg %p318
        %p570 = pneg %p342
        %p571 = pneg %p339
        %p572 = pneg %p363
        %p573 = pneg %p360
        %p574 = pneg %p384
        %p575 = pneg %p381
        %p576 = pneg %p412
        %p577 = pneg %p409
        %p578 = scmp.lt.s32.totalorder %s33, 1
        %s579 = scalar_select %p578, %s33, 1
        %p580 = scmp.lt.s32.totalorder %s34, 0
        %s581 = scalar_select %p580, %s34, 0
        %s582 = sadd.s32 %s581, %s579
        %s583 = smul.addr %s582, 4
        %s584 = scalar_lea.vmem %s16, %s583
        %p585 = scmp.lt.s32.totalorder %s33, 1
        %s586 = scalar_select %p585, %s33, 1
        %s587 = smul.addr %s586, 4
        %s588 = scalar_lea.vmem %s0, %s587
        %p589 = scmp.lt.s32.totalorder %s33, 1
        %s590 = scalar_select %p589, %s33, 1
        %p591 = scmp.lt.s32.totalorder %s34, 0
        %s592 = scalar_select %p591, %s34, 0
        %s593 = sadd.s32 %s592, %s590
        %s594 = smul.addr %s593, 2
        %s595 = scalar_lea.vmem %s1, %s594
        %p596 = scmp.lt.s32.totalorder %s33, 1
        %s597 = scalar_select %p596, %s33, 1
        %p598 = scmp.lt.s32.totalorder %s34, 0
        %s599 = scalar_select %p598, %s34, 0
        %s600 = sadd.s32 %s599, %s597
        %s601 = smul.addr %s600, 4
        %s602 = scalar_lea.vmem %s16, %s601
        %p604 = scmp.eq.s32.totalorder %s34, 0
        // Predicated region
        $region97: #{encoder_forward.2} parent=83 // pred_check
          %p605 = pneg %p604
        $region98: #{encoder_forward.2} parent=83 // pred_check_branch
          %607 = sbr.rel (%p605) target = $region100
        $region99: #{encoder_forward.2} parent=83 // pred_region
          %v608 = vld [vmem:[%s588] sm:$0xf]
          %v609 = vld [vmem:[%s4] sm:$0xf]
          %v610 = vld [vmem:[%s4 + $0x4] sm:$0xf]
          %v611 = vld [vmem:[%s4 + $0x8] sm:$0xf]
          %v612 = vld [vmem:[%s4 + $0xc] sm:$0xf]
          %v613 = vld [vmem:[%s5] sm:$0x1]
          %v615 = vlaneseq
          %v616 = vshrl.u32 %v615, 7
          %v617 = vsub.s32 0, %v616
          %v618 = vrot.slane %v613, %v617
          %v624 = vunpack.c.l.b16 %v609
          %v625 = vunpack.c.l.b16 %v610
          %v626 = vunpack.c.l.b16 %v611
          %v627 = vunpack.c.l.b16 %v612
          %v628 = vpack.c.b16 %v625, %v624
          %v629 = vpack.c.b16 %v627, %v626
          %vm632 = vcmask 261120
          %v634 = vsel %vm632, %v608, 0
          %636 = vmatprep.subr.bf16.mxu0 0
          %637 = vmatpush1.bf16.msra.mxu0 %v628
          %638 = vmatprep.subr.bf16.mxu0 0
          %639 = vmatpush1.bf16.msra.mxu0 %v629
          %640 = vmatprep.subr.bf16.mxu0 0
          %641 = vmatpush1.bf16.msra.mxu0 0
          %642 = vmatprep.subr.bf16.mxu0 0
          %643 = vmatpush1.bf16.msra.mxu0 0
          %644 = vmatprep.subr.bf16.mxu0 0
          %645 = vmatpush1.bf16.msra.mxu0 0
          %646 = vmatprep.subr.bf16.mxu0 0
          %647 = vmatpush1.bf16.msra.mxu0 0
          %648 = vmatprep.subr.bf16.mxu0 0
          %649 = vmatpush1.bf16.msra.mxu0 0
          %650 = vmatprep.subr.bf16.mxu0 0
          %651 = vmatpush1.bf16.msra.mxu0 0
          %652 = vmatprep.subr.bf16.mxu0 0
          %653 = vmatpush1.bf16.msra.mxu0 0
          %654 = vmatprep.subr.bf16.mxu0 0
          %655 = vmatpush1.bf16.msra.mxu0 0
          %656 = vmatprep.subr.bf16.mxu0 0
          %657 = vmatpush1.bf16.msra.mxu0 0
          %658 = vmatprep.subr.bf16.mxu0 0
          %659 = vmatpush1.bf16.msra.mxu0 0
          %660 = vmatprep.subr.bf16.mxu0 0
          %661 = vmatpush1.bf16.msra.mxu0 0
          %662 = vmatprep.subr.bf16.mxu0 0
          %663 = vmatpush1.bf16.msra.mxu0 0
          %664 = vmatprep.subr.bf16.mxu0 0
          %665 = vmatpush1.bf16.msra.mxu0 0
          %666 = vmatprep.subr.bf16.mxu0 0
          %667 = vmatpush1.bf16.msra.mxu0 0
          %668 = vmatprep.mubr.bf16.mxu0 0
          %669 = vmatmul.mubr.bf16.gmra.mrb[0].mxu0 %v634
          %v670 = vpop.f32.mrb[0].mxu0
          %v671 = vadd.f32 %v618, %v670
          %v672 = vpop.f32.mrb[0].mxu0
          %v673 = vpop.f32.mrb[0].mxu0
          %v674 = vpop.f32.mrb[0].mxu0
          %675 = vdwg.mxu0
          %v676 = vpack.c.bf16 %v671, %v671
          %vm677 = vcmask 257024
          %678 = vst.msk [vmem:[#allocation2] sm:$0xf] %vm677, %v676
          %v680 = vunpack.c.l.b16 %v676
          %v681 = vpack.c.b16 %v680, %v680
          %682 = vrot.lane.b32.xlu0 %v681, 96
          %v683 = vpop.permute.xlu0 %682
          %s685 = scalar_lea.vmem [#allocation2], 4
          %686 = vst.msk [vmem:[%s685] sm:$0xf] %vm677, %v683
        $region100: #{encoder_forward.2} parent=83 // pred_fallthru
          _
        %s687 = smul.u32 %s34, 8
        %s688 = sshra.s32 %s687, 3
        %s689 = sand.u32 %s687, 7
        %s690 = smul.addr %s688, 4
        %s691 = scalar_lea.vmem %s588, %s690
        %v692 = vld [vmem:[%s691] sm:$0xf]
        %v693 = vunpack.c.l.bf16 %v692
        %v694 = vld [vmem:[%s595] sm:$0x3]
        %v695 = vunpack.c.0.s8 %v694
        %vm696 = vcmp.eq.s32.totalorder %v695, 0
        %v697 = vld [vmem:[%s2] sm:$0xf]
        %v698 = vld [vmem:[%s2 + $0x4] sm:$0xf]
        %v699 = vld [vmem:[%s2 + $0x8] sm:$0xf]
        %v700 = vld [vmem:[%s2 + $0xc] sm:$0xf]
        %v701 = vld [vmem:[%s3] sm:$0x1]
        %v703 = vlaneseq
        %v704 = vshrl.u32 %v703, 7
        %v705 = vsub.s32 0, %v704
        %v706 = vrot.slane %v701, %v705
        %v712 = vunpack.c.l.b16 %v697
        %v713 = vunpack.c.l.b16 %v698
        %v714 = vunpack.c.l.b16 %v699
        %v715 = vunpack.c.l.b16 %v700
        %v716 = vpack.c.b16 %v713, %v712
        %v717 = vpack.c.b16 %v715, %v714
        %vm720 = vcmask 261120
        %v722 = vsel %vm720, %v692, 0
        %724 = vmatprep.subr.bf16.mxu0 0
        %725 = vmatpush1.bf16.msra.mxu0 %v716
        %726 = vmatprep.subr.bf16.mxu0 0
        %727 = vmatpush1.bf16.msra.mxu0 %v717
        %728 = vmatprep.subr.bf16.mxu0 0
        %729 = vmatpush1.bf16.msra.mxu0 0
        %730 = vmatprep.subr.bf16.mxu0 0
        %731 = vmatpush1.bf16.msra.mxu0 0
        %732 = vmatprep.subr.bf16.mxu0 0
        %733 = vmatpush1.bf16.msra.mxu0 0
        %734 = vmatprep.subr.bf16.mxu0 0
        %735 = vmatpush1.bf16.msra.mxu0 0
        %736 = vmatprep.subr.bf16.mxu0 0
        %737 = vmatpush1.bf16.msra.mxu0 0
        %738 = vmatprep.subr.bf16.mxu0 0
        %739 = vmatpush1.bf16.msra.mxu0 0
        %740 = vmatprep.subr.bf16.mxu0 0
        %741 = vmatpush1.bf16.msra.mxu0 0
        %742 = vmatprep.subr.bf16.mxu0 0
        %743 = vmatpush1.bf16.msra.mxu0 0
        %744 = vmatprep.subr.bf16.mxu0 0
        %745 = vmatpush1.bf16.msra.mxu0 0
        %746 = vmatprep.subr.bf16.mxu0 0
        %747 = vmatpush1.bf16.msra.mxu0 0
        %748 = vmatprep.subr.bf16.mxu0 0
        %749 = vmatpush1.bf16.msra.mxu0 0
        %750 = vmatprep.subr.bf16.mxu0 0
        %751 = vmatpush1.bf16.msra.mxu0 0
        %752 = vmatprep.subr.bf16.mxu0 0
        %753 = vmatpush1.bf16.msra.mxu0 0
        %754 = vmatprep.subr.bf16.mxu0 0
        %755 = vmatpush1.bf16.msra.mxu0 0
        %756 = vmatprep.mubr.bf16.mxu0 0
        %757 = vmatmul.mubr.bf16.gmra.mrb[0].mxu0 %v722
        %v758 = vpop.f32.mrb[0].mxu0
        %v759 = vadd.f32 %v706, %v758
        %v760 = vpop.f32.mrb[0].mxu0
        %v761 = vpop.f32.mrb[0].mxu0
        %v762 = vpop.f32.mrb[0].mxu0
        %763 = vdwg.mxu0
        %v764 = vmul.f32 %v759, 0.35355338
        %v765 = vld [vmem:[#allocation2] sm:$0xf]
        %s766 = scalar_lea.vmem [#allocation2], 4
        %v767 = vld [vmem:[%s766] sm:$0xf]
        %v768 = vpack.c.bf16 %v764, %v764
        %vm769 = vcmask 64512
        %v771 = vsel %vm769, %v768, 0
        %v774 = vsel %vm769, %v765, 0
        %776 = vmatprep.subr.bf16.mxu0 0
        %777 = vmatpush1.bf16.xpose.msra.mxu0 %v774
        %778 = vmatprep.subr.bf16.mxu0 0
        %779 = vmatpush1.bf16.xpose.msra.mxu0 0
        %780 = vmatprep.subr.bf16.mxu0 0
        %781 = vmatpush1.bf16.xpose.msra.mxu0 0
        %782 = vmatprep.subr.bf16.mxu0 0
        %783 = vmatpush1.bf16.xpose.msra.mxu0 0
        %784 = vmatprep.subr.bf16.mxu0 0
        %785 = vmatpush1.bf16.xpose.msra.mxu0 0
        %786 = vmatprep.subr.bf16.mxu0 0
        %787 = vmatpush1.bf16.xpose.msra.mxu0 0
        %788 = vmatprep.subr.bf16.mxu0 0
        %789 = vmatpush1.bf16.xpose.msra.mxu0 0
        %790 = vmatprep.subr.bf16.mxu0 0
        %791 = vmatpush1.bf16.xpose.msra.mxu0 0
        %792 = vmatprep.subr.bf16.mxu0 0
        %793 = vmatpush1.bf16.xpose.msra.mxu0 0
        %794 = vmatprep.subr.bf16.mxu0 0
        %795 = vmatpush1.bf16.xpose.msra.mxu0 0
        %796 = vmatprep.subr.bf16.mxu0 0
        %797 = vmatpush1.bf16.xpose.msra.mxu0 0
        %798 = vmatprep.subr.bf16.mxu0 0
        %799 = vmatpush1.bf16.xpose.msra.mxu0 0
        %800 = vmatprep.subr.bf16.mxu0 0
        %801 = vmatpush1.bf16.xpose.msra.mxu0 0
        %802 = vmatprep.subr.bf16.mxu0 0
        %803 = vmatpush1.bf16.xpose.msra.mxu0 0
        %804 = vmatprep.subr.bf16.mxu0 0
        %805 = vmatpush1.bf16.xpose.msra.mxu0 0
        %806 = vmatprep.subr.bf16.mxu0 0
        %807 = vmatpush1.bf16.xpose.msra.mxu0 0
        %808 = vmatprep.mubr.bf16.mxu0 0
        %809 = vmatmul.mubr.bf16.gmra.mrb[0].mxu0 %v771
        %v810 = vpop.f32.mrb[0].mxu0
        %v811 = vadd.f32 0.0, %v810
        %v812 = vpop.f32.mrb[0].mxu0
        %v813 = vpop.f32.mrb[0].mxu0
        %v814 = vpop.f32.mrb[0].mxu0
        %815 = vdwg.mxu0
        %v816 = vsel %vm696, -10000.0, %v811
        %v817 = vsel %vm769, %v816, -inf
        %818 = vmax.xlane.f32.xlu0 %v817
        %v819 = vpop.xlane.xlu0 %818
        %v820 = vsub.f32 %v816, %v819
        %v821 = vmul.f32 %v820, 1.442695
        %v822 = vpow.pop %v821
        %v823 = vsel %vm769, %v822, 0.0
        %824 = vadd.xlane.f32.xlu0 %v823
        %v825 = vpop.xlane.xlu0 %824
        %v826 = vrcp.pop %v825
        %v827 = vmul.f32 %v822, %v826
        %v828 = vpack.c.bf16 %v827, %v827
        %v830 = vsel %vm769, %v828, 0
        %vm832 = vcmask 1043456
        %v834 = vsel %vm832, %v767, 0
        %836 = vmatprep.subr.bf16.mxu0 0
        %837 = vmatpush1.bf16.msra.mxu0 %v834
        %838 = vmatprep.subr.bf16.mxu0 0
        %839 = vmatpush1.bf16.msra.mxu0 0
        %840 = vmatprep.subr.bf16.mxu0 0
        %841 = vmatpush1.bf16.msra.mxu0 0
        %842 = vmatprep.subr.bf16.mxu0 0
        %843 = vmatpush1.bf16.msra.mxu0 0
        %844 = vmatprep.subr.bf16.mxu0 0
        %845 = vmatpush1.bf16.msra.mxu0 0
        %846 = vmatprep.subr.bf16.mxu0 0
        %847 = vmatpush1.bf16.msra.mxu0 0
        %848 = vmatprep.subr.bf16.mxu0 0
        %849 = vmatpush1.bf16.msra.mxu0 0
        %850 = vmatprep.subr.bf16.mxu0 0
        %851 = vmatpush1.bf16.msra.mxu0 0
        %852 = vmatprep.subr.bf16.mxu0 0
        %853 = vmatpush1.bf16.msra.mxu0 0
        %854 = vmatprep.subr.bf16.mxu0 0
        %855 = vmatpush1.bf16.msra.mxu0 0
        %856 = vmatprep.subr.bf16.mxu0 0
        %857 = vmatpush1.bf16.msra.mxu0 0
        %858 = vmatprep.subr.bf16.mxu0 0
        %859 = vmatpush1.bf16.msra.mxu0 0
        %860 = vmatprep.subr.bf16.mxu0 0
        %861 = vmatpush1.bf16.msra.mxu0 0
        %862 = vmatprep.subr.bf16.mxu0 0
        %863 = vmatpush1.bf16.msra.mxu0 0
        %864 = vmatprep.subr.bf16.mxu0 0
        %865 = vmatpush1.bf16.msra.mxu0 0
        %866 = vmatprep.subr.bf16.mxu0 0
        %867 = vmatpush1.bf16.msra.mxu0 0
        %868 = vmatprep.mubr.bf16.mxu0 0
        %869 = vmatmul.mubr.bf16.gmra.mrb[0].mxu0 %v830
        %v870 = vpop.f32.mrb[0].mxu0
        %v871 = vadd.f32 0.0, %v870
        %v872 = vpop.f32.mrb[0].mxu0
        %v873 = vpop.f32.mrb[0].mxu0
        %v874 = vpop.f32.mrb[0].mxu0
        %875 = vdwg.mxu0
        %877 = vrot.lane.b32.xlu0 %v768, 120
        %v878 = vpop.permute.xlu0 %877
        %v880 = vunpack.c.l.b16 %v765
        %v881 = vpack.c.b16 %v880, %v880
        %882 = vrot.lane.b32.xlu0 %v881, 120
        %v883 = vpop.permute.xlu0 %882
        %v885 = vsel %vm769, %v878, 0
        %v888 = vsel %vm769, %v883, 0
        %890 = vmatprep.subr.bf16.mxu0 0
        %891 = vmatpush1.bf16.xpose.msra.mxu0 %v888
        %892 = vmatprep.subr.bf16.mxu0 0
        %893 = vmatpush1.bf16.xpose.msra.mxu0 0
        %894 = vmatprep.subr.bf16.mxu0 0
        %895 = vmatpush1.bf16.xpose.msra.mxu0 0
        %896 = vmatprep.subr.bf16.mxu0 0
        %897 = vmatpush1.bf16.xpose.msra.mxu0 0
        %898 = vmatprep.subr.bf16.mxu0 0
        %899 = vmatpush1.bf16.xpose.msra.mxu0 0
        %900 = vmatprep.subr.bf16.mxu0 0
        %901 = vmatpush1.bf16.xpose.msra.mxu0 0
        %902 = vmatprep.subr.bf16.mxu0 0
        %903 = vmatpush1.bf16.xpose.msra.mxu0 0
        %904 = vmatprep.subr.bf16.mxu0 0
        %905 = vmatpush1.bf16.xpose.msra.mxu0 0
        %906 = vmatprep.subr.bf16.mxu0 0
        %907 = vmatpush1.bf16.xpose.msra.mxu0 0
        %908 = vmatprep.subr.bf16.mxu0 0
        %909 = vmatpush1.bf16.xpose.msra.mxu0 0
        %910 = vmatprep.subr.bf16.mxu0 0
        %911 = vmatpush1.bf16.xpose.msra.mxu0 0
        %912 = vmatprep.subr.bf16.mxu0 0
        %913 = vmatpush1.bf16.xpose.msra.mxu0 0
        %914 = vmatprep.subr.bf16.mxu0 0
        %915 = vmatpush1.bf16.xpose.msra.mxu0 0
        %916 = vmatprep.subr.bf16.mxu0 0
        %917 = vmatpush1.bf16.xpose.msra.mxu0 0
        %918 = vmatprep.subr.bf16.mxu0 0
        %919 = vmatpush1.bf16.xpose.msra.mxu0 0
        %920 = vmatprep.subr.bf16.mxu0 0
        %921 = vmatpush1.bf16.xpose.msra.mxu0 0
        %922 = vmatprep.mubr.bf16.mxu0 0
        %923 = vmatmul.mubr.bf16.gmra.mrb[0].mxu0 %v885
        %v924 = vpop.f32.mrb[0].mxu0
        %v925 = vadd.f32 0.0, %v924
        %v926 = vpop.f32.mrb[0].mxu0
        %v927 = vpop.f32.mrb[0].mxu0
        %v928 = vpop.f32.mrb[0].mxu0
        %929 = vdwg.mxu0
        %v930 = vsel %vm696, -10000.0, %v925
        %v931 = vsel %vm769, %v930, -inf
        %932 = vmax.xlane.f32.xlu0 %v931
        %v933 = vpop.xlane.xlu0 %932
        %v934 = vsub.f32 %v930, %v933
        %v935 = vmul.f32 %v934, 1.442695
        %v936 = vpow.pop %v935
        %v937 = vsel %vm769, %v936, 0.0
        %938 = vadd.xlane.f32.xlu0 %v937
        %v939 = vpop.xlane.xlu0 %938
        %v940 = vrcp.pop %v939
        %v941 = vmul.f32 %v936, %v940
        %v942 = vpack.c.bf16 %v941, %v941
        %v944 = vunpack.c.l.b16 %v767
        %v945 = vpack.c.b16 %v944, %v944
        %946 = vrot.lane.b32.xlu0 %v945, 120
        %v947 = vpop.permute.xlu0 %946
        %v949 = vsel %vm769, %v942, 0
        %v952 = vsel %vm832, %v947, 0
        %954 = vmatprep.subr.bf16.mxu0 0
        %955 = vmatpush1.bf16.msra.mxu0 %v952
        %956 = vmatprep.subr.bf16.mxu0 0
        %957 = vmatpush1.bf16.msra.mxu0 0
        %958 = vmatprep.subr.bf16.mxu0 0
        %959 = vmatpush1.bf16.msra.mxu0 0
        %960 = vmatprep.subr.bf16.mxu0 0
        %961 = vmatpush1.bf16.msra.mxu0 0
        %962 = vmatprep.subr.bf16.mxu0 0
        %963 = vmatpush1.bf16.msra.mxu0 0
        %964 = vmatprep.subr.bf16.mxu0 0
        %965 = vmatpush1.bf16.msra.mxu0 0
        %966 = vmatprep.subr.bf16.mxu0 0
        %967 = vmatpush1.bf16.msra.mxu0 0
        %968 = vmatprep.subr.bf16.mxu0 0
        %969 = vmatpush1.bf16.msra.mxu0 0
        %970 = vmatprep.subr.bf16.mxu0 0
        %971 = vmatpush1.bf16.msra.mxu0 0
        %972 = vmatprep.subr.bf16.mxu0 0
        %973 = vmatpush1.bf16.msra.mxu0 0
        %974 = vmatprep.subr.bf16.mxu0 0
        %975 = vmatpush1.bf16.msra.mxu0 0
        %976 = vmatprep.subr.bf16.mxu0 0
        %977 = vmatpush1.bf16.msra.mxu0 0
        %978 = vmatprep.subr.bf16.mxu0 0
        %979 = vmatpush1.bf16.msra.mxu0 0
        %980 = vmatprep.subr.bf16.mxu0 0
        %981 = vmatpush1.bf16.msra.mxu0 0
        %982 = vmatprep.subr.bf16.mxu0 0
        %983 = vmatpush1.bf16.msra.mxu0 0
        %984 = vmatprep.subr.bf16.mxu0 0
        %985 = vmatpush1.bf16.msra.mxu0 0
        %986 = vmatprep.mubr.bf16.mxu0 0
        %987 = vmatmul.mubr.bf16.gmra.mrb[0].mxu0 %v949
        %v988 = vpop.f32.mrb[0].mxu0
        %v989 = vadd.f32 0.0, %v988
        %v990 = vpop.f32.mrb[0].mxu0
        %v991 = vpop.f32.mrb[0].mxu0
        %v992 = vpop.f32.mrb[0].mxu0
        %993 = vdwg.mxu0
        %994 = vrot.lane.b32.xlu0 %v768, 112
        %v995 = vpop.permute.xlu0 %994
        %996 = vrot.lane.b32.xlu0 %v881, 112
        %v997 = vpop.permute.xlu0 %996
        %v999 = vsel %vm769, %v995, 0
        %v1002 = vsel %vm769, %v997, 0
        %1004 = vmatprep.subr.bf16.mxu0 0
        %1005 = vmatpush1.bf16.xpose.msra.mxu0 %v1002
        %1006 = vmatprep.subr.bf16.mxu0 0
        %1007 = vmatpush1.bf16.xpose.msra.mxu0 0
        %1008 = vmatprep.subr.bf16.mxu0 0
        %1009 = vmatpush1.bf16.xpose.msra.mxu0 0
        %1010 = vmatprep.subr.bf16.mxu0 0
        %1011 = vmatpush1.bf16.xpose.msra.mxu0 0
        %1012 = vmatprep.subr.bf16.mxu0 0
        %1013 = vmatpush1.bf16.xpose.msra.mxu0 0
        %1014 = vmatprep.subr.bf16.mxu0 0
        %1015 = vmatpush1.bf16.xpose.msra.mxu0 0
        %1016 = vmatprep.subr.bf16.mxu0 0
        %1017 = vmatpush1.bf16.xpose.msra.mxu0 0
        %1018 = vmatprep.subr.bf16.mxu0 0
        %1019 = vmatpush1.bf16.xpose.msra.mxu0 0
        %1020 = vmatprep.subr.bf16.mxu0 0
        %1021 = vmatpush1.bf16.xpose.msra.mxu0 0
        %1022 = vmatprep.subr.bf16.mxu0 0
        %1023 = vmatpush1.bf16.xpose.msra.mxu0 0
        %1024 = vmatprep.subr.bf16.mxu0 0
        %1025 = vmatpush1.bf16.xpose.msra.mxu0 0
        %1026 = vmatprep.subr.bf16.mxu0 0
        %1027 = vmatpush1.bf16.xpose.msra.mxu0 0
        %1028 = vmatprep.subr.bf16.mxu0 0
        %1029 = vmatpush1.bf16.xpose.msra.mxu0 0
        %1030 = vmatprep.subr.bf16.mxu0 0
        %1031 = vmatpush1.bf16.xpose.msra.mxu0 0
        %1032 = vmatprep.subr.bf16.mxu0 0
        %1033 = vmatpush1.bf16.xpose.msra.mxu0 0
        %1034 = vmatprep.subr.bf16.mxu0 0
        %1035 = vmatpush1.bf16.xpose.msra.mxu0 0
        %1036 = vmatprep.mubr.bf16.mxu0 0
        %1037 = vmatmul.mubr.bf16.gmra.mrb[0].mxu0 %v999
        %v1038 = vpop.f32.mrb[0].mxu0
        %v1039 = vadd.f32 0.0, %v1038
        %v1040 = vpop.f32.mrb[0].mxu0
        %v1041 = vpop.f32.mrb[0].mxu0
        %v1042 = vpop.f32.mrb[0].mxu0
        %1043 = vdwg.mxu0
        %v1044 = vsel %vm696, -10000.0, %v1039
        %v1045 = vsel %vm769, %v1044, -inf
        %1046 = vmax.xlane.f32.xlu0 %v1045
        %v1047 = vpop.xlane.xlu0 %1046
        %v1048 = vsub.f32 %v1044, %v1047
        %v1049 = vmul.f32 %v1048, 1.442695
        %v1050 = vpow.pop %v1049
        %v1051 = vsel %vm769, %v1050, 0.0
        %1052 = vadd.xlane.f32.xlu0 %v1051
        %v1053 = vpop.xlane.xlu0 %1052
        %v1054 = vrcp.pop %v1053
        %v1055 = vmul.f32 %v1050, %v1054
        %v1056 = vpack.c.bf16 %v1055, %v1055
        %1057 = vrot.lane.b32.xlu0 %v945, 112
        %v1058 = vpop.permute.xlu0 %1057
        %v1060 = vsel %vm769, %v1056, 0
        %v1063 = vsel %vm832, %v1058, 0
        %1065 = vmatprep.subr.bf16.mxu0 0
        %1066 = vmatpush1.bf16.msra.mxu0 %v1063
        %1067 = vmatprep.subr.bf16.mxu0 0
        %1068 = vmatpush1.bf16.msra.mxu0 0
        %1069 = vmatprep.subr.bf16.mxu0 0
        %1070 = vmatpush1.bf16.msra.mxu0 0
        %1071 = vmatprep.subr.bf16.mxu0 0
        %1072 = vmatpush1.bf16.msra.mxu0 0
        %1073 = vmatprep.subr.bf16.mxu0 0
        %1074 = vmatpush1.bf16.msra.mxu0 0
        %1075 = vmatprep.subr.bf16.mxu0 0
        %1076 = vmatpush1.bf16.msra.mxu0 0
        %1077 = vmatprep.subr.bf16.mxu0 0
        %1078 = vmatpush1.bf16.msra.mxu0 0
        %1079 = vmatprep.subr.bf16.mxu0 0
        %1080 = vmatpush1.bf16.msra.mxu0 0
        %1081 = vmatprep.subr.bf16.mxu0 0
        %1082 = vmatpush1.bf16.msra.mxu0 0
        %1083 = vmatprep.subr.bf16.mxu0 0
        %1084 = vmatpush1.bf16.msra.mxu0 0
        %1085 = vmatprep.subr.bf16.mxu0 0
        %1086 = vmatpush1.bf16.msra.mxu0 0
        %1087 = vmatprep.subr.bf16.mxu0 0
        %1088 = vmatpush1.bf16.msra.mxu0 0
        %1089 = vmatprep.subr.bf16.mxu0 0
        %1090 = vmatpush1.bf16.msra.mxu0 0
        %1091 = vmatprep.subr.bf16.mxu0 0
        %1092 = vmatpush1.bf16.msra.mxu0 0
        %1093 = vmatprep.subr.bf16.mxu0 0
        %1094 = vmatpush1.bf16.msra.mxu0 0
        %1095 = vmatprep.subr.bf16.mxu0 0
        %1096 = vmatpush1.bf16.msra.mxu0 0
        %1097 = vmatprep.mubr.bf16.mxu0 0
        %1098 = vmatmul.mubr.bf16.gmra.mrb[0].mxu0 %v1060
        %v1099 = vpop.f32.mrb[0].mxu0
        %v1100 = vadd.f32 0.0, %v1099
        %v1101 = vpop.f32.mrb[0].mxu0
        %v1102 = vpop.f32.mrb[0].mxu0
        %v1103 = vpop.f32.mrb[0].mxu0
        %1104 = vdwg.mxu0
        %1105 = vrot.lane.b32.xlu0 %v768, 104
        %v1106 = vpop.permute.xlu0 %1105
        %1107 = vrot.lane.b32.xlu0 %v881, 104
        %v1108 = vpop.permute.xlu0 %1107
        %v1110 = vsel %vm769, %v1106, 0
        %v1113 = vsel %vm769, %v1108, 0
        %1115 = vmatprep.subr.bf16.mxu0 0
        %1116 = vmatpush1.bf16.xpose.msra.mxu0 %v1113
        %1117 = vmatprep.subr.bf16.mxu0 0
        %1118 = vmatpush1.bf16.xpose.msra.mxu0 0
        %1119 = vmatprep.subr.bf16.mxu0 0
        %1120 = vmatpush1.bf16.xpose.msra.mxu0 0
        %1121 = vmatprep.subr.bf16.mxu0 0
        %1122 = vmatpush1.bf16.xpose.msra.mxu0 0
        %1123 = vmatprep.subr.bf16.mxu0 0
        %1124 = vmatpush1.bf16.xpose.msra.mxu0 0
        %1125 = vmatprep.subr.bf16.mxu0 0
        %1126 = vmatpush1.bf16.xpose.msra.mxu0 0
        %1127 = vmatprep.subr.bf16.mxu0 0
        %1128 = vmatpush1.bf16.xpose.msra.mxu0 0
        %1129 = vmatprep.subr.bf16.mxu0 0
        %1130 = vmatpush1.bf16.xpose.msra.mxu0 0
        %1131 = vmatprep.subr.bf16.mxu0 0
        %1132 = vmatpush1.bf16.xpose.msra.mxu0 0
        %1133 = vmatprep.subr.bf16.mxu0 0
        %1134 = vmatpush1.bf16.xpose.msra.mxu0 0
        %1135 = vmatprep.subr.bf16.mxu0 0
        %1136 = vmatpush1.bf16.xpose.msra.mxu0 0
        %1137 = vmatprep.subr.bf16.mxu0 0
        %1138 = vmatpush1.bf16.xpose.msra.mxu0 0
        %1139 = vmatprep.subr.bf16.mxu0 0
        %1140 = vmatpush1.bf16.xpose.msra.mxu0 0
        %1141 = vmatprep.subr.bf16.mxu0 0
        %1142 = vmatpush1.bf16.xpose.msra.mxu0 0
        %1143 = vmatprep.subr.bf16.mxu0 0
        %1144 = vmatpush1.bf16.xpose.msra.mxu0 0
        %1145 = vmatprep.subr.bf16.mxu0 0
        %1146 = vmatpush1.bf16.xpose.msra.mxu0 0
        %1147 = vmatprep.mubr.bf16.mxu0 0
        %1148 = vmatmul.mubr.bf16.gmra.mrb[0].mxu0 %v1110
        %v1149 = vpop.f32.mrb[0].mxu0
        %v1150 = vadd.f32 0.0, %v1149
        %v1151 = vpop.f32.mrb[0].mxu0
        %v1152 = vpop.f32.mrb[0].mxu0
        %v1153 = vpop.f32.mrb[0].mxu0
        %1154 = vdwg.mxu0
        %v1155 = vsel %vm696, -10000.0, %v1150
        %v1156 = vsel %vm769, %v1155, -inf
        %1157 = vmax.xlane.f32.xlu0 %v1156
        %v1158 = vpop.xlane.xlu0 %1157
        %v1159 = vsub.f32 %v1155, %v1158
        %v1160 = vmul.f32 %v1159, 1.442695
        %v1161 = vpow.pop %v1160
        %v1162 = vsel %vm769, %v1161, 0.0
        %1163 = vadd.xlane.f32.xlu0 %v1162
        %v1164 = vpop.xlane.xlu0 %1163
        %v1165 = vrcp.pop %v1164
        %v1166 = vmul.f32 %v1161, %v1165
        %v1167 = vpack.c.bf16 %v1166, %v1166
        %1168 = vrot.lane.b32.xlu0 %v945, 104
        %v1169 = vpop.permute.xlu0 %1168
        %v1171 = vsel %vm769, %v1167, 0
        %v1174 = vsel %vm832, %v1169, 0
        %1176 = vmatprep.subr.bf16.mxu0 0
        %1177 = vmatpush1.bf16.msra.mxu0 %v1174
        %1178 = vmatprep.subr.bf16.mxu0 0
        %1179 = vmatpush1.bf16.msra.mxu0 0
        %1180 = vmatprep.subr.bf16.mxu0 0
        %1181 = vmatpush1.bf16.msra.mxu0 0
        %1182 = vmatprep.subr.bf16.mxu0 0
        %1183 = vmatpush1.bf16.msra.mxu0 0
        %1184 = vmatprep.subr.bf16.mxu0 0
        %1185 = vmatpush1.bf16.msra.mxu0 0
        %1186 = vmatprep.subr.bf16.mxu0 0
        %1187 = vmatpush1.bf16.msra.mxu0 0
        %1188 = vmatprep.subr.bf16.mxu0 0
        %1189 = vmatpush1.bf16.msra.mxu0 0
        %1190 = vmatprep.subr.bf16.mxu0 0
        %1191 = vmatpush1.bf16.msra.mxu0 0
        %1192 = vmatprep.subr.bf16.mxu0 0
        %1193 = vmatpush1.bf16.msra.mxu0 0
        %1194 = vmatprep.subr.bf16.mxu0 0
        %1195 = vmatpush1.bf16.msra.mxu0 0
        %1196 = vmatprep.subr.bf16.mxu0 0
        %1197 = vmatpush1.bf16.msra.mxu0 0
        %1198 = vmatprep.subr.bf16.mxu0 0
        %1199 = vmatpush1.bf16.msra.mxu0 0
        %1200 = vmatprep.subr.bf16.mxu0 0
        %1201 = vmatpush1.bf16.msra.mxu0 0
        %1202 = vmatprep.subr.bf16.mxu0 0
        %1203 = vmatpush1.bf16.msra.mxu0 0
        %1204 = vmatprep.subr.bf16.mxu0 0
        %1205 = vmatpush1.bf16.msra.mxu0 0
        %1206 = vmatprep.subr.bf16.mxu0 0
        %1207 = vmatpush1.bf16.msra.mxu0 0
        %1208 = vmatprep.mubr.bf16.mxu0 0
        %1209 = vmatmul.mubr.bf16.gmra.mrb[0].mxu0 %v1171
        %v1210 = vpop.f32.mrb[0].mxu0
        %v1211 = vadd.f32 0.0, %v1210
        %v1212 = vpop.f32.mrb[0].mxu0
        %v1213 = vpop.f32.mrb[0].mxu0
        %v1214 = vpop.f32.mrb[0].mxu0
        %1215 = vdwg.mxu0
        %1217 = vrot.lane.b32.xlu0 %v989, 8
        %v1218 = vpop.permute.xlu0 %1217
        %1221 = vrot.lane.b32.xlu0 %v1100, 16
        %v1222 = vpop.permute.xlu0 %1221
        %1225 = vrot.lane.b32.xlu0 %v1211, 24
        %v1226 = vpop.permute.xlu0 %1225
        %v1228 = vsel %vm769, %v871, %v1218
        %vm1229 = vcmask 130048
        %v1230 = vsel %vm1229, %v1228, %v1222
        %vm1231 = vcmask 195584
        %v1232 = vsel %vm1231, %v1230, %v1226
        %v1233 = vpack.c.bf16 %v1232, %v1232
        %v1234 = vld [vmem:[%s6] sm:$0xf]
        %v1235 = vld [vmem:[%s6 + $0x4] sm:$0xf]
        %v1236 = vld [vmem:[%s6 + $0x8] sm:$0xf]
        %v1237 = vld [vmem:[%s6 + $0xc] sm:$0xf]
        %v1238 = vld [vmem:[%s7] sm:$0x1]
        %v1240 = vlaneseq
        %v1241 = vshrl.u32 %v1240, 7
        %v1242 = vsub.s32 0, %v1241
        %v1243 = vrot.slane %v1238, %v1242
        %v1249 = vunpack.c.l.b16 %v1234
        %v1250 = vunpack.c.l.b16 %v1235
        %v1251 = vunpack.c.l.b16 %v1236
        %v1252 = vunpack.c.l.b16 %v1237
        %v1253 = vpack.c.b16 %v1250, %v1249
        %v1254 = vpack.c.b16 %v1252, %v1251
        %v1258 = vsel %vm720, %v1233, 0
        %1260 = vmatprep.subr.bf16.mxu0 0
        %1261 = vmatpush1.bf16.msra.mxu0 %v1253
        %1262 = vmatprep.subr.bf16.mxu0 0
        %1263 = vmatpush1.bf16.msra.mxu0 %v1254
        %1264 = vmatprep.subr.bf16.mxu0 0
        %1265 = vmatpush1.bf16.msra.mxu0 0
        %1266 = vmatprep.subr.bf16.mxu0 0
        %1267 = vmatpush1.bf16.msra.mxu0 0
        %1268 = vmatprep.subr.bf16.mxu0 0
        %1269 = vmatpush1.bf16.msra.mxu0 0
        %1270 = vmatprep.subr.bf16.mxu0 0
        %1271 = vmatpush1.bf16.msra.mxu0 0
        %1272 = vmatprep.subr.bf16.mxu0 0
        %1273 = vmatpush1.bf16.msra.mxu0 0
        %1274 = vmatprep.subr.bf16.mxu0 0
        %1275 = vmatpush1.bf16.msra.mxu0 0
        %1276 = vmatprep.subr.bf16.mxu0 0
        %1277 = vmatpush1.bf16.msra.mxu0 0
        %1278 = vmatprep.subr.bf16.mxu0 0
        %1279 = vmatpush1.bf16.msra.mxu0 0
        %1280 = vmatprep.subr.bf16.mxu0 0
        %1281 = vmatpush1.bf16.msra.mxu0 0
        %1282 = vmatprep.subr.bf16.mxu0 0
        %1283 = vmatpush1.bf16.msra.mxu0 0
        %1284 = vmatprep.subr.bf16.mxu0 0
        %1285 = vmatpush1.bf16.msra.mxu0 0
        %1286 = vmatprep.subr.bf16.mxu0 0
        %1287 = vmatpush1.bf16.msra.mxu0 0
        %1288 = vmatprep.subr.bf16.mxu0 0
        %1289 = vmatpush1.bf16.msra.mxu0 0
        %1290 = vmatprep.subr.bf16.mxu0 0
        %1291 = vmatpush1.bf16.msra.mxu0 0
        %1292 = vmatprep.mubr.bf16.mxu0 0
        %1293 = vmatmul.mubr.bf16.gmra.mrb[0].mxu0 %v1258
        %v1294 = vpop.f32.mrb[0].mxu0
        %v1295 = vadd.f32 %v1243, %v1294
        %v1296 = vpop.f32.mrb[0].mxu0
        %v1297 = vpop.f32.mrb[0].mxu0
        %v1298 = vpop.f32.mrb[0].mxu0
        %1299 = vdwg.mxu0
        %v1300 = vadd.f32 %v1295, %v693
        %v1301 = vld [vmem:[%s8] sm:$0x1]
        %v1302 = vld [vmem:[#allocation3] sm:$0x1]
        %v1303 = vsel %vm720, %v1300, 0.0
        %1304 = vadd.xlane.f32.xlu0 %v1303
        %v1305 = vpop.xlane.xlu0 %1304
        %v1306 = vrcp.pop 32.0
        %v1307 = vmul.f32 %v1305, %v1306
        %v1308 = vsub.f32 %v1300, %v1307
        %v1309 = vmul.f32 %v1308, %v1308
        %v1310 = vsel %vm720, %v1309, 0.0
        %1311 = vadd.xlane.f32.xlu0 %v1310
        %v1312 = vpop.xlane.xlu0 %1311
        %v1313 = vmul.f32 %v1312, %v1306
        %v1314 = vadd.f32 %v1313, 1e-12
        %v1315 = vrsqrt.pop %v1314
        %v1316 = vmul.f32 %v1308, %v1315
        %v1318 = vlaneseq
        %v1319 = vshrl.u32 %v1318, 7
        %v1320 = vsub.s32 0, %v1319
        %v1321 = vrot.slane %v1301, %v1320
        %v1323 = vmul.f32 %v1316, %v1321
        %v1325 = vlaneseq
        %v1326 = vshrl.u32 %v1325, 7
        %v1327 = vsub.s32 0, %v1326
        %v1328 = vrot.slane %v1302, %v1327
        %v1330 = vadd.f32 %v1323, %v1328
        %v1331 = vpack.c.bf16 %v1330, %v1330
        %v1332 = vld [vmem:[%s10] sm:$0xf]
        %v1333 = vld [vmem:[%s10 + $0x4] sm:$0xf]
        %v1334 = vld [vmem:[%s10 + $0x8] sm:$0xf]
        %v1335 = vld [vmem:[%s10 + $0xc] sm:$0xf]
        %v1336 = vld [vmem:[#allocation5] sm:$0x1]
        %v1338 = vlaneseq
        %v1339 = vshrl.u32 %v1338, 7
        %v1340 = vsub.s32 0, %v1339
        %v1341 = vrot.slane %v1336, %v1340
        %v1347 = vunpack.c.l.b16 %v1332
        %v1348 = vunpack.c.l.b16 %v1333
        %v1349 = vunpack.c.l.b16 %v1334
        %v1350 = vunpack.c.l.b16 %v1335
        %v1351 = vpack.c.b16 %v1348, %v1347
        %v1352 = vpack.c.b16 %v1350, %v1349
        %v1356 = vsel %vm720, %v1331, 0
        %1358 = vmatprep.subr.bf16.mxu0 0
        %1359 = vmatpush1.bf16.msra.mxu0 %v1351
        %1360 = vmatprep.subr.bf16.mxu0 0
        %1361 = vmatpush1.bf16.msra.mxu0 %v1352
        %1362 = vmatprep.subr.bf16.mxu0 0
        %1363 = vmatpush1.bf16.msra.mxu0 0
        %1364 = vmatprep.subr.bf16.mxu0 0
        %1365 = vmatpush1.bf16.msra.mxu0 0
        %1366 = vmatprep.subr.bf16.mxu0 0
        %1367 = vmatpush1.bf16.msra.mxu0 0
        %1368 = vmatprep.subr.bf16.mxu0 0
        %1369 = vmatpush1.bf16.msra.mxu0 0
        %1370 = vmatprep.subr.bf16.mxu0 0
        %1371 = vmatpush1.bf16.msra.mxu0 0
        %1372 = vmatprep.subr.bf16.mxu0 0
        %1373 = vmatpush1.bf16.msra.mxu0 0
        %1374 = vmatprep.subr.bf16.mxu0 0
        %1375 = vmatpush1.bf16.msra.mxu0 0
        %1376 = vmatprep.subr.bf16.mxu0 0
        %1377 = vmatpush1.bf16.msra.mxu0 0
        %1378 = vmatprep.subr.bf16.mxu0 0
        %1379 = vmatpush1.bf16.msra.mxu0 0
        %1380 = vmatprep.subr.bf16.mxu0 0
        %1381 = vmatpush1.bf16.msra.mxu0 0
        %1382 = vmatprep.subr.bf16.mxu0 0
        %1383 = vmatpush1.bf16.msra.mxu0 0
        %1384 = vmatprep.subr.bf16.mxu0 0
        %1385 = vmatpush1.bf16.msra.mxu0 0
        %1386 = vmatprep.subr.bf16.mxu0 0
        %1387 = vmatpush1.bf16.msra.mxu0 0
        %1388 = vmatprep.subr.bf16.mxu0 0
        %1389 = vmatpush1.bf16.msra.mxu0 0
        %1390 = vmatprep.mubr.bf16.mxu0 0
        %1391 = vmatmul.mubr.bf16.gmra.mrb[0].mxu0 %v1356
        %v1392 = vpop.f32.mrb[0].mxu0
        %v1393 = vadd.f32 %v1341, %v1392
        %v1394 = vpop.f32.mrb[0].mxu0
        %v1395 = vpop.f32.mrb[0].mxu0
        %v1396 = vpop.f32.mrb[0].mxu0
        %1397 = vdwg.mxu0
        %v1398 = vmax.f32 %v1393, 0.0
        %v1399 = vpack.c.bf16 %v1398, %v1398
        %v1400 = vld [vmem:[%s12] sm:$0xf]
        %v1401 = vld [vmem:[%s12 + $0x4] sm:$0xf]
        %v1402 = vld [vmem:[%s12 + $0x8] sm:$0xf]
        %v1403 = vld [vmem:[%s12 + $0xc] sm:$0xf]
        %v1404 = vld [vmem:[%s12 + $0x10] sm:$0xf]
        %v1405 = vld [vmem:[%s12 + $0x14] sm:$0xf]
        %v1406 = vld [vmem:[%s12 + $0x18] sm:$0xf]
        %v1407 = vld [vmem:[%s12 + $0x1c] sm:$0xf]
        %v1408 = vld [vmem:[#allocation7] sm:$0x1]
        %v1410 = vlaneseq
        %v1411 = vshrl.u32 %v1410, 7
        %v1412 = vsub.s32 0, %v1411
        %v1413 = vrot.slane %v1408, %v1412
        %v1423 = vunpack.c.l.b16 %v1400
        %v1424 = vunpack.c.l.b16 %v1401
        %v1425 = vunpack.c.l.b16 %v1402
        %v1426 = vunpack.c.l.b16 %v1403
        %v1427 = vunpack.c.l.b16 %v1404
        %v1428 = vunpack.c.l.b16 %v1405
        %v1429 = vunpack.c.l.b16 %v1406
        %v1430 = vunpack.c.l.b16 %v1407
        %v1431 = vpack.c.b16 %v1424, %v1423
        %v1432 = vpack.c.b16 %v1426, %v1425
        %v1433 = vpack.c.b16 %v1428, %v1427
        %v1434 = vpack.c.b16 %v1430, %v1429
        %vm1439 = vcmask 523264
        %v1441 = vsel %vm1439, %v1399, 0
        %1443 = vmatprep.subr.bf16.mxu0 0
        %1444 = vmatpush1.bf16.msra.mxu0 %v1431
        %1445 = vmatprep.subr.bf16.mxu0 0
        %1446 = vmatpush1.bf16.msra.mxu0 %v1432
        %1447 = vmatprep.subr.bf16.mxu0 0
        %1448 = vmatpush1.bf16.msra.mxu0 %v1433
        %1449 = vmatprep.subr.bf16.mxu0 0
        %1450 = vmatpush1.bf16.msra.mxu0 %v1434
        %1451 = vmatprep.subr.bf16.mxu0 0
        %1452 = vmatpush1.bf16.msra.mxu0 0
        %1453 = vmatprep.subr.bf16.mxu0 0
        %1454 = vmatpush1.bf16.msra.mxu0 0
        %1455 = vmatprep.subr.bf16.mxu0 0
        %1456 = vmatpush1.bf16.msra.mxu0 0
        %1457 = vmatprep.subr.bf16.mxu0 0
        %1458 = vmatpush1.bf16.msra.mxu0 0
        %1459 = vmatprep.subr.bf16.mxu0 0
        %1460 = vmatpush1.bf16.msra.mxu0 0
        %1461 = vmatprep.subr.bf16.mxu0 0
        %1462 = vmatpush1.bf16.msra.mxu0 0
        %1463 = vmatprep.subr.bf16.mxu0 0
        %1464 = vmatpush1.bf16.msra.mxu0 0
        %1465 = vmatprep.subr.bf16.mxu0 0
        %1466 = vmatpush1.bf16.msra.mxu0 0
        %1467 = vmatprep.subr.bf16.mxu0 0
        %1468 = vmatpush1.bf16.msra.mxu0 0
        %1469 = vmatprep.subr.bf16.mxu0 0
        %1470 = vmatpush1.bf16.msra.mxu0 0
        %1471 = vmatprep.subr.bf16.mxu0 0
        %1472 = vmatpush1.bf16.msra.mxu0 0
        %1473 = vmatprep.subr.bf16.mxu0 0
        %1474 = vmatpush1.bf16.msra.mxu0 0
        %1475 = vmatprep.mubr.bf16.mxu0 0
        %1476 = vmatmul.mubr.bf16.gmra.mrb[0].mxu0 %v1441
        %v1477 = vpop.f32.mrb[0].mxu0
        %v1478 = vadd.f32 %v1413, %v1477
        %v1479 = vpop.f32.mrb[0].mxu0
        %v1480 = vpop.f32.mrb[0].mxu0
        %v1481 = vpop.f32.mrb[0].mxu0
        %1482 = vdwg.mxu0
        %v1483 = vadd.f32 %v1478, %v1330
        %v1484 = vld [vmem:[%s14] sm:$0x1]
        %v1485 = vld [vmem:[%s15] sm:$0x1]
        %v1486 = vsel %vm720, %v1483, 0.0
        %1487 = vadd.xlane.f32.xlu0 %v1486
        %v1488 = vpop.xlane.xlu0 %1487
        %v1489 = vmul.f32 %v1488, %v1306
        %v1490 = vsub.f32 %v1483, %v1489
        %v1491 = vmul.f32 %v1490, %v1490
        %v1492 = vsel %vm720, %v1491, 0.0
        %1493 = vadd.xlane.f32.xlu0 %v1492
        %v1494 = vpop.xlane.xlu0 %1493
        %v1495 = vmul.f32 %v1494, %v1306
        %v1496 = vadd.f32 %v1495, 1e-12
        %v1497 = vrsqrt.pop %v1496
        %v1498 = vmul.f32 %v1490, %v1497
        %v1500 = vlaneseq
        %v1501 = vshrl.u32 %v1500, 7
        %v1502 = vsub.s32 0, %v1501
        %v1503 = vrot.slane %v1484, %v1502
        %v1505 = vmul.f32 %v1498, %v1503
        %v1507 = vlaneseq
        %v1508 = vshrl.u32 %v1507, 7
        %v1509 = vsub.s32 0, %v1508
        %v1510 = vrot.slane %v1485, %v1509
        %v1512 = vadd.f32 %v1505, %v1510
        %v1513 = vpack.c.bf16 %v1512, %v1512
        %vm1514 = vcmask 257024
        %1515 = vst.msk [vmem:[%s602] sm:$0xf] %vm1514, %v1513
        %p1516 = scmp.lt.s32.totalorder %s33, 1
        %s1517 = scalar_select %p1516, %s33, 1
        %p1518 = scmp.lt.s32.totalorder %s34, 0
        %s1519 = scalar_select %p1518, %s34, 0
        %s1520 = sadd.s32 %s1519, %s1517
        %s1521 = smul.addr %s1520, 4
        %s1522 = scalar_lea.vmem %s16, %s1521
        // Predicated region
        $region101: #{encoder_forward.2} parent=83 // pred_check
          %p1523 = pneg %p409
        $region102: #{encoder_forward.2} parent=83 // pred_check_branch
          %1525 = sbr.rel (%p1523) target = $region104
        $region103: #{encoder_forward.2} parent=83 // pred_region
          _
        $region104: #{encoder_forward.2} parent=83 // pred_fallthru
          _
      $region84: #{encoder_forward.2} parent=5 // pred_fallthru
        _
      %p1526 = scmp.le.s32.totalorder 2, %s24
      // Predicated region
      $region105: #{encoder_forward.2} parent=5 // pred_check
        %p1527 = pneg %p1526
      $region106: #{encoder_forward.2} parent=5 // pred_check_branch
        %1529 = sbr.rel (%p1527) target = $region108
      $region107: #{encoder_forward.2} parent=5 // pred_region
        %s1530 = ssub.s32 %s24, 2
        // Predicated region
        $region109: #{encoder_forward.2} parent=107 // pred_check
          %p1531 = pneg %p415
        $region110: #{encoder_forward.2} parent=107 // pred_check_branch
          %1533 = sbr.rel (%p1531) target = $region112
        $region111: #{encoder_forward.2} parent=107 // pred_region
          %p1534 = scmp.lt.s32.totalorder %s35, 1
          %s1535 = scalar_select %p1534, %s35, 1
          %p1536 = scmp.lt.s32.totalorder %s36, 0
          %s1537 = scalar_select %p1536, %s36, 0
          %s1538 = sadd.s32 %s1537, %s1535
          %s1539 = smul.addr %s1538, 4
          %s1540 = scalar_lea.vmem %s16, %s1539
        $region112: #{encoder_forward.2} parent=107 // pred_fallthru
          _
      $region108: #{encoder_forward.2} parent=5 // pred_fallthru
        _
    $region6: #{encoder_forward.2} parent=1 // loop_footer
      %s28 = sadd.s32 1, %s24
    $region7: #{encoder_forward.2} parent=1 // loop_footer_branch
      %23 = sbr.rel target = $region3
    $region8: #{encoder_forward.2} parent=1 // loop_exit
      _
    %1541 = vsyncpa [#allocation4], 1
    %s1542 = scalar_lea.sflag [#allocation4], 1
    %1543 = vsyncpa %s1542, 1
    %1544 = vsyncpa [#allocation6], 1

// kernel: encoder_forward.3
$region0: #{encoder_forward.3}
  #allocation0 [shape = 'u32[]', space=smem, size = 0x4, offset = 0x4, fixed_abs, tag = 'smem constant byte address 0x4 - core index']
  #allocation1 [shape = 'u32[144,128]{1,0:T(1,128)}', space=vmem, size = 0x12000, scoped, tag = 'internal scratch']
  #allocation2 [shape = 'bf16[2,8,32]{2,1,0:T(8,128)(2,1)}', space=vmem, size = 0x1000, scoped, tag = 'scratch operand']
  %s0 = inlined_call_operand.vmem [shape: bf16[2,8,32], index: 0, kind: input, shape index: {}]
  %s1 = inlined_call_operand.vmem [shape: s8[2,8,8], index: 1, kind: input, shape index: {}]
  %s2 = inlined_call_operand.vmem [shape: bf16[32,32], index: 2, kind: input, shape index: {}]
  %s3 = inlined_call_operand.vmem [shape: f32[1,32], index: 3, kind: input, shape index: {}]
  %s4 = inlined_call_operand.vmem [shape: bf16[32,64], index: 4, kind: input, shape index: {}]
  %s5 = inlined_call_operand.vmem [shape: f32[1,64], index: 5, kind: input, shape index: {}]
  %s6 = inlined_call_operand.vmem [shape: bf16[32,32], index: 6, kind: input, shape index: {}]
  %s7 = inlined_call_operand.vmem [shape: f32[1,32], index: 7, kind: input, shape index: {}]
  %s8 = inlined_call_operand.vmem [shape: f32[1,32], index: 8, kind: input, shape index: {}]
  %s9 = inlined_call_operand.vmem [shape: f32[1,32], index: 9, kind: input, shape index: {}]
  %s10 = inlined_call_operand.vmem [shape: bf16[32,64], index: 10, kind: input, shape index: {}]
  %s11 = inlined_call_operand.vmem [shape: f32[1,64], index: 11, kind: input, shape index: {}]
  %s12 = inlined_call_operand.vmem [shape: bf16[64,32], index: 12, kind: input, shape index: {}]
  %s13 = inlined_call_operand.vmem [shape: f32[1,32], index: 13, kind: input, shape index: {}]
  %s14 = inlined_call_operand.vmem [shape: f32[1,32], index: 14, kind: input, shape index: {}]
  %s15 = inlined_call_operand.vmem [shape: f32[1,32], index: 15, kind: input, shape index: {}]
  %s16 = inlined_call_operand.vmem [shape: bf16[2,8,32], index: 16, kind: output, shape index: {}]
  %s17 = sld [smem:[#allocation0]]
  $region101: #{encoder_forward.3} parent=0
    _
  %s19 = ssub.s32 1, %s17
  %s20 = scalar_select 0, %s19, %s17
  loop: start=0, step=1, limit=4
  $region2: #{encoder_forward.3} parent=0 // loop_pre_header
    _
  $region3: #{encoder_forward.3} parent=0 // loop_header
    %s22 = sphi 0, %s26
    %p23 = scmp.ge.s32.totalorder %s22, 4
    %s29 = sphi 0, %s41
    %s30 = sphi 0, %s37
    %s31 = sphi 0, %s29
    %s32 = sphi 0, %s30
    %s33 = sphi 0, %s31
    %s34 = sphi 0, %s32
    %s44 = sphi 0, %s46
    %s47 = sphi 0, %s44
    %s48 = sphi 0, %s47
    %s64 = sphi 0, %s48
    %s72 = sphi 0, %s74
    %s75 = sphi 0, %s72
    %s76 = sphi 0, %s75
    %s92 = sphi 0, %s76
    %s96 = sphi 0, %s96
    %s98 = sphi 0, %s96
    %s99 = sphi 0, %s98
    %s113 = sphi 0, %s99
    %s117 = sphi 0, %s117
    %s119 = sphi 0, %s117
    %s120 = sphi 0, %s119
    %s134 = sphi 0, %s120
    %s138 = sphi 0, %s138
    %s140 = sphi 0, %s138
    %s141 = sphi 0, %s140
    %s155 = sphi 0, %s141
    %s159 = sphi 0, %s159
    %s161 = sphi 0, %s159
    %s162 = sphi 0, %s161
    %s176 = sphi 0, %s162
    %s180 = sphi 0, %s180
    %s182 = sphi 0, %s180
    %s183 = sphi 0, %s182
    %s197 = sphi 0, %s183
    %s201 = sphi 0, %s201
    %s203 = sphi 0, %s201
    %s204 = sphi 0, %s203
    %s218 = sphi 0, %s204
    %s222 = sphi 0, %s222
    %s224 = sphi 0, %s222
    %s225 = sphi 0, %s224
    %s239 = sphi 0, %s225
    %s243 = sphi 0, %s243
    %s245 = sphi 0, %s243
    %s246 = sphi 0, %s245
    %s260 = sphi 0, %s246
    %s264 = sphi 0, %s264
    %s266 = sphi 0, %s264
    %s267 = sphi 0, %s266
    %s281 = sphi 0, %s267
    %s285 = sphi 0, %s285
    %s287 = sphi 0, %s285
    %s288 = sphi 0, %s287
    %s302 = sphi 0, %s288
    %s306 = sphi 0, %s306
    %s308 = sphi 0, %s306
    %s309 = sphi 0, %s308
    %s323 = sphi 0, %s309
    %s327 = sphi 0, %s327
    %s329 = sphi 0, %s327
    %s330 = sphi 0, %s329
    %s344 = sphi 0, %s330
    %s348 = sphi 0, %s348
    %s350 = sphi 0, %s348
    %s351 = sphi 0, %s350
    %s365 = sphi 0, %s351
    %s369 = sphi 0, %s369
    %s371 = sphi 0, %s369
    %s372 = sphi 0, %s371
    %s386 = sphi 0, %s372
    %s394 = sphi 0, %s396
    %s397 = sphi 0, %s394
    %s398 = sphi 0, %s397
    %s414 = sphi 0, %s398
  $region4: #{encoder_forward.3} parent=0 // loop_header_branch
    %25 = sbr.rel (%p23) target = $region8
  $region5: #{encoder_forward.3} parent=0 // loop_body
    %s27 = ssub.s32 %s22, 1
    %s28 = ssub.s32 %s22, 2
    %s35 = sadd.s32 1, %s30
    %p36 = scmp.ge.s32.totalorder %s35, 1
    %s37 = scalar_select %p36, 0, %s35
    %s38 = sadd.s32 1, %s29
    %s39 = scalar_select %p36, %s38, %s29
    %p40 = scmp.ge.s32.totalorder %s39, 2
    %s41 = scalar_select %p40, 0, %s39
    %s42 = ssub.s32 %s29, %s41
    %p43 = scmp.eq.s32.totalorder %s42, 0
    %s45 = sadd.s32 %s44, 1
    %s46 = scalar_select %p43, %s44, %s45
    %p49 = pneg %p43
    %p50 = scmp.eq.s32.totalorder %s22, 1
    %p51 = por %p49, %p50
    %p52 = scmp.ne.s32.totalorder %s44, %s47
    %p53 = scmp.eq.s32.totalorder %s22, 0
    %p54 = por %p52, %p53
    %p55 = scmp.ne.s32.totalorder %s44, %s47
    %p56 = scmp.eq.s32.totalorder %s27, 1
    %p57 = por %p55, %p56
    %p58 = scmp.ne.s32.totalorder %s47, %s48
    %p59 = scmp.eq.s32.totalorder %s27, 0
    %p60 = por %p58, %p59
    %p61 = scmp.ne.s32.totalorder %s47, %s48
    %p62 = scmp.eq.s32.totalorder %s28, 1
    %p63 = por %p61, %p62
    %p65 = scmp.ne.s32.totalorder %s48, %s64
    %p66 = scmp.eq.s32.totalorder %s28, 0
    %p67 = por %p65, %p66
    %s68 = ssub.s32 %s29, %s41
    %s69 = ssub.s32 %s30, %s37
    %s70 = sor.u32 %s68, %s69
    %p71 = scmp.eq.s32.totalorder %s70, 0
    %s73 = sadd.s32 %s72, 1
    %s74 = scalar_select %p71, %s72, %s73
    %p77 = pneg %p71
    %p78 = scmp.eq.s32.totalorder %s22, 1
    %p79 = por %p77, %p78
    %p80 = scmp.ne.s32.totalorder %s72, %s75
    %p81 = scmp.eq.s32.totalorder %s22, 0
    %p82 = por %p80, %p81
    %p83 = scmp.ne.s32.totalorder %s72, %s75
    %p84 = scmp.eq.s32.totalorder %s27, 1
    %p85 = por %p83, %p84
    %p86 = scmp.ne.s32.totalorder %s75, %s76
    %p87 = scmp.eq.s32.totalorder %s27, 0
    %p88 = por %p86, %p87
    %p89 = scmp.ne.s32.totalorder %s75, %s76
    %p90 = scmp.eq.s32.totalorder %s28, 1
    %p91 = por %p89, %p90
    %p93 = scmp.ne.s32.totalorder %s76, %s92
    %p94 = scmp.eq.s32.totalorder %s28, 0
    %p95 = por %p93, %p94
    %s97 = sadd.s32 %s96, 1
    %p100 = scmp.eq.s32.totalorder %s22, 1
    %p101 = scmp.ne.s32.totalorder %s96, %s98
    %p102 = scmp.eq.s32.totalorder %s22, 0
    %p103 = por %p101, %p102
    %p104 = scmp.ne.s32.totalorder %s96, %s98
    %p105 = scmp.eq.s32.totalorder %s27, 1
    %p106 = por %p104, %p105
    %p107 = scmp.ne.s32.totalorder %s98, %s99
    %p108 = scmp.eq.s32.totalorder %s27, 0
    %p109 = por %p107, %p108
    %p110 = scmp.ne.s32.totalorder %s98, %s99
    %p111 = scmp.eq.s32.totalorder %s28, 1
    %p112 = por %p110, %p111
    %p114 = scmp.ne.s32.totalorder %s99, %s113
    %p115 = scmp.eq.s32.totalorder %s28, 0
    %p116 = por %p114, %p115
    %s118 = sadd.s32 %s117, 1
    %p121 = scmp.eq.s32.totalorder %s22, 1
    %p122 = scmp.ne.s32.totalorder %s117, %s119
    %p123 = scmp.eq.s32.totalorder %s22, 0
    %p124 = por %p122, %p123
    %p125 = scmp.ne.s32.totalorder %s117, %s119
    %p126 = scmp.eq.s32.totalorder %s27, 1
    %p127 = por %p125, %p126
    %p128 = scmp.ne.s32.totalorder %s119, %s120
    %p129 = scmp.eq.s32.totalorder %s27, 0
    %p130 = por %p128, %p129
    %p131 = scmp.ne.s32.totalorder %s119, %s120
    %p132 = scmp.eq.s32.totalorder %s28, 1
    %p133 = por %p131, %p132
    %p135 = scmp.ne.s32.totalorder %s120, %s134
    %p136 = scmp.eq.s32.totalorder %s28, 0
    %p137 = por %p135, %p136
    %s139 = sadd.s32 %s138, 1
    %p142 = scmp.eq.s32.totalorder %s22, 1
    %p143 = scmp.ne.s32.totalorder %s138, %s140
    %p144 = scmp.eq.s32.totalorder %s22, 0
    %p145 = por %p143, %p144
    %p146 = scmp.ne.s32.totalorder %s138, %s140
    %p147 = scmp.eq.s32.totalorder %s27, 1
    %p148 = por %p146, %p147
    %p149 = scmp.ne.s32.totalorder %s140, %s141
    %p150 = scmp.eq.s32.totalorder %s27, 0
    %p151 = por %p149, %p150
    %p152 = scmp.ne.s32.totalorder %s140, %s141
    %p153 = scmp.eq.s32.totalorder %s28, 1
    %p154 = por %p152, %p153
    %p156 = scmp.ne.s32.totalorder %s141, %s155
    %p157 = scmp.eq.s32.totalorder %s28, 0
    %p158 = por %p156, %p157
    %s160 = sadd.s32 %s159, 1
    %p163 = scmp.eq.s32.totalorder %s22, 1
    %p164 = scmp.ne.s32.totalorder %s159, %s161
    %p165 = scmp.eq.s32.totalorder %s22, 0
    %p166 = por %p164, %p165
    %p167 = scmp.ne.s32.totalorder %s159, %s161
    %p168 = scmp.eq.s32.totalorder %s27, 1
    %p169 = por %p167, %p168
    %p170 = scmp.ne.s32.totalorder %s161, %s162
    %p171 = scmp.eq.s32.totalorder %s27, 0
    %p172 = por %p170, %p171
    %p173 = scmp.ne.s32.totalorder %s161, %s162
    %p174 = scmp.eq.s32.totalorder %s28, 1
    %p175 = por %p173, %p174
    %p177 = scmp.ne.s32.totalorder %s162, %s176
    %p178 = scmp.eq.s32.totalorder %s28, 0
    %p179 = por %p177, %p178
    %s181 = sadd.s32 %s180, 1
    %p184 = scmp.eq.s32.totalorder %s22, 1
    %p185 = scmp.ne.s32.totalorder %s180, %s182
    %p186 = scmp.eq.s32.totalorder %s22, 0
    %p187 = por %p185, %p186
    %p188 = scmp.ne.s32.totalorder %s180, %s182
    %p189 = scmp.eq.s32.totalorder %s27, 1
    %p190 = por %p188, %p189
    %p191 = scmp.ne.s32.totalorder %s182, %s183
    %p192 = scmp.eq.s32.totalorder %s27, 0
    %p193 = por %p191, %p192
    %p194 = scmp.ne.s32.totalorder %s182, %s183
    %p195 = scmp.eq.s32.totalorder %s28, 1
    %p196 = por %p194, %p195
    %p198 = scmp.ne.s32.totalorder %s183, %s197
    %p199 = scmp.eq.s32.totalorder %s28, 0
    %p200 = por %p198, %p199
    %s202 = sadd.s32 %s201, 1
    %p205 = scmp.eq.s32.totalorder %s22, 1
    %p206 = scmp.ne.s32.totalorder %s201, %s203
    %p207 = scmp.eq.s32.totalorder %s22, 0
    %p208 = por %p206, %p207
    %p209 = scmp.ne.s32.totalorder %s201, %s203
    %p210 = scmp.eq.s32.totalorder %s27, 1
    %p211 = por %p209, %p210
    %p212 = scmp.ne.s32.totalorder %s203, %s204
    %p213 = scmp.eq.s32.totalorder %s27, 0
    %p214 = por %p212, %p213
    %p215 = scmp.ne.s32.totalorder %s203, %s204
    %p216 = scmp.eq.s32.totalorder %s28, 1
    %p217 = por %p215, %p216
    %p219 = scmp.ne.s32.totalorder %s204, %s218
    %p220 = scmp.eq.s32.totalorder %s28, 0
    %p221 = por %p219, %p220
    %s223 = sadd.s32 %s222, 1
    %p226 = scmp.eq.s32.totalorder %s22, 1
    %p227 = scmp.ne.s32.totalorder %s222, %s224
    %p228 = scmp.eq.s32.totalorder %s22, 0
    %p229 = por %p227, %p228
    %p230 = scmp.ne.s32.totalorder %s222, %s224
    %p231 = scmp.eq.s32.totalorder %s27, 1
    %p232 = por %p230, %p231
    %p233 = scmp.ne.s32.totalorder %s224, %s225
    %p234 = scmp.eq.s32.totalorder %s27, 0
    %p235 = por %p233, %p234
    %p236 = scmp.ne.s32.totalorder %s224, %s225
    %p237 = scmp.eq.s32.totalorder %s28, 1
    %p238 = por %p236, %p237
    %p240 = scmp.ne.s32.totalorder %s225, %s239
    %p241 = scmp.eq.s32.totalorder %s28, 0
    %p242 = por %p240, %p241
    %s244 = sadd.s32 %s243, 1
    %p247 = scmp.eq.s32.totalorder %s22, 1
    %p248 = scmp.ne.s32.totalorder %s243, %s245
    %p249 = scmp.eq.s32.totalorder %s22, 0
    %p250 = por %p248, %p249
    %p251 = scmp.ne.s32.totalorder %s243, %s245
    %p252 = scmp.eq.s32.totalorder %s27, 1
    %p253 = por %p251, %p252
    %p254 = scmp.ne.s32.totalorder %s245, %s246
    %p255 = scmp.eq.s32.totalorder %s27, 0
    %p256 = por %p254, %p255
    %p257 = scmp.ne.s32.totalorder %s245, %s246
    %p258 = scmp.eq.s32.totalorder %s28, 1
    %p259 = por %p257, %p258
    %p261 = scmp.ne.s32.totalorder %s246, %s260
    %p262 = scmp.eq.s32.totalorder %s28, 0
    %p263 = por %p261, %p262
    %s265 = sadd.s32 %s264, 1
    %p268 = scmp.eq.s32.totalorder %s22, 1
    %p269 = scmp.ne.s32.totalorder %s264, %s266
    %p270 = scmp.eq.s32.totalorder %s22, 0
    %p271 = por %p269, %p270
    %p272 = scmp.ne.s32.totalorder %s264, %s266
    %p273 = scmp.eq.s32.totalorder %s27, 1
    %p274 = por %p272, %p273
    %p275 = scmp.ne.s32.totalorder %s266, %s267
    %p276 = scmp.eq.s32.totalorder %s27, 0
    %p277 = por %p275, %p276
    %p278 = scmp.ne.s32.totalorder %s266, %s267
    %p279 = scmp.eq.s32.totalorder %s28, 1
    %p280 = por %p278, %p279
    %p282 = scmp.ne.s32.totalorder %s267, %s281
    %p283 = scmp.eq.s32.totalorder %s28, 0
    %p284 = por %p282, %p283
    %s286 = sadd.s32 %s285, 1
    %p289 = scmp.eq.s32.totalorder %s22, 1
    %p290 = scmp.ne.s32.totalorder %s285, %s287
    %p291 = scmp.eq.s32.totalorder %s22, 0
    %p292 = por %p290, %p291
    %p293 = scmp.ne.s32.totalorder %s285, %s287
    %p294 = scmp.eq.s32.totalorder %s27, 1
    %p295 = por %p293, %p294
    %p296 = scmp.ne.s32.totalorder %s287, %s288
    %p297 = scmp.eq.s32.totalorder %s27, 0
    %p298 = por %p296, %p297
    %p299 = scmp.ne.s32.totalorder %s287, %s288
    %p300 = scmp.eq.s32.totalorder %s28, 1
    %p301 = por %p299, %p300
    %p303 = scmp.ne.s32.totalorder %s288, %s302
    %p304 = scmp.eq.s32.totalorder %s28, 0
    %p305 = por %p303, %p304
    %s307 = sadd.s32 %s306, 1
    %p310 = scmp.eq.s32.totalorder %s22, 1
    %p311 = scmp.ne.s32.totalorder %s306, %s308
    %p312 = scmp.eq.s32.totalorder %s22, 0
    %p313 = por %p311, %p312
    %p314 = scmp.ne.s32.totalorder %s306, %s308
    %p315 = scmp.eq.s32.totalorder %s27, 1
    %p316 = por %p314, %p315
    %p317 = scmp.ne.s32.totalorder %s308, %s309
    %p318 = scmp.eq.s32.totalorder %s27, 0
    %p319 = por %p317, %p318
    %p320 = scmp.ne.s32.totalorder %s308, %s309
    %p321 = scmp.eq.s32.totalorder %s28, 1
    %p322 = por %p320, %p321
    %p324 = scmp.ne.s32.totalorder %s309, %s323
    %p325 = scmp.eq.s32.totalorder %s28, 0
    %p326 = por %p324, %p325
    %s328 = sadd.s32 %s327, 1
    %p331 = scmp.eq.s32.totalorder %s22, 1
    %p332 = scmp.ne.s32.totalorder %s327, %s329
    %p333 = scmp.eq.s32.totalorder %s22, 0
    %p334 = por %p332, %p333
    %p335 = scmp.ne.s32.totalorder %s327, %s329
    %p336 = scmp.eq.s32.totalorder %s27, 1
    %p337 = por %p335, %p336
    %p338 = scmp.ne.s32.totalorder %s329, %s330
    %p339 = scmp.eq.s32.totalorder %s27, 0
    %p340 = por %p338, %p339
    %p341 = scmp.ne.s32.totalorder %s329, %s330
    %p342 = scmp.eq.s32.totalorder %s28, 1
    %p343 = por %p341, %p342
    %p345 = scmp.ne.s32.totalorder %s330, %s344
    %p346 = scmp.eq.s32.totalorder %s28, 0
    %p347 = por %p345, %p346
    %s349 = sadd.s32 %s348, 1
    %p352 = scmp.eq.s32.totalorder %s22, 1
    %p353 = scmp.ne.s32.totalorder %s348, %s350
    %p354 = scmp.eq.s32.totalorder %s22, 0
    %p355 = por %p353, %p354
    %p356 = scmp.ne.s32.totalorder %s348, %s350
    %p357 = scmp.eq.s32.totalorder %s27, 1
    %p358 = por %p356, %p357
    %p359 = scmp.ne.s32.totalorder %s350, %s351
    %p360 = scmp.eq.s32.totalorder %s27, 0
    %p361 = por %p359, %p360
    %p362 = scmp.ne.s32.totalorder %s350, %s351
    %p363 = scmp.eq.s32.totalorder %s28, 1
    %p364 = por %p362, %p363
    %p366 = scmp.ne.s32.totalorder %s351, %s365
    %p367 = scmp.eq.s32.totalorder %s28, 0
    %p368 = por %p366, %p367
    %s370 = sadd.s32 %s369, 1
    %p373 = scmp.eq.s32.totalorder %s22, 1
    %p374 = scmp.ne.s32.totalorder %s369, %s371
    %p375 = scmp.eq.s32.totalorder %s22, 0
    %p376 = por %p374, %p375
    %p377 = scmp.ne.s32.totalorder %s369, %s371
    %p378 = scmp.eq.s32.totalorder %s27, 1
    %p379 = por %p377, %p378
    %p380 = scmp.ne.s32.totalorder %s371, %s372
    %p381 = scmp.eq.s32.totalorder %s27, 0
    %p382 = por %p380, %p381
    %p383 = scmp.ne.s32.totalorder %s371, %s372
    %p384 = scmp.eq.s32.totalorder %s28, 1
    %p385 = por %p383, %p384
    %p387 = scmp.ne.s32.totalorder %s372, %s386
    %p388 = scmp.eq.s32.totalorder %s28, 0
    %p389 = por %p387, %p388
    %s390 = ssub.s32 %s29, %s41
    %s391 = ssub.s32 %s30, %s37
    %s392 = sor.u32 %s390, %s391
    %p393 = scmp.eq.s32.totalorder %s392, 0
    %s395 = sadd.s32 %s394, 1
    %s396 = scalar_select %p393, %s394, %s395
    %p399 = pneg %p393
    %p400 = scmp.eq.s32.totalorder %s22, 1
    %p401 = por %p399, %p400
    %p402 = scmp.ne.s32.totalorder %s394, %s397
    %p403 = scmp.eq.s32.totalorder %s22, 0
    %p404 = por %p402, %p403
    %p405 = scmp.ne.s32.totalorder %s394, %s397
    %p406 = scmp.eq.s32.totalorder %s27, 1
    %p407 = por %p405, %p406
    %p408 = scmp.ne.s32.totalorder %s397, %s398
    %p409 = scmp.eq.s32.totalorder %s27, 0
    %p410 = por %p408, %p409
    %p411 = scmp.ne.s32.totalorder %s397, %s398
    %p412 = scmp.eq.s32.totalorder %s28, 1
    %p413 = por %p411, %p412
    %p415 = scmp.ne.s32.totalorder %s398, %s414
    %p416 = scmp.eq.s32.totalorder %s28, 0
    %p417 = por %p415, %p416
    %p418 = scmp.le.s32.totalorder 1, %s22
    %p419 = scmp.lt.s32.totalorder %s22, 3
    %p420 = pnand %p418, %p419
    %p421 = pneg %p420
    // Predicated region
    $region9: #{encoder_forward.3} parent=5 // pred_check
      _
    $region10: #{encoder_forward.3} parent=5 // pred_check_branch
      %423 = sbr.rel (%p420) target = $region12
    $region11: #{encoder_forward.3} parent=5 // pred_region
      %s424 = ssub.s32 %s22, 1
      // Predicated region
      $region13: #{encoder_forward.3} parent=11 // pred_check
        %p425 = pneg %p109
      $region14: #{encoder_forward.3} parent=11 // pred_check_branch
        %427 = sbr.rel (%p425) target = $region16
      $region15: #{encoder_forward.3} parent=11 // pred_region
        _
      $region16: #{encoder_forward.3} parent=11 // pred_fallthru
        _
      // Predicated region
      $region17: #{encoder_forward.3} parent=11 // pred_check
        %p428 = pneg %p130
      $region18: #{encoder_forward.3} parent=11 // pred_check_branch
        %430 = sbr.rel (%p428) target = $region20
      $region19: #{encoder_forward.3} parent=11 // pred_region
        _
      $region20: #{encoder_forward.3} parent=11 // pred_fallthru
        _
      // Predicated region
      $region21: #{encoder_forward.3} parent=11 // pred_check
        %p431 = pneg %p151
      $region22: #{encoder_forward.3} parent=11 // pred_check_branch
        %433 = sbr.rel (%p431) target = $region24
      $region23: #{encoder_forward.3} parent=11 // pred_region
        _
      $region24: #{encoder_forward.3} parent=11 // pred_fallthru
        _
      // Predicated region
      $region25: #{encoder_forward.3} parent=11 // pred_check
        %p434 = pneg %p172
      $region26: #{encoder_forward.3} parent=11 // pred_check_branch
        %436 = sbr.rel (%p434) target = $region28
      $region27: #{encoder_forward.3} parent=11 // pred_region
        _
      $region28: #{encoder_forward.3} parent=11 // pred_fallthru
        _
      // Predicated region
      $region29: #{encoder_forward.3} parent=11 // pred_check
        %p437 = pneg %p193
      $region30: #{encoder_forward.3} parent=11 // pred_check_branch
        %439 = sbr.rel (%p437) target = $region32
      $region31: #{encoder_forward.3} parent=11 // pred_region
        _
      $region32: #{encoder_forward.3} parent=11 // pred_fallthru
        _
      // Predicated region
      $region33: #{encoder_forward.3} parent=11 // pred_check
        %p440 = pneg %p214
      $region34: #{encoder_forward.3} parent=11 // pred_check_branch
        %442 = sbr.rel (%p440) target = $region36
      $region35: #{encoder_forward.3} parent=11 // pred_region
        _
      $region36: #{encoder_forward.3} parent=11 // pred_fallthru
        _
      // Predicated region
      $region37: #{encoder_forward.3} parent=11 // pred_check
        %p443 = pneg %p235
      $region38: #{encoder_forward.3} parent=11 // pred_check_branch
        %445 = sbr.rel (%p443) target = $region40
      $region39: #{encoder_forward.3} parent=11 // pred_region
        _
      $region40: #{encoder_forward.3} parent=11 // pred_fallthru
        _
      // Predicated region
      $region41: #{encoder_forward.3} parent=11 // pred_check
        %p446 = pneg %p256
      $region42: #{encoder_forward.3} parent=11 // pred_check_branch
        %448 = sbr.rel (%p446) target = $region44
      $region43: #{encoder_forward.3} parent=11 // pred_region
        _
      $region44: #{encoder_forward.3} parent=11 // pred_fallthru
        _
      // Predicated region
      $region45: #{encoder_forward.3} parent=11 // pred_check
        %p449 = pneg %p277
      $region46: #{encoder_forward.3} parent=11 // pred_check_branch
        %451 = sbr.rel (%p449) target = $region48
      $region47: #{encoder_forward.3} parent=11 // pred_region
        _
      $region48: #{encoder_forward.3} parent=11 // pred_fallthru
        _
      // Predicated region
      $region49: #{encoder_forward.3} parent=11 // pred_check
        %p452 = pneg %p298
      $region50: #{encoder_forward.3} parent=11 // pred_check_branch
        %454 = sbr.rel (%p452) target = $region52
      $region51: #{encoder_forward.3} parent=11 // pred_region
        _
      $region52: #{encoder_forward.3} parent=11 // pred_fallthru
        _
      // Predicated region
      $region53: #{encoder_forward.3} parent=11 // pred_check
        %p455 = pneg %p319
      $region54: #{encoder_forward.3} parent=11 // pred_check_branch
        %457 = sbr.rel (%p455) target = $region56
      $region55: #{encoder_forward.3} parent=11 // pred_region
        _
      $region56: #{encoder_forward.3} parent=11 // pred_fallthru
        _
      // Predicated region
      $region57: #{encoder_forward.3} parent=11 // pred_check
        %p458 = pneg %p340
      $region58: #{encoder_forward.3} parent=11 // pred_check_branch
        %460 = sbr.rel (%p458) target = $region60
      $region59: #{encoder_forward.3} parent=11 // pred_region
        _
      $region60: #{encoder_forward.3} parent=11 // pred_fallthru
        _
      // Predicated region
      $region61: #{encoder_forward.3} parent=11 // pred_check
        %p461 = pneg %p361
      $region62: #{encoder_forward.3} parent=11 // pred_check_branch
        %463 = sbr.rel (%p461) target = $region64
      $region63: #{encoder_forward.3} parent=11 // pred_region
        _
      $region64: #{encoder_forward.3} parent=11 // pred_fallthru
        _
      // Predicated region
      $region65: #{encoder_forward.3} parent=11 // pred_check
        %p464 = pneg %p382
      $region66: #{encoder_forward.3} parent=11 // pred_check_branch
        %466 = sbr.rel (%p464) target = $region68
      $region67: #{encoder_forward.3} parent=11 // pred_region
        _
      $region68: #{encoder_forward.3} parent=11 // pred_fallthru
        _
    $region12: #{encoder_forward.3} parent=5 // pred_fallthru
      _
    %p467 = scmp.lt.s32.totalorder %s22, 2
    // Predicated region
    $region69: #{encoder_forward.3} parent=5 // pred_check
      %p468 = pneg %p467
    $region70: #{encoder_forward.3} parent=5 // pred_check_branch
      %470 = sbr.rel (%p468) target = $region72
    $region71: #{encoder_forward.3} parent=5 // pred_region
      // Predicated region
      $region73: #{encoder_forward.3} parent=71 // pred_check
        %p471 = pneg %p54
      $region74: #{encoder_forward.3} parent=71 // pred_check_branch
        %473 = sbr.rel (%p471) target = $region76
      $region75: #{encoder_forward.3} parent=71 // pred_region
        %p474 = scmp.lt.s32.totalorder %s29, 1
        %s475 = scalar_select %p474, %s29, 1
        %s476 = smul.addr %s475, 4
        %s477 = scalar_lea.vmem %s0, %s476
      $region76: #{encoder_forward.3} parent=71 // pred_fallthru
        _
      // Predicated region
      $region77: #{encoder_forward.3} parent=71 // pred_check
        %p478 = pneg %p82
      $region78: #{encoder_forward.3} parent=71 // pred_check_branch
        %480 = sbr.rel (%p478) target = $region80
      $region79: #{encoder_forward.3} parent=71 // pred_region
        %p481 = scmp.lt.s32.totalorder %s29, 1
        %s482 = scalar_select %p481, %s29, 1
        %p483 = scmp.lt.s32.totalorder %s30, 0
        %s484 = scalar_select %p483, %s30, 0
        %s485 = sadd.s32 %s484, %s482
        %s486 = smul.addr %s485, 2
        %s487 = scalar_lea.vmem %s1, %s486
      $region80: #{encoder_forward.3} parent=71 // pred_fallthru
        _
    $region72: #{encoder_forward.3} parent=5 // pred_fallthru
      _
    %p488 = scmp.le.s32.totalorder 1, %s22
    %p489 = scmp.lt.s32.totalorder %s22, 3
    %p490 = pnand %p488, %p489
    %p491 = pneg %p490
    // Predicated region
    $region81: #{encoder_forward.3} parent=5 // pred_check
      _
    $region82: #{encoder_forward.3} parent=5 // pred_check_branch
      %493 = sbr.rel (%p490) target = $region84
    $region83: #{encoder_forward.3} parent=5 // pred_region
      %s494 = ssub.s32 %s22, 1
      %p495 = scmp.lt.s32.totalorder %s31, 1
      %s496 = scalar_select %p495, %s31, 1
      %s497 = smul.addr %s496, 4
      %s498 = scalar_lea.vmem %s0, %s497
      %p499 = pneg %p60
      %p500 = pneg %p57
      %p501 = scmp.lt.s32.totalorder %s31, 1
      %s502 = scalar_select %p501, %s31, 1
      %p503 = scmp.lt.s32.totalorder %s32, 0
      %s504 = scalar_select %p503, %s32, 0
      %s505 = sadd.s32 %s504, %s502
      %s506 = smul.addr %s505, 2
      %s507 = scalar_lea.vmem %s1, %s506
      %p508 = pneg %p88
      %p509 = pneg %p85
      %p510 = pneg %p109
      %p511 = pneg %p106
      %p512 = pneg %p130
      %p513 = pneg %p127
      %p514 = pneg %p151
      %p515 = pneg %p148
      %p516 = pneg %p172
      %p517 = pneg %p169
      %p518 = pneg %p193
      %p519 = pneg %p190
      %p520 = pneg %p214
      %p521 = pneg %p211
      %p522 = pneg %p235
      %p523 = pneg %p232
      %p524 = pneg %p256
      %p525 = pneg %p253
      %p526 = pneg %p277
      %p527 = pneg %p274
      %p528 = pneg %p298
      %p529 = pneg %p295
      %p530 = pneg %p319
      %p531 = pneg %p316
      %p532 = pneg %p340
      %p533 = pneg %p337
      %p534 = pneg %p361
      %p535 = pneg %p358
      %p536 = pneg %p382
      %p537 = pneg %p379
      %p538 = pneg %p410
      %p539 = pneg %p407
      %p540 = scmp.lt.s32.totalorder %s31, 1
      %s541 = scalar_select %p540, %s31, 1
      %p542 = scmp.lt.s32.totalorder %s32, 0
      %s543 = scalar_select %p542, %s32, 0
      %s544 = sadd.s32 %s543, %s541
      %s545 = smul.addr %s544, 4
      %s546 = scalar_lea.vmem %s16, %s545
      %p547 = scmp.lt.s32.totalorder %s31, 1
      %s548 = scalar_select %p547, %s31, 1
      %s549 = smul.addr %s548, 4
      %s550 = scalar_lea.vmem %s0, %s549
      %p551 = scmp.lt.s32.totalorder %s31, 1
      %s552 = scalar_select %p551, %s31, 1
      %p553 = scmp.lt.s32.totalorder %s32, 0
      %s554 = scalar_select %p553, %s32, 0
      %s555 = sadd.s32 %s554, %s552
      %s556 = smul.addr %s555, 2
      %s557 = scalar_lea.vmem %s1, %s556
      %p558 = scmp.lt.s32.totalorder %s31, 1
      %s559 = scalar_select %p558, %s31, 1
      %p560 = scmp.lt.s32.totalorder %s32, 0
      %s561 = scalar_select %p560, %s32, 0
      %s562 = sadd.s32 %s561, %s559
      %s563 = smul.addr %s562, 4
      %s564 = scalar_lea.vmem %s16, %s563
      %p566 = scmp.eq.s32.totalorder %s32, 0
      // Predicated region
      $region85: #{encoder_forward.3} parent=83 // pred_check
        %p567 = pneg %p566
      $region86: #{encoder_forward.3} parent=83 // pred_check_branch
        %569 = sbr.rel (%p567) target = $region88
      $region87: #{encoder_forward.3} parent=83 // pred_region
        %v570 = vld [vmem:[%s550] sm:$0xf]
        %v571 = vld [vmem:[%s4] sm:$0xf]
        %v572 = vld [vmem:[%s4 + $0x4] sm:$0xf]
        %v573 = vld [vmem:[%s4 + $0x8] sm:$0xf]
        %v574 = vld [vmem:[%s4 + $0xc] sm:$0xf]
        %v575 = vld [vmem:[%s5] sm:$0x1]
        %v577 = vlaneseq
        %v578 = vshrl.u32 %v577, 7
        %v579 = vsub.s32 0, %v578
        %v580 = vrot.slane %v575, %v579
        %v586 = vunpack.c.l.b16 %v571
        %v587 = vunpack.c.l.b16 %v572
        %v588 = vunpack.c.l.b16 %v573
        %v589 = vunpack.c.l.b16 %v574
        %v590 = vpack.c.b16 %v587, %v586
        %v591 = vpack.c.b16 %v589, %v588
        %vm594 = vcmask 261120
        %v596 = vsel %vm594, %v570, 0
        %598 = vmatprep.subr.bf16.mxu0 0
        %599 = vmatpush1.bf16.msra.mxu0 %v590
        %600 = vmatprep.subr.bf16.mxu0 0
        %601 = vmatpush1.bf16.msra.mxu0 %v591
        %602 = vmatprep.subr.bf16.mxu0 0
        %603 = vmatpush1.bf16.msra.mxu0 0
        %604 = vmatprep.subr.bf16.mxu0 0
        %605 = vmatpush1.bf16.msra.mxu0 0
        %606 = vmatprep.subr.bf16.mxu0 0
        %607 = vmatpush1.bf16.msra.mxu0 0
        %608 = vmatprep.subr.bf16.mxu0 0
        %609 = vmatpush1.bf16.msra.mxu0 0
        %610 = vmatprep.subr.bf16.mxu0 0
        %611 = vmatpush1.bf16.msra.mxu0 0
        %612 = vmatprep.subr.bf16.mxu0 0
        %613 = vmatpush1.bf16.msra.mxu0 0
        %614 = vmatprep.subr.bf16.mxu0 0
        %615 = vmatpush1.bf16.msra.mxu0 0
        %616 = vmatprep.subr.bf16.mxu0 0
        %617 = vmatpush1.bf16.msra.mxu0 0
        %618 = vmatprep.subr.bf16.mxu0 0
        %619 = vmatpush1.bf16.msra.mxu0 0
        %620 = vmatprep.subr.bf16.mxu0 0
        %621 = vmatpush1.bf16.msra.mxu0 0
        %622 = vmatprep.subr.bf16.mxu0 0
        %623 = vmatpush1.bf16.msra.mxu0 0
        %624 = vmatprep.subr.bf16.mxu0 0
        %625 = vmatpush1.bf16.msra.mxu0 0
        %626 = vmatprep.subr.bf16.mxu0 0
        %627 = vmatpush1.bf16.msra.mxu0 0
        %628 = vmatprep.subr.bf16.mxu0 0
        %629 = vmatpush1.bf16.msra.mxu0 0
        %630 = vmatprep.mubr.bf16.mxu0 0
        %631 = vmatmul.mubr.bf16.gmra.mrb[0].mxu0 %v596
        %v632 = vpop.f32.mrb[0].mxu0
        %v633 = vadd.f32 %v580, %v632
        %v634 = vpop.f32.mrb[0].mxu0
        %v635 = vpop.f32.mrb[0].mxu0
        %v636 = vpop.f32.mrb[0].mxu0
        %637 = vdwg.mxu0
        %v638 = vpack.c.bf16 %v633, %v633
        %vm639 = vcmask 257024
        %640 = vst.msk [vmem:[#allocation2] sm:$0xf] %vm639, %v638
        %v642 = vunpack.c.l.b16 %v638
        %v643 = vpack.c.b16 %v642, %v642
        %644 = vrot.lane.b32.xlu0 %v643, 96
        %v645 = vpop.permute.xlu0 %644
        %s647 = scalar_lea.vmem [#allocation2], 4
        %648 = vst.msk [vmem:[%s647] sm:$0xf] %vm639, %v645
      $region88: #{encoder_forward.3} parent=83 // pred_fallthru
        _
      %s649 = smul.u32 %s32, 8
      %s650 = sshra.s32 %s649, 3
      %s651 = sand.u32 %s649, 7
      %s652 = smul.addr %s650, 4
      %s653 = scalar_lea.vmem %s550, %s652
      %v654 = vld [vmem:[%s653] sm:$0xf]
      %v655 = vunpack.c.l.bf16 %v654
      %v656 = vld [vmem:[%s557] sm:$0x3]
      %v657 = vunpack.c.0.s8 %v656
      %vm658 = vcmp.eq.s32.totalorder %v657, 0
      %v659 = vld [vmem:[%s2] sm:$0xf]
      %v660 = vld [vmem:[%s2 + $0x4] sm:$0xf]
      %v661 = vld [vmem:[%s2 + $0x8] sm:$0xf]
      %v662 = vld [vmem:[%s2 + $0xc] sm:$0xf]
      %v663 = vld [vmem:[%s3] sm:$0x1]
      %v665 = vlaneseq
      %v666 = vshrl.u32 %v665, 7
      %v667 = vsub.s32 0, %v666
      %v668 = vrot.slane %v663, %v667
      %v674 = vunpack.c.l.b16 %v659
      %v675 = vunpack.c.l.b16 %v660
      %v676 = vunpack.c.l.b16 %v661
      %v677 = vunpack.c.l.b16 %v662
      %v678 = vpack.c.b16 %v675, %v674
      %v679 = vpack.c.b16 %v677, %v676
      %vm682 = vcmask 261120
      %v684 = vsel %vm682, %v654, 0
      %686 = vmatprep.subr.bf16.mxu0 0
      %687 = vmatpush1.bf16.msra.mxu0 %v678
      %688 = vmatprep.subr.bf16.mxu0 0
      %689 = vmatpush1.bf16.msra.mxu0 %v679
      %690 = vmatprep.subr.bf16.mxu0 0
      %691 = vmatpush1.bf16.msra.mxu0 0
      %692 = vmatprep.subr.bf16.mxu0 0
      %693 = vmatpush1.bf16.msra.mxu0 0
      %694 = vmatprep.subr.bf16.mxu0 0
      %695 = vmatpush1.bf16.msra.mxu0 0
      %696 = vmatprep.subr.bf16.mxu0 0
      %697 = vmatpush1.bf16.msra.mxu0 0
      %698 = vmatprep.subr.bf16.mxu0 0
      %699 = vmatpush1.bf16.msra.mxu0 0
      %700 = vmatprep.subr.bf16.mxu0 0
      %701 = vmatpush1.bf16.msra.mxu0 0
      %702 = vmatprep.subr.bf16.mxu0 0
      %703 = vmatpush1.bf16.msra.mxu0 0
      %704 = vmatprep.subr.bf16.mxu0 0
      %705 = vmatpush1.bf16.msra.mxu0 0
      %706 = vmatprep.subr.bf16.mxu0 0
      %707 = vmatpush1.bf16.msra.mxu0 0
      %708 = vmatprep.subr.bf16.mxu0 0
      %709 = vmatpush1.bf16.msra.mxu0 0
      %710 = vmatprep.subr.bf16.mxu0 0
      %711 = vmatpush1.bf16.msra.mxu0 0
      %712 = vmatprep.subr.bf16.mxu0 0
      %713 = vmatpush1.bf16.msra.mxu0 0
      %714 = vmatprep.subr.bf16.mxu0 0
      %715 = vmatpush1.bf16.msra.mxu0 0
      %716 = vmatprep.subr.bf16.mxu0 0
      %717 = vmatpush1.bf16.msra.mxu0 0
      %718 = vmatprep.mubr.bf16.mxu0 0
      %719 = vmatmul.mubr.bf16.gmra.mrb[0].mxu0 %v684
      %v720 = vpop.f32.mrb[0].mxu0
      %v721 = vadd.f32 %v668, %v720
      %v722 = vpop.f32.mrb[0].mxu0
      %v723 = vpop.f32.mrb[0].mxu0
      %v724 = vpop.f32.mrb[0].mxu0
      %725 = vdwg.mxu0
      %v726 = vmul.f32 %v721, 0.35355338
      %v727 = vld [vmem:[#allocation2] sm:$0xf]
      %s728 = scalar_lea.vmem [#allocation2], 4
      %v729 = vld [vmem:[%s728] sm:$0xf]
      %v730 = vpack.c.bf16 %v726, %v726
      %vm731 = vcmask 64512
      %v733 = vsel %vm731, %v730, 0
      %v736 = vsel %vm731, %v727, 0
      %738 = vmatprep.subr.bf16.mxu0 0
      %739 = vmatpush1.bf16.xpose.msra.mxu0 %v736
      %740 = vmatprep.subr.bf16.mxu0 0
      %741 = vmatpush1.bf16.xpose.msra.mxu0 0
      %742 = vmatprep.subr.bf16.mxu0 0
      %743 = vmatpush1.bf16.xpose.msra.mxu0 0
      %744 = vmatprep.subr.bf16.mxu0 0
      %745 = vmatpush1.bf16.xpose.msra.mxu0 0
      %746 = vmatprep.subr.bf16.mxu0 0
      %747 = vmatpush1.bf16.xpose.msra.mxu0 0
      %748 = vmatprep.subr.bf16.mxu0 0
      %749 = vmatpush1.bf16.xpose.msra.mxu0 0
      %750 = vmatprep.subr.bf16.mxu0 0
      %751 = vmatpush1.bf16.xpose.msra.mxu0 0
      %752 = vmatprep.subr.bf16.mxu0 0
      %753 = vmatpush1.bf16.xpose.msra.mxu0 0
      %754 = vmatprep.subr.bf16.mxu0 0
      %755 = vmatpush1.bf16.xpose.msra.mxu0 0
      %756 = vmatprep.subr.bf16.mxu0 0
      %757 = vmatpush1.bf16.xpose.msra.mxu0 0
      %758 = vmatprep.subr.bf16.mxu0 0
      %759 = vmatpush1.bf16.xpose.msra.mxu0 0
      %760 = vmatprep.subr.bf16.mxu0 0
      %761 = vmatpush1.bf16.xpose.msra.mxu0 0
      %762 = vmatprep.subr.bf16.mxu0 0
      %763 = vmatpush1.bf16.xpose.msra.mxu0 0
      %764 = vmatprep.subr.bf16.mxu0 0
      %765 = vmatpush1.bf16.xpose.msra.mxu0 0
      %766 = vmatprep.subr.bf16.mxu0 0
      %767 = vmatpush1.bf16.xpose.msra.mxu0 0
      %768 = vmatprep.subr.bf16.mxu0 0
      %769 = vmatpush1.bf16.xpose.msra.mxu0 0
      %770 = vmatprep.mubr.bf16.mxu0 0
      %771 = vmatmul.mubr.bf16.gmra.mrb[0].mxu0 %v733
      %v772 = vpop.f32.mrb[0].mxu0
      %v773 = vadd.f32 0.0, %v772
      %v774 = vpop.f32.mrb[0].mxu0
      %v775 = vpop.f32.mrb[0].mxu0
      %v776 = vpop.f32.mrb[0].mxu0
      %777 = vdwg.mxu0
      %v778 = vsel %vm658, -10000.0, %v773
      %v779 = vsel %vm731, %v778, -inf
      %780 = vmax.xlane.f32.xlu0 %v779
      %v781 = vpop.xlane.xlu0 %780
      %v782 = vsub.f32 %v778, %v781
      %v783 = vmul.f32 %v782, 1.442695
      %v784 = vpow.pop %v783
      %v785 = vsel %vm731, %v784, 0.0
      %786 = vadd.xlane.f32.xlu0 %v785
      %v787 = vpop.xlane.xlu0 %786
      %v788 = vrcp.pop %v787
      %v789 = vmul.f32 %v784, %v788
      %v790 = vpack.c.bf16 %v789, %v789
      %v792 = vsel %vm731, %v790, 0
      %vm794 = vcmask 1043456
      %v796 = vsel %vm794, %v729, 0
      %798 = vmatprep.subr.bf16.mxu0 0
      %799 = vmatpush1.bf16.msra.mxu0 %v796
      %800 = vmatprep.subr.bf16.mxu0 0
      %801 = vmatpush1.bf16.msra.mxu0 0
      %802 = vmatprep.subr.bf16.mxu0 0
      %803 = vmatpush1.bf16.msra.mxu0 0
      %804 = vmatprep.subr.bf16.mxu0 0
      %805 = vmatpush1.bf16.msra.mxu0 0
      %806 = vmatprep.subr.bf16.mxu0 0
      %807 = vmatpush1.bf16.msra.mxu0 0
      %808 = vmatprep.subr.bf16.mxu0 0
      %809 = vmatpush1.bf16.msra.mxu0 0
      %810 = vmatprep.subr.bf16.mxu0 0
      %811 = vmatpush1.bf16.msra.mxu0 0
      %812 = vmatprep.subr.bf16.mxu0 0
      %813 = vmatpush1.bf16.msra.mxu0 0
      %814 = vmatprep.subr.bf16.mxu0 0
      %815 = vmatpush1.bf16.msra.mxu0 0
      %816 = vmatprep.subr.bf16.mxu0 0
      %817 = vmatpush1.bf16.msra.mxu0 0
      %818 = vmatprep.subr.bf16.mxu0 0
      %819 = vmatpush1.bf16.msra.mxu0 0
      %820 = vmatprep.subr.bf16.mxu0 0
      %821 = vmatpush1.bf16.msra.mxu0 0
      %822 = vmatprep.subr.bf16.mxu0 0
      %823 = vmatpush1.bf16.msra.mxu0 0
      %824 = vmatprep.subr.bf16.mxu0 0
      %825 = vmatpush1.bf16.msra.mxu0 0
      %826 = vmatprep.subr.bf16.mxu0 0
      %827 = vmatpush1.bf16.msra.mxu0 0
      %828 = vmatprep.subr.bf16.mxu0 0
      %829 = vmatpush1.bf16.msra.mxu0 0
      %830 = vmatprep.mubr.bf16.mxu0 0
      %831 = vmatmul.mubr.bf16.gmra.mrb[0].mxu0 %v792
      %v832 = vpop.f32.mrb[0].mxu0
      %v833 = vadd.f32 0.0, %v832
      %v834 = vpop.f32.mrb[0].mxu0
      %v835 = vpop.f32.mrb[0].mxu0
      %v836 = vpop.f32.mrb[0].mxu0
      %837 = vdwg.mxu0
      %839 = vrot.lane.b32.xlu0 %v730, 120
      %v840 = vpop.permute.xlu0 %839
      %v842 = vunpack.c.l.b16 %v727
      %v843 = vpack.c.b16 %v842, %v842
      %844 = vrot.lane.b32.xlu0 %v843, 120
      %v845 = vpop.permute.xlu0 %844
      %v847 = vsel %vm731, %v840, 0
      %v850 = vsel %vm731, %v845, 0
      %852 = vmatprep.subr.bf16.mxu0 0
      %853 = vmatpush1.bf16.xpose.msra.mxu0 %v850
      %854 = vmatprep.subr.bf16.mxu0 0
      %855 = vmatpush1.bf16.xpose.msra.mxu0 0
      %856 = vmatprep.subr.bf16.mxu0 0
      %857 = vmatpush1.bf16.xpose.msra.mxu0 0
      %858 = vmatprep.subr.bf16.mxu0 0
      %859 = vmatpush1.bf16.xpose.msra.mxu0 0
      %860 = vmatprep.subr.bf16.mxu0 0
      %861 = vmatpush1.bf16.xpose.msra.mxu0 0
      %862 = vmatprep.subr.bf16.mxu0 0
      %863 = vmatpush1.bf16.xpose.msra.mxu0 0
      %864 = vmatprep.subr.bf16.mxu0 0
      %865 = vmatpush1.bf16.xpose.msra.mxu0 0
      %866 = vmatprep.subr.bf16.mxu0 0
      %867 = vmatpush1.bf16.xpose.msra.mxu0 0
      %868 = vmatprep.subr.bf16.mxu0 0
      %869 = vmatpush1.bf16.xpose.msra.mxu0 0
      %870 = vmatprep.subr.bf16.mxu0 0
      %871 = vmatpush1.bf16.xpose.msra.mxu0 0
      %872 = vmatprep.subr.bf16.mxu0 0
      %873 = vmatpush1.bf16.xpose.msra.mxu0 0
      %874 = vmatprep.subr.bf16.mxu0 0
      %875 = vmatpush1.bf16.xpose.msra.mxu0 0
      %876 = vmatprep.subr.bf16.mxu0 0
      %877 = vmatpush1.bf16.xpose.msra.mxu0 0
      %878 = vmatprep.subr.bf16.mxu0 0
      %879 = vmatpush1.bf16.xpose.msra.mxu0 0
      %880 = vmatprep.subr.bf16.mxu0 0
      %881 = vmatpush1.bf16.xpose.msra.mxu0 0
      %882 = vmatprep.subr.bf16.mxu0 0
      %883 = vmatpush1.bf16.xpose.msra.mxu0 0
      %884 = vmatprep.mubr.bf16.mxu0 0
      %885 = vmatmul.mubr.bf16.gmra.mrb[0].mxu0 %v847
      %v886 = vpop.f32.mrb[0].mxu0
      %v887 = vadd.f32 0.0, %v886
      %v888 = vpop.f32.mrb[0].mxu0
      %v889 = vpop.f32.mrb[0].mxu0
      %v890 = vpop.f32.mrb[0].mxu0
      %891 = vdwg.mxu0
      %v892 = vsel %vm658, -10000.0, %v887
      %v893 = vsel %vm731, %v892, -inf
      %894 = vmax.xlane.f32.xlu0 %v893
      %v895 = vpop.xlane.xlu0 %894
      %v896 = vsub.f32 %v892, %v895
      %v897 = vmul.f32 %v896, 1.442695
      %v898 = vpow.pop %v897
      %v899 = vsel %vm731, %v898, 0.0
      %900 = vadd.xlane.f32.xlu0 %v899
      %v901 = vpop.xlane.xlu0 %900
      %v902 = vrcp.pop %v901
      %v903 = vmul.f32 %v898, %v902
      %v904 = vpack.c.bf16 %v903, %v903
      %v906 = vunpack.c.l.b16 %v729
      %v907 = vpack.c.b16 %v906, %v906
      %908 = vrot.lane.b32.xlu0 %v907, 120
      %v909 = vpop.permute.xlu0 %908
      %v911 = vsel %vm731, %v904, 0
      %v914 = vsel %vm794, %v909, 0
      %916 = vmatprep.subr.bf16.mxu0 0
      %917 = vmatpush1.bf16.msra.mxu0 %v914
      %918 = vmatprep.subr.bf16.mxu0 0
      %919 = vmatpush1.bf16.msra.mxu0 0
      %920 = vmatprep.subr.bf16.mxu0 0
      %921 = vmatpush1.bf16.msra.mxu0 0
      %922 = vmatprep.subr.bf16.mxu0 0
      %923 = vmatpush1.bf16.msra.mxu0 0
      %924 = vmatprep.subr.bf16.mxu0 0
      %925 = vmatpush1.bf16.msra.mxu0 0
      %926 = vmatprep.subr.bf16.mxu0 0
      %927 = vmatpush1.bf16.msra.mxu0 0
      %928 = vmatprep.subr.bf16.mxu0 0
      %929 = vmatpush1.bf16.msra.mxu0 0
      %930 = vmatprep.subr.bf16.mxu0 0
      %931 = vmatpush1.bf16.msra.mxu0 0
      %932 = vmatprep.subr.bf16.mxu0 0
      %933 = vmatpush1.bf16.msra.mxu0 0
      %934 = vmatprep.subr.bf16.mxu0 0
      %935 = vmatpush1.bf16.msra.mxu0 0
      %936 = vmatprep.subr.bf16.mxu0 0
      %937 = vmatpush1.bf16.msra.mxu0 0
      %938 = vmatprep.subr.bf16.mxu0 0
      %939 = vmatpush1.bf16.msra.mxu0 0
      %940 = vmatprep.subr.bf16.mxu0 0
      %941 = vmatpush1.bf16.msra.mxu0 0
      %942 = vmatprep.subr.bf16.mxu0 0
      %943 = vmatpush1.bf16.msra.mxu0 0
      %944 = vmatprep.subr.bf16.mxu0 0
      %945 = vmatpush1.bf16.msra.mxu0 0
      %946 = vmatprep.subr.bf16.mxu0 0
      %947 = vmatpush1.bf16.msra.mxu0 0
      %948 = vmatprep.mubr.bf16.mxu0 0
      %949 = vmatmul.mubr.bf16.gmra.mrb[0].mxu0 %v911
      %v950 = vpop.f32.mrb[0].mxu0
      %v951 = vadd.f32 0.0, %v950
      %v952 = vpop.f32.mrb[0].mxu0
      %v953 = vpop.f32.mrb[0].mxu0
      %v954 = vpop.f32.mrb[0].mxu0
      %955 = vdwg.mxu0
      %956 = vrot.lane.b32.xlu0 %v730, 112
      %v957 = vpop.permute.xlu0 %956
      %958 = vrot.lane.b32.xlu0 %v843, 112
      %v959 = vpop.permute.xlu0 %958
      %v961 = vsel %vm731, %v957, 0
      %v964 = vsel %vm731, %v959, 0
      %966 = vmatprep.subr.bf16.mxu0 0
      %967 = vmatpush1.bf16.xpose.msra.mxu0 %v964
      %968 = vmatprep.subr.bf16.mxu0 0
      %969 = vmatpush1.bf16.xpose.msra.mxu0 0
      %970 = vmatprep.subr.bf16.mxu0 0
      %971 = vmatpush1.bf16.xpose.msra.mxu0 0
      %972 = vmatprep.subr.bf16.mxu0 0
      %973 = vmatpush1.bf16.xpose.msra.mxu0 0
      %974 = vmatprep.subr.bf16.mxu0 0
      %975 = vmatpush1.bf16.xpose.msra.mxu0 0
      %976 = vmatprep.subr.bf16.mxu0 0
      %977 = vmatpush1.bf16.xpose.msra.mxu0 0
      %978 = vmatprep.subr.bf16.mxu0 0
      %979 = vmatpush1.bf16.xpose.msra.mxu0 0
      %980 = vmatprep.subr.bf16.mxu0 0
      %981 = vmatpush1.bf16.xpose.msra.mxu0 0
      %982 = vmatprep.subr.bf16.mxu0 0
      %983 = vmatpush1.bf16.xpose.msra.mxu0 0
      %984 = vmatprep.subr.bf16.mxu0 0
      %985 = vmatpush1.bf16.xpose.msra.mxu0 0
      %986 = vmatprep.subr.bf16.mxu0 0
      %987 = vmatpush1.bf16.xpose.msra.mxu0 0
      %988 = vmatprep.subr.bf16.mxu0 0
      %989 = vmatpush1.bf16.xpose.msra.mxu0 0
      %990 = vmatprep.subr.bf16.mxu0 0
      %991 = vmatpush1.bf16.xpose.msra.mxu0 0
      %992 = vmatprep.subr.bf16.mxu0 0
      %993 = vmatpush1.bf16.xpose.msra.mxu0 0
      %994 = vmatprep.subr.bf16.mxu0 0
      %995 = vmatpush1.bf16.xpose.msra.mxu0 0
      %996 = vmatprep.subr.bf16.mxu0 0
      %997 = vmatpush1.bf16.xpose.msra.mxu0 0
      %998 = vmatprep.mubr.bf16.mxu0 0
      %999 = vmatmul.mubr.bf16.gmra.mrb[0].mxu0 %v961
      %v1000 = vpop.f32.mrb[0].mxu0
      %v1001 = vadd.f32 0.0, %v1000
      %v1002 = vpop.f32.mrb[0].mxu0
      %v1003 = vpop.f32.mrb[0].mxu0
      %v1004 = vpop.f32.mrb[0].mxu0
      %1005 = vdwg.mxu0
      %v1006 = vsel %vm658, -10000.0, %v1001
      %v1007 = vsel %vm731, %v1006, -inf
      %1008 = vmax.xlane.f32.xlu0 %v1007
      %v1009 = vpop.xlane.xlu0 %1008
      %v1010 = vsub.f32 %v1006, %v1009
      %v1011 = vmul.f32 %v1010, 1.442695
      %v1012 = vpow.pop %v1011
      %v1013 = vsel %vm731, %v1012, 0.0
      %1014 = vadd.xlane.f32.xlu0 %v1013
      %v1015 = vpop.xlane.xlu0 %1014
      %v1016 = vrcp.pop %v1015
      %v1017 = vmul.f32 %v1012, %v1016
      %v1018 = vpack.c.bf16 %v1017, %v1017
      %1019 = vrot.lane.b32.xlu0 %v907, 112
      %v1020 = vpop.permute.xlu0 %1019
      %v1022 = vsel %vm731, %v1018, 0
      %v1025 = vsel %vm794, %v1020, 0
      %1027 = vmatprep.subr.bf16.mxu0 0
      %1028 = vmatpush1.bf16.msra.mxu0 %v1025
      %1029 = vmatprep.subr.bf16.mxu0 0
      %1030 = vmatpush1.bf16.msra.mxu0 0
      %1031 = vmatprep.subr.bf16.mxu0 0
      %1032 = vmatpush1.bf16.msra.mxu0 0
      %1033 = vmatprep.subr.bf16.mxu0 0
      %1034 = vmatpush1.bf16.msra.mxu0 0
      %1035 = vmatprep.subr.bf16.mxu0 0
      %1036 = vmatpush1.bf16.msra.mxu0 0
      %1037 = vmatprep.subr.bf16.mxu0 0
      %1038 = vmatpush1.bf16.msra.mxu0 0
      %1039 = vmatprep.subr.bf16.mxu0 0
      %1040 = vmatpush1.bf16.msra.mxu0 0
      %1041 = vmatprep.subr.bf16.mxu0 0
      %1042 = vmatpush1.bf16.msra.mxu0 0
      %1043 = vmatprep.subr.bf16.mxu0 0
      %1044 = vmatpush1.bf16.msra.mxu0 0
      %1045 = vmatprep.subr.bf16.mxu0 0
      %1046 = vmatpush1.bf16.msra.mxu0 0
      %1047 = vmatprep.subr.bf16.mxu0 0
      %1048 = vmatpush1.bf16.msra.mxu0 0
      %1049 = vmatprep.subr.bf16.mxu0 0
      %1050 = vmatpush1.bf16.msra.mxu0 0
      %1051 = vmatprep.subr.bf16.mxu0 0
      %1052 = vmatpush1.bf16.msra.mxu0 0
      %1053 = vmatprep.subr.bf16.mxu0 0
      %1054 = vmatpush1.bf16.msra.mxu0 0
      %1055 = vmatprep.subr.bf16.mxu0 0
      %1056 = vmatpush1.bf16.msra.mxu0 0
      %1057 = vmatprep.subr.bf16.mxu0 0
      %1058 = vmatpush1.bf16.msra.mxu0 0
      %1059 = vmatprep.mubr.bf16.mxu0 0
      %1060 = vmatmul.mubr.bf16.gmra.mrb[0].mxu0 %v1022
      %v1061 = vpop.f32.mrb[0].mxu0
      %v1062 = vadd.f32 0.0, %v1061
      %v1063 = vpop.f32.mrb[0].mxu0
      %v1064 = vpop.f32.mrb[0].mxu0
      %v1065 = vpop.f32.mrb[0].mxu0
      %1066 = vdwg.mxu0
      %1067 = vrot.lane.b32.xlu0 %v730, 104
      %v1068 = vpop.permute.xlu0 %1067
      %1069 = vrot.lane.b32.xlu0 %v843, 104
      %v1070 = vpop.permute.xlu0 %1069
      %v1072 = vsel %vm731, %v1068, 0
      %v1075 = vsel %vm731, %v1070, 0
      %1077 = vmatprep.subr.bf16.mxu0 0
      %1078 = vmatpush1.bf16.xpose.msra.mxu0 %v1075
      %1079 = vmatprep.subr.bf16.mxu0 0
      %1080 = vmatpush1.bf16.xpose.msra.mxu0 0
      %1081 = vmatprep.subr.bf16.mxu0 0
      %1082 = vmatpush1.bf16.xpose.msra.mxu0 0
      %1083 = vmatprep.subr.bf16.mxu0 0
      %1084 = vmatpush1.bf16.xpose.msra.mxu0 0
      %1085 = vmatprep.subr.bf16.mxu0 0
      %1086 = vmatpush1.bf16.xpose.msra.mxu0 0
      %1087 = vmatprep.subr.bf16.mxu0 0
      %1088 = vmatpush1.bf16.xpose.msra.mxu0 0
      %1089 = vmatprep.subr.bf16.mxu0 0
      %1090 = vmatpush1.bf16.xpose.msra.mxu0 0
      %1091 = vmatprep.subr.bf16.mxu0 0
      %1092 = vmatpush1.bf16.xpose.msra.mxu0 0
      %1093 = vmatprep.subr.bf16.mxu0 0
      %1094 = vmatpush1.bf16.xpose.msra.mxu0 0
      %1095 = vmatprep.subr.bf16.mxu0 0
      %1096 = vmatpush1.bf16.xpose.msra.mxu0 0
      %1097 = vmatprep.subr.bf16.mxu0 0
      %1098 = vmatpush1.bf16.xpose.msra.mxu0 0
      %1099 = vmatprep.subr.bf16.mxu0 0
      %1100 = vmatpush1.bf16.xpose.msra.mxu0 0
      %1101 = vmatprep.subr.bf16.mxu0 0
      %1102 = vmatpush1.bf16.xpose.msra.mxu0 0
      %1103 = vmatprep.subr.bf16.mxu0 0
      %1104 = vmatpush1.bf16.xpose.msra.mxu0 0
      %1105 = vmatprep.subr.bf16.mxu0 0
      %1106 = vmatpush1.bf16.xpose.msra.mxu0 0
      %1107 = vmatprep.subr.bf16.mxu0 0
      %1108 = vmatpush1.bf16.xpose.msra.mxu0 0
      %1109 = vmatprep.mubr.bf16.mxu0 0
      %1110 = vmatmul.mubr.bf16.gmra.mrb[0].mxu0 %v1072
      %v1111 = vpop.f32.mrb[0].mxu0
      %v1112 = vadd.f32 0.0, %v1111
      %v1113 = vpop.f32.mrb[0].mxu0
      %v1114 = vpop.f32.mrb[0].mxu0
      %v1115 = vpop.f32.mrb[0].mxu0
      %1116 = vdwg.mxu0
      %v1117 = vsel %vm658, -10000.0, %v1112
      %v1118 = vsel %vm731, %v1117, -inf
      %1119 = vmax.xlane.f32.xlu0 %v1118
      %v1120 = vpop.xlane.xlu0 %1119
      %v1121 = vsub.f32 %v1117, %v1120
      %v1122 = vmul.f32 %v1121, 1.442695
      %v1123 = vpow.pop %v1122
      %v1124 = vsel %vm731, %v1123, 0.0
      %1125 = vadd.xlane.f32.xlu0 %v1124
      %v1126 = vpop.xlane.xlu0 %1125
      %v1127 = vrcp.pop %v1126
      %v1128 = vmul.f32 %v1123, %v1127
      %v1129 = vpack.c.bf16 %v1128, %v1128
      %1130 = vrot.lane.b32.xlu0 %v907, 104
      %v1131 = vpop.permute.xlu0 %1130
      %v1133 = vsel %vm731, %v1129, 0
      %v1136 = vsel %vm794, %v1131, 0
      %1138 = vmatprep.subr.bf16.mxu0 0
      %1139 = vmatpush1.bf16.msra.mxu0 %v1136
      %1140 = vmatprep.subr.bf16.mxu0 0
      %1141 = vmatpush1.bf16.msra.mxu0 0
      %1142 = vmatprep.subr.bf16.mxu0 0
      %1143 = vmatpush1.bf16.msra.mxu0 0
      %1144 = vmatprep.subr.bf16.mxu0 0
      %1145 = vmatpush1.bf16.msra.mxu0 0
      %1146 = vmatprep.subr.bf16.mxu0 0
      %1147 = vmatpush1.bf16.msra.mxu0 0
      %1148 = vmatprep.subr.bf16.mxu0 0
      %1149 = vmatpush1.bf16.msra.mxu0 0
      %1150 = vmatprep.subr.bf16.mxu0 0
      %1151 = vmatpush1.bf16.msra.mxu0 0
      %1152 = vmatprep.subr.bf16.mxu0 0
      %1153 = vmatpush1.bf16.msra.mxu0 0
      %1154 = vmatprep.subr.bf16.mxu0 0
      %1155 = vmatpush1.bf16.msra.mxu0 0
      %1156 = vmatprep.subr.bf16.mxu0 0
      %1157 = vmatpush1.bf16.msra.mxu0 0
      %1158 = vmatprep.subr.bf16.mxu0 0
      %1159 = vmatpush1.bf16.msra.mxu0 0
      %1160 = vmatprep.subr.bf16.mxu0 0
      %1161 = vmatpush1.bf16.msra.mxu0 0
      %1162 = vmatprep.subr.bf16.mxu0 0
      %1163 = vmatpush1.bf16.msra.mxu0 0
      %1164 = vmatprep.subr.bf16.mxu0 0
      %1165 = vmatpush1.bf16.msra.mxu0 0
      %1166 = vmatprep.subr.bf16.mxu0 0
      %1167 = vmatpush1.bf16.msra.mxu0 0
      %1168 = vmatprep.subr.bf16.mxu0 0
      %1169 = vmatpush1.bf16.msra.mxu0 0
      %1170 = vmatprep.mubr.bf16.mxu0 0
      %1171 = vmatmul.mubr.bf16.gmra.mrb[0].mxu0 %v1133
      %v1172 = vpop.f32.mrb[0].mxu0
      %v1173 = vadd.f32 0.0, %v1172
      %v1174 = vpop.f32.mrb[0].mxu0
      %v1175 = vpop.f32.mrb[0].mxu0
      %v1176 = vpop.f32.mrb[0].mxu0
      %1177 = vdwg.mxu0
      %1179 = vrot.lane.b32.xlu0 %v951, 8
      %v1180 = vpop.permute.xlu0 %1179
      %1183 = vrot.lane.b32.xlu0 %v1062, 16
      %v1184 = vpop.permute.xlu0 %1183
      %1187 = vrot.lane.b32.xlu0 %v1173, 24
      %v1188 = vpop.permute.xlu0 %1187
      %v1190 = vsel %vm731, %v833, %v1180
      %vm1191 = vcmask 130048
      %v1192 = vsel %vm1191, %v1190, %v1184
      %vm1193 = vcmask 195584
      %v1194 = vsel %vm1193, %v1192, %v1188
      %v1195 = vpack.c.bf16 %v1194, %v1194
      %v1196 = vld [vmem:[%s6] sm:$0xf]
      %v1197 = vld [vmem:[%s6 + $0x4] sm:$0xf]
      %v1198 = vld [vmem:[%s6 + $0x8] sm:$0xf]
      %v1199 = vld [vmem:[%s6 + $0xc] sm:$0xf]
      %v1200 = vld [vmem:[%s7] sm:$0x1]
      %v1202 = vlaneseq
      %v1203 = vshrl.u32 %v1202, 7
      %v1204 = vsub.s32 0, %v1203
      %v1205 = vrot.slane %v1200, %v1204
      %v1211 = vunpack.c.l.b16 %v1196
      %v1212 = vunpack.c.l.b16 %v1197
      %v1213 = vunpack.c.l.b16 %v1198
      %v1214 = vunpack.c.l.b16 %v1199
      %v1215 = vpack.c.b16 %v1212, %v1211
      %v1216 = vpack.c.b16 %v1214, %v1213
      %v1220 = vsel %vm682, %v1195, 0
      %1222 = vmatprep.subr.bf16.mxu0 0
      %1223 = vmatpush1.bf16.msra.mxu0 %v1215
      %1224 = vmatprep.subr.bf16.mxu0 0
      %1225 = vmatpush1.bf16.msra.mxu0 %v1216
      %1226 = vmatprep.subr.bf16.mxu0 0
      %1227 = vmatpush1.bf16.msra.mxu0 0
      %1228 = vmatprep.subr.bf16.mxu0 0
      %1229 = vmatpush1.bf16.msra.mxu0 0
      %1230 = vmatprep.subr.bf16.mxu0 0
      %1231 = vmatpush1.bf16.msra.mxu0 0
      %1232 = vmatprep.subr.bf16.mxu0 0
      %1233 = vmatpush1.bf16.msra.mxu0 0
      %1234 = vmatprep.subr.bf16.mxu0 0
      %1235 = vmatpush1.bf16.msra.mxu0 0
      %1236 = vmatprep.subr.bf16.mxu0 0
      %1237 = vmatpush1.bf16.msra.mxu0 0
      %1238 = vmatprep.subr.bf16.mxu0 0
      %1239 = vmatpush1.bf16.msra.mxu0 0
      %1240 = vmatprep.subr.bf16.mxu0 0
      %1241 = vmatpush1.bf16.msra.mxu0 0
      %1242 = vmatprep.subr.bf16.mxu0 0
      %1243 = vmatpush1.bf16.msra.mxu0 0
      %1244 = vmatprep.subr.bf16.mxu0 0
      %1245 = vmatpush1.bf16.msra.mxu0 0
      %1246 = vmatprep.subr.bf16.mxu0 0
      %1247 = vmatpush1.bf16.msra.mxu0 0
      %1248 = vmatprep.subr.bf16.mxu0 0
      %1249 = vmatpush1.bf16.msra.mxu0 0
      %1250 = vmatprep.subr.bf16.mxu0 0
      %1251 = vmatpush1.bf16.msra.mxu0 0
      %1252 = vmatprep.subr.bf16.mxu0 0
      %1253 = vmatpush1.bf16.msra.mxu0 0
      %1254 = vmatprep.mubr.bf16.mxu0 0
      %1255 = vmatmul.mubr.bf16.gmra.mrb[0].mxu0 %v1220
      %v1256 = vpop.f32.mrb[0].mxu0
      %v1257 = vadd.f32 %v1205, %v1256
      %v1258 = vpop.f32.mrb[0].mxu0
      %v1259 = vpop.f32.mrb[0].mxu0
      %v1260 = vpop.f32.mrb[0].mxu0
      %1261 = vdwg.mxu0
      %v1262 = vadd.f32 %v1257, %v655
      %v1263 = vld [vmem:[%s8] sm:$0x1]
      %v1264 = vld [vmem:[%s9] sm:$0x1]
      %v1265 = vsel %vm682, %v1262, 0.0
      %1266 = vadd.xlane.f32.xlu0 %v1265
      %v1267 = vpop.xlane.xlu0 %1266
      %v1268 = vrcp.pop 32.0
      %v1269 = vmul.f32 %v1267, %v1268
      %v1270 = vsub.f32 %v1262, %v1269
      %v1271 = vmul.f32 %v1270, %v1270
      %v1272 = vsel %vm682, %v1271, 0.0
      %1273 = vadd.xlane.f32.xlu0 %v1272
      %v1274 = vpop.xlane.xlu0 %1273
      %v1275 = vmul.f32 %v1274, %v1268
      %v1276 = vadd.f32 %v1275, 1e-12
      %v1277 = vrsqrt.pop %v1276
      %v1278 = vmul.f32 %v1270, %v1277
      %v1280 = vlaneseq
      %v1281 = vshrl.u32 %v1280, 7
      %v1282 = vsub.s32 0, %v1281
      %v1283 = vrot.slane %v1263, %v1282
      %v1285 = vmul.f32 %v1278, %v1283
      %v1287 = vlaneseq
      %v1288 = vshrl.u32 %v1287, 7
      %v1289 = vsub.s32 0, %v1288
      %v1290 = vrot.slane %v1264, %v1289
      %v1292 = vadd.f32 %v1285, %v1290
      %v1293 = vpack.c.bf16 %v1292, %v1292
      %v1294 = vld [vmem:[%s10] sm:$0xf]
      %v1295 = vld [vmem:[%s10 + $0x4] sm:$0xf]
      %v1296 = vld [vmem:[%s10 + $0x8] sm:$0xf]
      %v1297 = vld [vmem:[%s10 + $0xc] sm:$0xf]
      %v1298 = vld [vmem:[%s11] sm:$0x1]
      %v1300 = vlaneseq
      %v1301 = vshrl.u32 %v1300, 7
      %v1302 = vsub.s32 0, %v1301
      %v1303 = vrot.slane %v1298, %v1302
      %v1309 = vunpack.c.l.b16 %v1294
      %v1310 = vunpack.c.l.b16 %v1295
      %v1311 = vunpack.c.l.b16 %v1296
      %v1312 = vunpack.c.l.b16 %v1297
      %v1313 = vpack.c.b16 %v1310, %v1309
      %v1314 = vpack.c.b16 %v1312, %v1311
      %v1318 = vsel %vm682, %v1293, 0
      %1320 = vmatprep.subr.bf16.mxu0 0
      %1321 = vmatpush1.bf16.msra.mxu0 %v1313
      %1322 = vmatprep.subr.bf16.mxu0 0
      %1323 = vmatpush1.bf16.msra.mxu0 %v1314
      %1324 = vmatprep.subr.bf16.mxu0 0
      %1325 = vmatpush1.bf16.msra.mxu0 0
      %1326 = vmatprep.subr.bf16.mxu0 0
      %1327 = vmatpush1.bf16.msra.mxu0 0
      %1328 = vmatprep.subr.bf16.mxu0 0
      %1329 = vmatpush1.bf16.msra.mxu0 0
      %1330 = vmatprep.subr.bf16.mxu0 0
      %1331 = vmatpush1.bf16.msra.mxu0 0
      %1332 = vmatprep.subr.bf16.mxu0 0
      %1333 = vmatpush1.bf16.msra.mxu0 0
      %1334 = vmatprep.subr.bf16.mxu0 0
      %1335 = vmatpush1.bf16.msra.mxu0 0
      %1336 = vmatprep.subr.bf16.mxu0 0
      %1337 = vmatpush1.bf16.msra.mxu0 0
      %1338 = vmatprep.subr.bf16.mxu0 0
      %1339 = vmatpush1.bf16.msra.mxu0 0
      %1340 = vmatprep.subr.bf16.mxu0 0
      %1341 = vmatpush1.bf16.msra.mxu0 0
      %1342 = vmatprep.subr.bf16.mxu0 0
      %1343 = vmatpush1.bf16.msra.mxu0 0
      %1344 = vmatprep.subr.bf16.mxu0 0
      %1345 = vmatpush1.bf16.msra.mxu0 0
      %1346 = vmatprep.subr.bf16.mxu0 0
      %1347 = vmatpush1.bf16.msra.mxu0 0
      %1348 = vmatprep.subr.bf16.mxu0 0
      %1349 = vmatpush1.bf16.msra.mxu0 0
      %1350 = vmatprep.subr.bf16.mxu0 0
      %1351 = vmatpush1.bf16.msra.mxu0 0
      %1352 = vmatprep.mubr.bf16.mxu0 0
      %1353 = vmatmul.mubr.bf16.gmra.mrb[0].mxu0 %v1318
      %v1354 = vpop.f32.mrb[0].mxu0
      %v1355 = vadd.f32 %v1303, %v1354
      %v1356 = vpop.f32.mrb[0].mxu0
      %v1357 = vpop.f32.mrb[0].mxu0
      %v1358 = vpop.f32.mrb[0].mxu0
      %1359 = vdwg.mxu0
      %v1360 = vmax.f32 %v1355, 0.0
      %v1361 = vpack.c.bf16 %v1360, %v1360
      %v1362 = vld [vmem:[%s12] sm:$0xf]
      %v1363 = vld [vmem:[%s12 + $0x4] sm:$0xf]
      %v1364 = vld [vmem:[%s12 + $0x8] sm:$0xf]
      %v1365 = vld [vmem:[%s12 + $0xc] sm:$0xf]
      %v1366 = vld [vmem:[%s12 + $0x10] sm:$0xf]
      %v1367 = vld [vmem:[%s12 + $0x14] sm:$0xf]
      %v1368 = vld [vmem:[%s12 + $0x18] sm:$0xf]
      %v1369 = vld [vmem:[%s12 + $0x1c] sm:$0xf]
      %v1370 = vld [vmem:[%s13] sm:$0x1]
      %v1372 = vlaneseq
      %v1373 = vshrl.u32 %v1372, 7
      %v1374 = vsub.s32 0, %v1373
      %v1375 = vrot.slane %v1370, %v1374
      %v1385 = vunpack.c.l.b16 %v1362
      %v1386 = vunpack.c.l.b16 %v1363
      %v1387 = vunpack.c.l.b16 %v1364
      %v1388 = vunpack.c.l.b16 %v1365
      %v1389 = vunpack.c.l.b16 %v1366
      %v1390 = vunpack.c.l.b16 %v1367
      %v1391 = vunpack.c.l.b16 %v1368
      %v1392 = vunpack.c.l.b16 %v1369
      %v1393 = vpack.c.b16 %v1386, %v1385
      %v1394 = vpack.c.b16 %v1388, %v1387
      %v1395 = vpack.c.b16 %v1390, %v1389
      %v1396 = vpack.c.b16 %v1392, %v1391
      %vm1401 = vcmask 523264
      %v1403 = vsel %vm1401, %v1361, 0
      %1405 = vmatprep.subr.bf16.mxu0 0
      %1406 = vmatpush1.bf16.msra.mxu0 %v1393
      %1407 = vmatprep.subr.bf16.mxu0 0
      %1408 = vmatpush1.bf16.msra.mxu0 %v1394
      %1409 = vmatprep.subr.bf16.mxu0 0
      %1410 = vmatpush1.bf16.msra.mxu0 %v1395
      %1411 = vmatprep.subr.bf16.mxu0 0
      %1412 = vmatpush1.bf16.msra.mxu0 %v1396
      %1413 = vmatprep.subr.bf16.mxu0 0
      %1414 = vmatpush1.bf16.msra.mxu0 0
      %1415 = vmatprep.subr.bf16.mxu0 0
      %1416 = vmatpush1.bf16.msra.mxu0 0
      %1417 = vmatprep.subr.bf16.mxu0 0
      %1418 = vmatpush1.bf16.msra.mxu0 0
      %1419 = vmatprep.subr.bf16.mxu0 0
      %1420 = vmatpush1.bf16.msra.mxu0 0
      %1421 = vmatprep.subr.bf16.mxu0 0
      %1422 = vmatpush1.bf16.msra.mxu0 0
      %1423 = vmatprep.subr.bf16.mxu0 0
      %1424 = vmatpush1.bf16.msra.mxu0 0
      %1425 = vmatprep.subr.bf16.mxu0 0
      %1426 = vmatpush1.bf16.msra.mxu0 0
      %1427 = vmatprep.subr.bf16.mxu0 0
      %1428 = vmatpush1.bf16.msra.mxu0 0
      %1429 = vmatprep.subr.bf16.mxu0 0
      %1430 = vmatpush1.bf16.msra.mxu0 0
      %1431 = vmatprep.subr.bf16.mxu0 0
      %1432 = vmatpush1.bf16.msra.mxu0 0
      %1433 = vmatprep.subr.bf16.mxu0 0
      %1434 = vmatpush1.bf16.msra.mxu0 0
      %1435 = vmatprep.subr.bf16.mxu0 0
      %1436 = vmatpush1.bf16.msra.mxu0 0
      %1437 = vmatprep.mubr.bf16.mxu0 0
      %1438 = vmatmul.mubr.bf16.gmra.mrb[0].mxu0 %v1403
      %v1439 = vpop.f32.mrb[0].mxu0
      %v1440 = vadd.f32 %v1375, %v1439
      %v1441 = vpop.f32.mrb[0].mxu0
      %v1442 = vpop.f32.mrb[0].mxu0
      %v1443 = vpop.f32.mrb[0].mxu0
      %1444 = vdwg.mxu0
      %v1445 = vadd.f32 %v1440, %v1292
      %v1446 = vld [vmem:[%s14] sm:$0x1]
      %v1447 = vld [vmem:[%s15] sm:$0x1]
      %v1448 = vsel %vm682, %v1445, 0.0
      %1449 = vadd.xlane.f32.xlu0 %v1448
      %v1450 = vpop.xlane.xlu0 %1449
      %v1451 = vmul.f32 %v1450, %v1268
      %v1452 = vsub.f32 %v1445, %v1451
      %v1453 = vmul.f32 %v1452, %v1452
      %v1454 = vsel %vm682, %v1453, 0.0
      %1455 = vadd.xlane.f32.xlu0 %v1454
      %v1456 = vpop.xlane.xlu0 %1455
      %v1457 = vmul.f32 %v1456, %v1268
      %v1458 = vadd.f32 %v1457, 1e-12
      %v1459 = vrsqrt.pop %v1458
      %v1460 = vmul.f32 %v1452, %v1459
      %v1462 = vlaneseq
      %v1463 = vshrl.u32 %v1462, 7
      %v1464 = vsub.s32 0, %v1463
      %v1465 = vrot.slane %v1446, %v1464
      %v1467 = vmul.f32 %v1460, %v1465
      %v1469 = vlaneseq
      %v1470 = vshrl.u32 %v1469, 7
      %v1471 = vsub.s32 0, %v1470
      %v1472 = vrot.slane %v1447, %v1471
      %v1474 = vadd.f32 %v1467, %v1472
      %v1475 = vpack.c.bf16 %v1474, %v1474
      %vm1476 = vcmask 257024
      %1477 = vst.msk [vmem:[%s564] sm:$0xf] %vm1476, %v1475
      %p1478 = scmp.lt.s32.totalorder %s31, 1
      %s1479 = scalar_select %p1478, %s31, 1
      %p1480 = scmp.lt.s32.totalorder %s32, 0
      %s1481 = scalar_select %p1480, %s32, 0
      %s1482 = sadd.s32 %s1481, %s1479
      %s1483 = smul.addr %s1482, 4
      %s1484 = scalar_lea.vmem %s16, %s1483
      // Predicated region
      $region89: #{encoder_forward.3} parent=83 // pred_check
        %p1485 = pneg %p407
      $region90: #{encoder_forward.3} parent=83 // pred_check_branch
        %1487 = sbr.rel (%p1485) target = $region92
      $region91: #{encoder_forward.3} parent=83 // pred_region
        _
      $region92: #{encoder_forward.3} parent=83 // pred_fallthru
        _
    $region84: #{encoder_forward.3} parent=5 // pred_fallthru
      _
    %p1488 = scmp.le.s32.totalorder 2, %s22
    // Predicated region
    $region93: #{encoder_forward.3} parent=5 // pred_check
      %p1489 = pneg %p1488
    $region94: #{encoder_forward.3} parent=5 // pred_check_branch
      %1491 = sbr.rel (%p1489) target = $region96
    $region95: #{encoder_forward.3} parent=5 // pred_region
      %s1492 = ssub.s32 %s22, 2
      // Predicated region
      $region97: #{encoder_forward.3} parent=95 // pred_check
        %p1493 = pneg %p413
      $region98: #{encoder_forward.3} parent=95 // pred_check_branch
        %1495 = sbr.rel (%p1493) target = $region100
      $region99: #{encoder_forward.3} parent=95 // pred_region
        %p1496 = scmp.lt.s32.totalorder %s33, 1
        %s1497 = scalar_select %p1496, %s33, 1
        %p1498 = scmp.lt.s32.totalorder %s34, 0
        %s1499 = scalar_select %p1498, %s34, 0
        %s1500 = sadd.s32 %s1499, %s1497
        %s1501 = smul.addr %s1500, 4
        %s1502 = scalar_lea.vmem %s16, %s1501
      $region100: #{encoder_forward.3} parent=95 // pred_fallthru
        _
    $region96: #{encoder_forward.3} parent=5 // pred_fallthru
      _
  $region6: #{encoder_forward.3} parent=0 // loop_footer
    %s26 = sadd.s32 1, %s22
  $region7: #{encoder_forward.3} parent=0 // loop_footer_branch
    %21 = sbr.rel target = $region3
  $region8: #{encoder_forward.3} parent=0 // loop_exit
    _

</llo_original>
